<compile_context>
chip_gen: v7x
topology: tpu7x:2x2x1
jax: 0.10.0
libtpu: 0.0.40
codegen_flags: <defaults>
</compile_context>

<pallas_src>
import functools

import jax
import jax.numpy as jnp
import numpy as np
from jax.experimental import pallas as pl
from jax.experimental.pallas import tpu as pltpu


# ----------------------------------------------------------------------------
# Pass 1 (one image per grid step):
#   fused-K 3x3 conv (single MXU matmul) -> bf16 conv cache (channels-major)
#   + per-image partial BN statistics.
# ----------------------------------------------------------------------------
def _conv_stats_kernel(x_ref, w_ref, cache_ref, sum_ref, ssq_ref, lhs_ref):
    # x_ref:     (H+2, W+2, Cin)  bf16   zero-padded NHWC image
    # w_ref:     (9*Cin, Cpad)    bf16   taps stacked along K (tap-major, Cin minor)
    # cache_ref: (Cout, H*W)      bf16   conv output, channels-major (lane-dense)
    # sum_ref:   (1, Cpad)        f32    per-image sum over pixels
    # ssq_ref:   (1, Cpad)        f32    per-image sum of squares
    # lhs_ref:   (H*W, 9*Cin)     bf16   VMEM scratch: fused im2col slab
    Hp, Wp, Cin = x_ref.shape
    H, W = Hp - 2, Wp - 2
    HW = H * W
    Cout = cache_ref.shape[0]

    # Build the (HW, 9*Cin) LHS slab directly from ref slices (no whole padded
    # image held live as a value), then do ONE K=9*Cin MXU matmul.
    t = 0
    for dy in range(3):
        for dx in range(3):
            win = x_ref[dy:dy + H, dx:dx + W, :]                  # (H, W, Cin) bf16
            lhs_ref[:, t * Cin:(t + 1) * Cin] = win.reshape(HW, Cin)
            t += 1

    acc = jnp.dot(lhs_ref[...], w_ref[...],
                  preferred_element_type=jnp.float32)             # (HW, Cpad) f32

    # Per-image partial BN statistics (padded channels are all-zero).
    sum_ref[...] = jnp.sum(acc, axis=0, keepdims=True)            # (1, Cpad)
    ssq_ref[...] = jnp.sum(acc * acc, axis=0, keepdims=True)

    # Channels-major bf16 conv cache: slice the real channels BEFORE the XLU
    # transpose so no work is spent on the Cpad-Cout dead columns.  Last dim
    # of the store is H*W -> lane-dense.
    cache_ref[...] = acc[:, :Cout].T.astype(cache_ref.dtype)      # (Cout, HW)


# ----------------------------------------------------------------------------
# Pass 2: pure lane-dense elementwise BN (affine) + ReLU on the conv cache.
# All math in f32 (v5e has no bf16 VPU).
# ----------------------------------------------------------------------------
def _bn_relu_kernel(c_ref, scale_ref, bias_ref, o_ref):
    # c_ref: (Cout, hw_tile) bf16; scale/bias: (Cout, 1) f32; o_ref: (Cout, hw_tile) f32
    y = c_ref[...].astype(jnp.float32) * scale_ref[...] + bias_ref[...]
    o_ref[...] = jnp.maximum(y, 0.0)


def _cparams(semantics, est_bytes):
    # Derive the scoped-VMEM limit from actual tile sizes (1.5x headroom);
    # floor at 32 MiB so the small-problem path is unthrottled, cap at 96 MiB
    # (safe for v6e/v5e's 128 MiB physical).  On v7x (64 MiB physical) large
    # images need the row-tiling TODO rather than a bigger limit.
    limit = int(min(max(32 * 1024 * 1024, int(1.5 * est_bytes)),
                    96 * 1024 * 1024))
    return pltpu.CompilerParams(dimension_semantics=semantics,
                                vmem_limit_bytes=limit)


# ----------------------------------------------------------------------------
# Wrapper
# ----------------------------------------------------------------------------
@functools.partial(jax.jit, static_argnames=("eps",))
def conv2d_block_forward(x_nchw, weight, gamma, beta, *, eps=1e-5):
    """x_nchw: (N, Cin, H, W) f32, weight: (Cout, Cin, 3, 3) f32."""
    N, Cin, H, W = x_nchw.shape
    Cout, Cin_w, kh, kw = weight.shape
    assert (Cin_w, kh, kw) == (Cin, 3, 3)

    HW = H * W
    Mcnt = N * HW
    K9 = 9 * Cin
    Cpad = ((Cout + 127) // 128) * 128   # lane-dense MXU output columns

    # NCHW -> NHWC, zero-pad spatially for 'same', bf16 MXU operands.
    # TODO(synk): fold this prep into pass 1 (see module header).
    x_pad = jnp.pad(jnp.transpose(x_nchw, (0, 2, 3, 1)),
                    ((0, 0), (1, 1), (1, 1), (0, 0))).astype(jnp.bfloat16)

    # (Cout, Cin, 3, 3) -> (3, 3, Cin, Cout) -> (9*Cin, Cout) -> pad Cout -> bf16.
    # K ordering (tap-major, Cin minor) matches the LHS slab built in-kernel.
    w_fused = jnp.transpose(weight, (2, 3, 1, 0)).reshape(K9, Cout)
    w_fused = jnp.pad(w_fused, ((0, 0), (0, Cpad - Cout))).astype(jnp.bfloat16)

    # ---- pass 1: fused conv + bf16 cache + per-image partial BN stats -------
    p1_bytes = (2 * (H + 2) * (W + 2) * Cin * 2     # x, double-buffered
                + 2 * K9 * Cpad * 2                 # weights (constant block)
                + 2 * Cout * HW * 2                 # cache output
                + 4 * 2 * Cpad * 4                  # stats outputs
                + HW * K9 * 2                       # im2col scratch
                + HW * Cpad * 4)                    # f32 matmul accumulator
    cache, part_sum, part_ssq = pl.pallas_call(
        _conv_stats_kernel,
        out_shape=(jax.ShapeDtypeStruct((N, Cout, HW), jnp.bfloat16),
                   jax.ShapeDtypeStruct((N, 1, Cpad), jnp.float32),
                   jax.ShapeDtypeStruct((N, 1, Cpad), jnp.float32)),
        grid_spec=pltpu.PrefetchScalarGridSpec(
            num_scalar_prefetch=0,
            grid=(N,),
            in_specs=[
                pl.BlockSpec((None, H + 2, W + 2, Cin), lambda n: (n, 0, 0, 0)),
                pl.BlockSpec((K9, Cpad), lambda n: (0, 0)),
            ],
            out_specs=(
                pl.BlockSpec((None, Cout, HW), lambda n: (n, 0, 0)),
                pl.BlockSpec((None, 1, Cpad), lambda n: (n, 0, 0)),
                pl.BlockSpec((None, 1, Cpad), lambda n: (n, 0, 0)),
            ),
            scratch_shapes=[pltpu.VMEM((HW, K9), jnp.bfloat16)],
        ),
        compiler_params=_cparams(("parallel",), p1_bytes),
    )(x_pad, w_fused)

    # ---- tiny per-channel scalar math (glue, real channels only) ------------
    ch_sum = jnp.sum(part_sum, axis=(0, 1))[:Cout]
    ch_ssq = jnp.sum(part_ssq, axis=(0, 1))[:Cout]
    mean = ch_sum / Mcnt
    var = jnp.maximum(ch_ssq / Mcnt - mean * mean, 0.0)   # biased var, clamped
    scale_v = gamma.astype(jnp.float32) * jax.lax.rsqrt(var + eps)
    bias_v = beta.astype(jnp.float32) - mean * scale_v
    scale = scale_v.reshape(Cout, 1)
    bias = bias_v.reshape(Cout, 1)

    # ---- pass 2: elementwise BN + ReLU on the lane-dense conv cache ---------
    # Tile HW (lane dim); keep >= 4 grid steps at tiny N for the v7x megacore.
    hw_tile = HW
    for cand in (2048, 1024, 512, 256, 128):
        if HW % cand == 0:
            hw_tile = cand
            break
    if N * (HW // hw_tile) < 4 and hw_tile % 256 == 0:
        hw_tile //= 2
    n_hw = HW // hw_tile

    p2_bytes = (2 * Cout * hw_tile * 2      # cache in
                + 2 * Cout * hw_tile * 4    # f32 out
                + 4 * Cout * 4)             # scale + bias
    out = pl.pallas_call(
        _bn_relu_kernel,
        out_shape=jax.ShapeDtypeStruct((N, Cout, HW), jnp.float32),
        grid_spec=pltpu.PrefetchScalarGridSpec(
            num_scalar_prefetch=0,
            grid=(N, n_hw),
            in_specs=[
                pl.BlockSpec((None, Cout, hw_tile), lambda n, j: (n, 0, j)),
                pl.BlockSpec((Cout, 1), lambda n, j: (0, 0)),
                pl.BlockSpec((Cout, 1), lambda n, j: (0, 0)),
            ],
            out_specs=pl.BlockSpec((None, Cout, hw_tile), lambda n, j: (n, 0, j)),
        ),
        compiler_params=_cparams(("parallel", "parallel"), p2_bytes),
    )(cache, scale, bias)

    # (N, Cout, H*W) -> (N, Cout, H, W): contiguous reshape, no transpose pass.
    return out.reshape(N, Cout, H, W)


# ----------------------------------------------------------------------------
# Pure-JAX reference (correctness check only)
# ----------------------------------------------------------------------------
def _reference(x_nchw, weight, gamma, beta, eps=1e-5):
    conv = jax.lax.conv_general_dilated(
        x_nchw, weight, window_strides=(1, 1), padding="SAME",
        dimension_numbers=("NCHW", "OIHW", "NCHW"))
    mean = conv.mean(axis=(0, 2, 3))
    var = conv.var(axis=(0, 2, 3))                 # biased, matches train-mode BN
    y = (conv - mean[None, :, None, None]) * jax.lax.rsqrt(var + eps)[None, :, None, None]
    y = y * gamma[None, :, None, None] + beta[None, :, None, None]
    return jnp.maximum(y, 0.0)


if __name__ == "__main__":
    # Small shapes: batch=2, in_channels=4, out_channels=8, spatial=16x16
    N, Cin, Cout, H, W = 2, 4, 8, 16, 16

    key = jax.random.PRNGKey(0)
    kx, kw, kg, kb = jax.random.split(key, 4)
    x = jax.random.normal(kx, (N, Cin, H, W), dtype=jnp.float32)
    fan_in = Cin * 3 * 3
    weight = jax.random.uniform(
        kw, (Cout, Cin, 3, 3), dtype=jnp.float32,
        minval=-1.0 / np.sqrt(fan_in), maxval=1.0 / np.sqrt(fan_in))
    gamma = 1.0 + 0.1 * jax.random.normal(kg, (Cout,), dtype=jnp.float32)
    beta = 0.1 * jax.random.normal(kb, (Cout,), dtype=jnp.float32)

    out = jax.block_until_ready(conv2d_block_forward(x, weight, gamma, beta))
    assert out.shape == (N, Cout, H, W)

    # Reference on bf16-rounded operands (the kernel's precision policy: bf16
    # MXU inputs + bf16 conv cache, f32 accumulation / BN math), so tolerances
    # stay tight while still catching structural bugs.
    x_r = x.astype(jnp.bfloat16).astype(jnp.float32)
    w_r = weight.astype(jnp.bfloat16).astype(jnp.float32)
    ref = _reference(x_r, w_r, gamma, beta)
    np.testing.assert_allclose(np.asarray(out), np.asarray(ref), rtol=5e-3, atol=5e-3)

    print("KERNEL_OK")
</pallas_src>

<mosaic_0001>
module attributes {stable_mosaic.version = 11 : i64} {
  func.func @_conv_stats_kernel(%arg0: i32, %arg1: memref<1x18x18x4xbf16, #tpu.memory_space<vmem>>, %arg2: memref<36x128xbf16, #tpu.memory_space<vmem>>, %arg3: memref<1x8x256xbf16, #tpu.memory_space<vmem>>, %arg4: memref<1x1x128xf32, #tpu.memory_space<vmem>>, %arg5: memref<1x1x128xf32, #tpu.memory_space<vmem>>, %arg6: memref<256x36xbf16, #tpu.memory_space<vmem>>) attributes {dimension_semantics = [#tpu.dimension_semantics<parallel>], iteration_bounds = array<i64: 2>, scalar_prefetch = 0 : i64, scratch_operands = 1 : i64, tpu.core_type = #tpu.core_type<tc>, window_params = [{transform_indices = @transform_0, window_bounds = array<i64: 1, 18, 18, 4>}, {pipeline_mode = #tpu.pipeline_mode<synchronous>, transform_indices = @transform_1, window_bounds = array<i64: 36, 128>}, {transform_indices = @transform_2, window_bounds = array<i64: 1, 8, 256>}, {transform_indices = @transform_3, window_bounds = array<i64: 1, 1, 128>}, {transform_indices = @transform_4, window_bounds = array<i64: 1, 1, 128>}]} {
    %c0 = arith.constant 0 : index
    %c0_0 = arith.constant 0 : index
    %c0_1 = arith.constant 0 : index
    %c0_2 = arith.constant 0 : index
    %0 = vector.load %arg1[%c0, %c0_0, %c0_1, %c0_2] : memref<1x18x18x4xbf16, #tpu.memory_space<vmem>>, vector<1x16x16x4xbf16>
    %1 = vector.shape_cast %0 : vector<1x16x16x4xbf16> to vector<16x16x4xbf16>
    %2 = vector.shape_cast %1 : vector<16x16x4xbf16> to vector<256x4xbf16>
    %c0_3 = arith.constant 0 : index
    %c0_4 = arith.constant 0 : index
    %3 = vector.load %arg6[%c0_3, %c0_4] : memref<256x36xbf16, #tpu.memory_space<vmem>>, vector<256x4xbf16>
    tpu.vector_store %arg6[%c0_3, %c0_4], %2 {strides = array<i32>} : memref<256x36xbf16, #tpu.memory_space<vmem>>, vector<256x4xbf16>,
    %c0_5 = arith.constant 0 : index
    %c0_6 = arith.constant 0 : index
    %c1 = arith.constant 1 : index
    %c0_7 = arith.constant 0 : index
    %4 = vector.load %arg1[%c0_5, %c0_6, %c1, %c0_7] : memref<1x18x18x4xbf16, #tpu.memory_space<vmem>>, vector<1x16x16x4xbf16>
    %5 = vector.shape_cast %4 : vector<1x16x16x4xbf16> to vector<16x16x4xbf16>
    %6 = vector.shape_cast %5 : vector<16x16x4xbf16> to vector<256x4xbf16>
    %c0_8 = arith.constant 0 : index
    %c4 = arith.constant 4 : index
    %7 = vector.load %arg6[%c0_8, %c4] : memref<256x36xbf16, #tpu.memory_space<vmem>>, vector<256x4xbf16>
    tpu.vector_store %arg6[%c0_8, %c4], %6 {strides = array<i32>} : memref<256x36xbf16, #tpu.memory_space<vmem>>, vector<256x4xbf16>,
    %c0_9 = arith.constant 0 : index
    %c0_10 = arith.constant 0 : index
    %c2 = arith.constant 2 : index
    %c0_11 = arith.constant 0 : index
    %8 = vector.load %arg1[%c0_9, %c0_10, %c2, %c0_11] : memref<1x18x18x4xbf16, #tpu.memory_space<vmem>>, vector<1x16x16x4xbf16>
    %9 = vector.shape_cast %8 : vector<1x16x16x4xbf16> to vector<16x16x4xbf16>
    %10 = vector.shape_cast %9 : vector<16x16x4xbf16> to vector<256x4xbf16>
    %c0_12 = arith.constant 0 : index
    %c8 = arith.constant 8 : index
    %11 = vector.load %arg6[%c0_12, %c8] : memref<256x36xbf16, #tpu.memory_space<vmem>>, vector<256x4xbf16>
    tpu.vector_store %arg6[%c0_12, %c8], %10 {strides = array<i32>} : memref<256x36xbf16, #tpu.memory_space<vmem>>, vector<256x4xbf16>,
    %c0_13 = arith.constant 0 : index
    %c1_14 = arith.constant 1 : index
    %c0_15 = arith.constant 0 : index
    %c0_16 = arith.constant 0 : index
    %12 = vector.load %arg1[%c0_13, %c1_14, %c0_15, %c0_16] : memref<1x18x18x4xbf16, #tpu.memory_space<vmem>>, vector<1x16x16x4xbf16>
    %13 = vector.shape_cast %12 : vector<1x16x16x4xbf16> to vector<16x16x4xbf16>
    %14 = vector.shape_cast %13 : vector<16x16x4xbf16> to vector<256x4xbf16>
    %c0_17 = arith.constant 0 : index
    %c12 = arith.constant 12 : index
    %15 = vector.load %arg6[%c0_17, %c12] : memref<256x36xbf16, #tpu.memory_space<vmem>>, vector<256x4xbf16>
    tpu.vector_store %arg6[%c0_17, %c12], %14 {strides = array<i32>} : memref<256x36xbf16, #tpu.memory_space<vmem>>, vector<256x4xbf16>,
    %c0_18 = arith.constant 0 : index
    %c1_19 = arith.constant 1 : index
    %c1_20 = arith.constant 1 : index
    %c0_21 = arith.constant 0 : index
    %16 = vector.load %arg1[%c0_18, %c1_19, %c1_20, %c0_21] : memref<1x18x18x4xbf16, #tpu.memory_space<vmem>>, vector<1x16x16x4xbf16>
    %17 = vector.shape_cast %16 : vector<1x16x16x4xbf16> to vector<16x16x4xbf16>
    %18 = vector.shape_cast %17 : vector<16x16x4xbf16> to vector<256x4xbf16>
    %c0_22 = arith.constant 0 : index
    %c16 = arith.constant 16 : index
    %19 = vector.load %arg6[%c0_22, %c16] : memref<256x36xbf16, #tpu.memory_space<vmem>>, vector<256x4xbf16>
    tpu.vector_store %arg6[%c0_22, %c16], %18 {strides = array<i32>} : memref<256x36xbf16, #tpu.memory_space<vmem>>, vector<256x4xbf16>,
    %c0_23 = arith.constant 0 : index
    %c1_24 = arith.constant 1 : index
    %c2_25 = arith.constant 2 : index
    %c0_26 = arith.constant 0 : index
    %20 = vector.load %arg1[%c0_23, %c1_24, %c2_25, %c0_26] : memref<1x18x18x4xbf16, #tpu.memory_space<vmem>>, vector<1x16x16x4xbf16>
    %21 = vector.shape_cast %20 : vector<1x16x16x4xbf16> to vector<16x16x4xbf16>
    %22 = vector.shape_cast %21 : vector<16x16x4xbf16> to vector<256x4xbf16>
    %c0_27 = arith.constant 0 : index
    %c20 = arith.constant 20 : index
    %23 = vector.load %arg6[%c0_27, %c20] : memref<256x36xbf16, #tpu.memory_space<vmem>>, vector<256x4xbf16>
    tpu.vector_store %arg6[%c0_27, %c20], %22 {strides = array<i32>} : memref<256x36xbf16, #tpu.memory_space<vmem>>, vector<256x4xbf16>,
    %c0_28 = arith.constant 0 : index
    %c2_29 = arith.constant 2 : index
    %c0_30 = arith.constant 0 : index
    %c0_31 = arith.constant 0 : index
    %24 = vector.load %arg1[%c0_28, %c2_29, %c0_30, %c0_31] : memref<1x18x18x4xbf16, #tpu.memory_space<vmem>>, vector<1x16x16x4xbf16>
    %25 = vector.shape_cast %24 : vector<1x16x16x4xbf16> to vector<16x16x4xbf16>
    %26 = vector.shape_cast %25 : vector<16x16x4xbf16> to vector<256x4xbf16>
    %c0_32 = arith.constant 0 : index
    %c24 = arith.constant 24 : index
    %27 = vector.load %arg6[%c0_32, %c24] : memref<256x36xbf16, #tpu.memory_space<vmem>>, vector<256x4xbf16>
    tpu.vector_store %arg6[%c0_32, %c24], %26 {strides = array<i32>} : memref<256x36xbf16, #tpu.memory_space<vmem>>, vector<256x4xbf16>,
    %c0_33 = arith.constant 0 : index
    %c2_34 = arith.constant 2 : index
    %c1_35 = arith.constant 1 : index
    %c0_36 = arith.constant 0 : index
    %28 = vector.load %arg1[%c0_33, %c2_34, %c1_35, %c0_36] : memref<1x18x18x4xbf16, #tpu.memory_space<vmem>>, vector<1x16x16x4xbf16>
    %29 = vector.shape_cast %28 : vector<1x16x16x4xbf16> to vector<16x16x4xbf16>
    %30 = vector.shape_cast %29 : vector<16x16x4xbf16> to vector<256x4xbf16>
    %c0_37 = arith.constant 0 : index
    %c28 = arith.constant 28 : index
    %31 = vector.load %arg6[%c0_37, %c28] : memref<256x36xbf16, #tpu.memory_space<vmem>>, vector<256x4xbf16>
    tpu.vector_store %arg6[%c0_37, %c28], %30 {strides = array<i32>} : memref<256x36xbf16, #tpu.memory_space<vmem>>, vector<256x4xbf16>,
    %c0_38 = arith.constant 0 : index
    %c2_39 = arith.constant 2 : index
    %c2_40 = arith.constant 2 : index
    %c0_41 = arith.constant 0 : index
    %32 = vector.load %arg1[%c0_38, %c2_39, %c2_40, %c0_41] : memref<1x18x18x4xbf16, #tpu.memory_space<vmem>>, vector<1x16x16x4xbf16>
    %33 = vector.shape_cast %32 : vector<1x16x16x4xbf16> to vector<16x16x4xbf16>
    %34 = vector.shape_cast %33 : vector<16x16x4xbf16> to vector<256x4xbf16>
    %c0_42 = arith.constant 0 : index
    %c32 = arith.constant 32 : index
    %35 = vector.load %arg6[%c0_42, %c32] : memref<256x36xbf16, #tpu.memory_space<vmem>>, vector<256x4xbf16>
    tpu.vector_store %arg6[%c0_42, %c32], %34 {strides = array<i32>} : memref<256x36xbf16, #tpu.memory_space<vmem>>, vector<256x4xbf16>,
    %c0_43 = arith.constant 0 : index
    %c0_44 = arith.constant 0 : index
    %36 = vector.load %arg6[%c0_43, %c0_44] : memref<256x36xbf16, #tpu.memory_space<vmem>>, vector<256x36xbf16>
    %c0_45 = arith.constant 0 : index
    %c0_46 = arith.constant 0 : index
    %37 = vector.load %arg2[%c0_45, %c0_46] : memref<36x128xbf16, #tpu.memory_space<vmem>>, vector<36x128xbf16>
    %cst = arith.constant dense<0.000000e+00> : vector<256x128xf32>
    %38 = tpu.matmul %36, %37, %cst {dimension_numbers = #tpu.dot_dimension_numbers<[1], [0], [0], [1], [0, 0, 1, 1], [], []>} : vector<256x36xbf16>, vector<36x128xbf16>, vector<256x128xf32> -> vector<256x128xf32>
    %cst_47 = arith.constant dense<0.000000e+00> : vector<128xf32>
    %39 = vector.multi_reduction <add>, %38, %cst_47 [0] : vector<256x128xf32> to vector<128xf32>
    %40 = vector.shape_cast %39 : vector<128xf32> to vector<1x128xf32>
    %c0_48 = arith.constant 0 : index
    %c0_49 = arith.constant 0 : index
    %c0_50 = arith.constant 0 : index
    %41 = vector.load %arg4[%c0_48, %c0_49, %c0_50] : memref<1x1x128xf32, #tpu.memory_space<vmem>>, vector<1x1x128xf32>
    %42 = vector.shape_cast %41 : vector<1x1x128xf32> to vector<1x128xf32>
    %43 = vector.shape_cast %40 : vector<1x128xf32> to vector<1x1x128xf32>
    tpu.vector_store %arg4[%c0_48, %c0_49, %c0_50], %43 {strides = array<i32>} : memref<1x1x128xf32, #tpu.memory_space<vmem>>, vector<1x1x128xf32>,
    %44 = arith.mulf %38, %38 : vector<256x128xf32>
    %cst_51 = arith.constant dense<0.000000e+00> : vector<128xf32>
    %45 = vector.multi_reduction <add>, %44, %cst_51 [0] : vector<256x128xf32> to vector<128xf32>
    %46 = vector.shape_cast %45 : vector<128xf32> to vector<1x128xf32>
    %c0_52 = arith.constant 0 : index
    %c0_53 = arith.constant 0 : index
    %c0_54 = arith.constant 0 : index
    %47 = vector.load %arg5[%c0_52, %c0_53, %c0_54] : memref<1x1x128xf32, #tpu.memory_space<vmem>>, vector<1x1x128xf32>
    %48 = vector.shape_cast %47 : vector<1x1x128xf32> to vector<1x128xf32>
    %49 = vector.shape_cast %46 : vector<1x128xf32> to vector<1x1x128xf32>
    tpu.vector_store %arg5[%c0_52, %c0_53, %c0_54], %49 {strides = array<i32>} : memref<1x1x128xf32, #tpu.memory_space<vmem>>, vector<1x1x128xf32>,
    %50 = vector.extract_strided_slice %38 {offsets = [0, 0], sizes = [256, 8], strides = [1, 1]} : vector<256x128xf32> to vector<256x8xf32>
    %51 = tpu.transpose %50, [1, 0] : vector<256x8xf32> -> vector<8x256xf32>
    %52 = arith.truncf %51 : vector<8x256xf32> to vector<8x256xbf16>
    %c0_55 = arith.constant 0 : index
    %c0_56 = arith.constant 0 : index
    %c0_57 = arith.constant 0 : index
    %53 = vector.load %arg3[%c0_55, %c0_56, %c0_57] : memref<1x8x256xbf16, #tpu.memory_space<vmem>>, vector<1x8x256xbf16>
    %54 = vector.shape_cast %53 : vector<1x8x256xbf16> to vector<8x256xbf16>
    %55 = vector.shape_cast %52 : vector<8x256xbf16> to vector<1x8x256xbf16>
    tpu.vector_store %arg3[%c0_55, %c0_56, %c0_57], %55 {strides = array<i32>} : memref<1x8x256xbf16, #tpu.memory_space<vmem>>, vector<1x8x256xbf16>,
    return
  }
  func.func @transform_0(%arg0: i32) -> (i32, i32, i32, i32) {
    %c0_i32 = arith.constant 0 : i32
    %c0_i32_0 = arith.constant 0 : i32
    %c0_i32_1 = arith.constant 0 : i32
    %c0_i32_2 = arith.constant 0 : i32
    return %arg0, %c0_i32, %c0_i32_0, %c0_i32_1 : i32, i32, i32, i32
  }
  func.func @transform_1(%arg0: i32) -> (i32, i32) {
    %c0_i32 = arith.constant 0 : i32
    %c0_i32_0 = arith.constant 0 : i32
    %c0_i32_1 = arith.constant 0 : i32
    return %c0_i32, %c0_i32_0 : i32, i32
  }
  func.func @transform_2(%arg0: i32) -> (i32, i32, i32) {
    %c0_i32 = arith.constant 0 : i32
    %c0_i32_0 = arith.constant 0 : i32
    %c0_i32_1 = arith.constant 0 : i32
    return %arg0, %c0_i32, %c0_i32_0 : i32, i32, i32
  }
  func.func @transform_3(%arg0: i32) -> (i32, i32, i32) {
    %c0_i32 = arith.constant 0 : i32
    %c0_i32_0 = arith.constant 0 : i32
    %c0_i32_1 = arith.constant 0 : i32
    return %arg0, %c0_i32, %c0_i32_0 : i32, i32, i32
  }
  func.func @transform_4(%arg0: i32) -> (i32, i32, i32) {
    %c0_i32 = arith.constant 0 : i32
    %c0_i32_0 = arith.constant 0 : i32
    %c0_i32_1 = arith.constant 0 : i32
    return %arg0, %c0_i32, %c0_i32_0 : i32, i32, i32
  }
}

module attributes {stable_mosaic.version = 11 : i64} {
  func.func @_bn_relu_kernel(%arg0: i32, %arg1: i32, %arg2: memref<1x8x128xbf16, #tpu.memory_space<vmem>>, %arg3: memref<8x1xf32, #tpu.memory_space<vmem>>, %arg4: memref<8x1xf32, #tpu.memory_space<vmem>>, %arg5: memref<1x8x128xf32, #tpu.memory_space<vmem>>) attributes {dimension_semantics = [#tpu.dimension_semantics<parallel>, #tpu.dimension_semantics<parallel>], iteration_bounds = array<i64: 2, 2>, scalar_prefetch = 0 : i64, scratch_operands = 0 : i64, tpu.core_type = #tpu.core_type<tc>, window_params = [{transform_indices = @transform_0, window_bounds = array<i64: 1, 8, 128>}, {pipeline_mode = #tpu.pipeline_mode<synchronous>, transform_indices = @transform_1, window_bounds = array<i64: 8, 1>}, {pipeline_mode = #tpu.pipeline_mode<synchronous>, transform_indices = @transform_2, window_bounds = array<i64: 8, 1>}, {transform_indices = @transform_3, window_bounds = array<i64: 1, 8, 128>}]} {
    %c0 = arith.constant 0 : index
    %c0_0 = arith.constant 0 : index
    %c0_1 = arith.constant 0 : index
    %0 = vector.load %arg2[%c0, %c0_0, %c0_1] : memref<1x8x128xbf16, #tpu.memory_space<vmem>>, vector<1x8x128xbf16>
    %1 = vector.shape_cast %0 : vector<1x8x128xbf16> to vector<8x128xbf16>
    %2 = arith.extf %1 : vector<8x128xbf16> to vector<8x128xf32>
    %c0_2 = arith.constant 0 : index
    %c0_3 = arith.constant 0 : index
    %3 = vector.load %arg3[%c0_2, %c0_3] : memref<8x1xf32, #tpu.memory_space<vmem>>, vector<8x1xf32>
    %4 = vector.broadcast %3 : vector<8x1xf32> to vector<8x128xf32>
    %5 = arith.mulf %2, %4 : vector<8x128xf32>
    %c0_4 = arith.constant 0 : index
    %c0_5 = arith.constant 0 : index
    %6 = vector.load %arg4[%c0_4, %c0_5] : memref<8x1xf32, #tpu.memory_space<vmem>>, vector<8x1xf32>
    %7 = vector.broadcast %6 : vector<8x1xf32> to vector<8x128xf32>
    %8 = arith.addf %5, %7 : vector<8x128xf32>
    %cst = arith.constant 0.000000e+00 : f32
    %9 = vector.broadcast %cst : f32 to vector<8x128xf32>
    %10 = arith.maximumf %8, %9 : vector<8x128xf32>
    %c0_6 = arith.constant 0 : index
    %c0_7 = arith.constant 0 : index
    %c0_8 = arith.constant 0 : index
    %11 = vector.load %arg5[%c0_6, %c0_7, %c0_8] : memref<1x8x128xf32, #tpu.memory_space<vmem>>, vector<1x8x128xf32>
    %12 = vector.shape_cast %11 : vector<1x8x128xf32> to vector<8x128xf32>
    %13 = vector.shape_cast %10 : vector<8x128xf32> to vector<1x8x128xf32>
    tpu.vector_store %arg5[%c0_6, %c0_7, %c0_8], %13 {strides = array<i32>} : memref<1x8x128xf32, #tpu.memory_space<vmem>>, vector<1x8x128xf32>,
    return
  }
  func.func @transform_0(%arg0: i32, %arg1: i32) -> (i32, i32, i32) {
    %c0_i32 = arith.constant 0 : i32
    %c0_i32_0 = arith.constant 0 : i32
    return %arg0, %c0_i32, %arg1 : i32, i32, i32
  }
  func.func @transform_1(%arg0: i32, %arg1: i32) -> (i32, i32) {
    %c0_i32 = arith.constant 0 : i32
    %c0_i32_0 = arith.constant 0 : i32
    %c0_i32_1 = arith.constant 0 : i32
    return %c0_i32, %c0_i32_0 : i32, i32
  }
  func.func @transform_2(%arg0: i32, %arg1: i32) -> (i32, i32) {
    %c0_i32 = arith.constant 0 : i32
    %c0_i32_0 = arith.constant 0 : i32
    %c0_i32_1 = arith.constant 0 : i32
    return %c0_i32, %c0_i32_0 : i32, i32
  }
  func.func @transform_3(%arg0: i32, %arg1: i32) -> (i32, i32, i32) {
    %c0_i32 = arith.constant 0 : i32
    %c0_i32_0 = arith.constant 0 : i32
    return %arg0, %c0_i32, %arg1 : i32, i32, i32
  }
}

</mosaic_0001>

<llo_original>
// kernel: conv2d_block_forward.3
$region0: #{conv2d_block_forward.3}
  #allocation0 [shape = 'u32[]', space=smem, size = 0x4, offset = 0x4, fixed_abs, tag = 'smem constant byte address 0x4 - core index']
  #allocation1 [shape = 'u32[144,128]{1,0:T(1,128)}', space=vmem, size = 0x12000, scoped, tag = 'internal scratch']
  %s0 = inlined_call_operand.vmem [shape: bf16[2,8,256], index: 0, kind: input, shape index: {}]
  %s1 = inlined_call_operand.vmem [shape: f32[8,1], index: 1, kind: input, shape index: {}]
  %s2 = inlined_call_operand.vmem [shape: f32[8,1], index: 2, kind: input, shape index: {}]
  %s3 = inlined_call_operand.vmem [shape: f32[2,8,256], index: 3, kind: output, shape index: {}]
  %s4 = sld [smem:[#allocation0]]
  $region45: #{conv2d_block_forward.3} parent=0
    _
  %s6 = ssub.s32 1, %s4
  %s7 = scalar_select 0, %s6, %s4
  loop: start=0, step=1, limit=6
  $region2: #{conv2d_block_forward.3} parent=0 // loop_pre_header
    _
  $region3: #{conv2d_block_forward.3} parent=0 // loop_header
    %s9 = sphi 0, %s13
    %p10 = scmp.ge.s32.totalorder %s9, 6
    %s16 = sphi 0, %s28
    %s17 = sphi 0, %s24
    %s18 = sphi 0, %s16
    %s19 = sphi 0, %s17
    %s20 = sphi 0, %s18
    %s21 = sphi 0, %s19
    %s33 = sphi 0, %s35
    %s36 = sphi 0, %s33
    %s37 = sphi 0, %s36
    %s53 = sphi 0, %s37
    %s57 = sphi 0, %s57
    %s59 = sphi 0, %s57
    %s60 = sphi 0, %s59
    %s74 = sphi 0, %s60
    %s78 = sphi 0, %s78
    %s80 = sphi 0, %s78
    %s81 = sphi 0, %s80
    %s95 = sphi 0, %s81
    %s103 = sphi 0, %s105
    %s106 = sphi 0, %s103
    %s107 = sphi 0, %s106
    %s123 = sphi 0, %s107
  $region4: #{conv2d_block_forward.3} parent=0 // loop_header_branch
    %12 = sbr.rel (%p10) target = $region8
  $region5: #{conv2d_block_forward.3} parent=0 // loop_body
    %s14 = ssub.s32 %s9, 1
    %s15 = ssub.s32 %s9, 2
    %s22 = sadd.s32 1, %s17
    %p23 = scmp.ge.s32.totalorder %s22, 2
    %s24 = scalar_select %p23, 0, %s22
    %s25 = sadd.s32 1, %s16
    %s26 = scalar_select %p23, %s25, %s16
    %p27 = scmp.ge.s32.totalorder %s26, 2
    %s28 = scalar_select %p27, 0, %s26
    %s29 = ssub.s32 %s16, %s28
    %s30 = ssub.s32 %s17, %s24
    %s31 = sor.u32 %s29, %s30
    %p32 = scmp.eq.s32.totalorder %s31, 0
    %s34 = sadd.s32 %s33, 1
    %s35 = scalar_select %p32, %s33, %s34
    %p38 = pneg %p32
    %p39 = scmp.eq.s32.totalorder %s9, 3
    %p40 = por %p38, %p39
    %p41 = scmp.ne.s32.totalorder %s33, %s36
    %p42 = scmp.eq.s32.totalorder %s9, 0
    %p43 = por %p41, %p42
    %p44 = scmp.ne.s32.totalorder %s33, %s36
    %p45 = scmp.eq.s32.totalorder %s14, 3
    %p46 = por %p44, %p45
    %p47 = scmp.ne.s32.totalorder %s36, %s37
    %p48 = scmp.eq.s32.totalorder %s14, 0
    %p49 = por %p47, %p48
    %p50 = scmp.ne.s32.totalorder %s36, %s37
    %p51 = scmp.eq.s32.totalorder %s15, 3
    %p52 = por %p50, %p51
    %p54 = scmp.ne.s32.totalorder %s37, %s53
    %p55 = scmp.eq.s32.totalorder %s15, 0
    %p56 = por %p54, %p55
    %s58 = sadd.s32 %s57, 1
    %p61 = scmp.eq.s32.totalorder %s9, 3
    %p62 = scmp.ne.s32.totalorder %s57, %s59
    %p63 = scmp.eq.s32.totalorder %s9, 0
    %p64 = por %p62, %p63
    %p65 = scmp.ne.s32.totalorder %s57, %s59
    %p66 = scmp.eq.s32.totalorder %s14, 3
    %p67 = por %p65, %p66
    %p68 = scmp.ne.s32.totalorder %s59, %s60
    %p69 = scmp.eq.s32.totalorder %s14, 0
    %p70 = por %p68, %p69
    %p71 = scmp.ne.s32.totalorder %s59, %s60
    %p72 = scmp.eq.s32.totalorder %s15, 3
    %p73 = por %p71, %p72
    %p75 = scmp.ne.s32.totalorder %s60, %s74
    %p76 = scmp.eq.s32.totalorder %s15, 0
    %p77 = por %p75, %p76
    %s79 = sadd.s32 %s78, 1
    %p82 = scmp.eq.s32.totalorder %s9, 3
    %p83 = scmp.ne.s32.totalorder %s78, %s80
    %p84 = scmp.eq.s32.totalorder %s9, 0
    %p85 = por %p83, %p84
    %p86 = scmp.ne.s32.totalorder %s78, %s80
    %p87 = scmp.eq.s32.totalorder %s14, 3
    %p88 = por %p86, %p87
    %p89 = scmp.ne.s32.totalorder %s80, %s81
    %p90 = scmp.eq.s32.totalorder %s14, 0
    %p91 = por %p89, %p90
    %p92 = scmp.ne.s32.totalorder %s80, %s81
    %p93 = scmp.eq.s32.totalorder %s15, 3
    %p94 = por %p92, %p93
    %p96 = scmp.ne.s32.totalorder %s81, %s95
    %p97 = scmp.eq.s32.totalorder %s15, 0
    %p98 = por %p96, %p97
    %s99 = ssub.s32 %s16, %s28
    %s100 = ssub.s32 %s17, %s24
    %s101 = sor.u32 %s99, %s100
    %p102 = scmp.eq.s32.totalorder %s101, 0
    %s104 = sadd.s32 %s103, 1
    %s105 = scalar_select %p102, %s103, %s104
    %p108 = pneg %p102
    %p109 = scmp.eq.s32.totalorder %s9, 3
    %p110 = por %p108, %p109
    %p111 = scmp.ne.s32.totalorder %s103, %s106
    %p112 = scmp.eq.s32.totalorder %s9, 0
    %p113 = por %p111, %p112
    %p114 = scmp.ne.s32.totalorder %s103, %s106
    %p115 = scmp.eq.s32.totalorder %s14, 3
    %p116 = por %p114, %p115
    %p117 = scmp.ne.s32.totalorder %s106, %s107
    %p118 = scmp.eq.s32.totalorder %s14, 0
    %p119 = por %p117, %p118
    %p120 = scmp.ne.s32.totalorder %s106, %s107
    %p121 = scmp.eq.s32.totalorder %s15, 3
    %p122 = por %p120, %p121
    %p124 = scmp.ne.s32.totalorder %s107, %s123
    %p125 = scmp.eq.s32.totalorder %s15, 0
    %p126 = por %p124, %p125
    %p127 = scmp.le.s32.totalorder 1, %s9
    %p128 = scmp.lt.s32.totalorder %s9, 5
    %p129 = pnand %p127, %p128
    %p130 = pneg %p129
    // Predicated region
    $region9: #{conv2d_block_forward.3} parent=5 // pred_check
      _
    $region10: #{conv2d_block_forward.3} parent=5 // pred_check_branch
      %132 = sbr.rel (%p129) target = $region12
    $region11: #{conv2d_block_forward.3} parent=5 // pred_region
      %s133 = ssub.s32 %s9, 1
      // Predicated region
      $region13: #{conv2d_block_forward.3} parent=11 // pred_check
        %p134 = pneg %p70
      $region14: #{conv2d_block_forward.3} parent=11 // pred_check_branch
        %136 = sbr.rel (%p134) target = $region16
      $region15: #{conv2d_block_forward.3} parent=11 // pred_region
        _
      $region16: #{conv2d_block_forward.3} parent=11 // pred_fallthru
        _
      // Predicated region
      $region17: #{conv2d_block_forward.3} parent=11 // pred_check
        %p137 = pneg %p91
      $region18: #{conv2d_block_forward.3} parent=11 // pred_check_branch
        %139 = sbr.rel (%p137) target = $region20
      $region19: #{conv2d_block_forward.3} parent=11 // pred_region
        _
      $region20: #{conv2d_block_forward.3} parent=11 // pred_fallthru
        _
    $region12: #{conv2d_block_forward.3} parent=5 // pred_fallthru
      _
    %p140 = scmp.lt.s32.totalorder %s9, 4
    // Predicated region
    $region21: #{conv2d_block_forward.3} parent=5 // pred_check
      %p141 = pneg %p140
    $region22: #{conv2d_block_forward.3} parent=5 // pred_check_branch
      %143 = sbr.rel (%p141) target = $region24
    $region23: #{conv2d_block_forward.3} parent=5 // pred_region
      // Predicated region
      $region25: #{conv2d_block_forward.3} parent=23 // pred_check
        %p144 = pneg %p43
      $region26: #{conv2d_block_forward.3} parent=23 // pred_check_branch
        %146 = sbr.rel (%p144) target = $region28
      $region27: #{conv2d_block_forward.3} parent=23 // pred_region
        %p147 = scmp.lt.s32.totalorder %s16, 1
        %s148 = scalar_select %p147, %s16, 1
        %p149 = scmp.lt.s32.totalorder %s17, 1
        %s150 = scalar_select %p149, %s17, 1
        %s151 = smul.addr %s148, 2
        %s152 = sadd.s32 %s150, %s151
        %s153 = smul.addr %s152, 4
        %s154 = scalar_lea.vmem %s0, %s153
      $region28: #{conv2d_block_forward.3} parent=23 // pred_fallthru
        _
    $region24: #{conv2d_block_forward.3} parent=5 // pred_fallthru
      _
    %p155 = scmp.le.s32.totalorder 1, %s9
    %p156 = scmp.lt.s32.totalorder %s9, 5
    %p157 = pnand %p155, %p156
    %p158 = pneg %p157
    // Predicated region
    $region29: #{conv2d_block_forward.3} parent=5 // pred_check
      _
    $region30: #{conv2d_block_forward.3} parent=5 // pred_check_branch
      %160 = sbr.rel (%p157) target = $region32
    $region31: #{conv2d_block_forward.3} parent=5 // pred_region
      %s161 = ssub.s32 %s9, 1
      %p162 = scmp.lt.s32.totalorder %s18, 1
      %s163 = scalar_select %p162, %s18, 1
      %p164 = scmp.lt.s32.totalorder %s19, 1
      %s165 = scalar_select %p164, %s19, 1
      %s166 = smul.addr %s163, 2
      %s167 = sadd.s32 %s165, %s166
      %s168 = smul.addr %s167, 4
      %s169 = scalar_lea.vmem %s0, %s168
      %p170 = pneg %p49
      %p171 = pneg %p46
      %p172 = pneg %p70
      %p173 = pneg %p67
      %p174 = pneg %p91
      %p175 = pneg %p88
      %p176 = pneg %p119
      %p177 = pneg %p116
      %p178 = scmp.lt.s32.totalorder %s18, 1
      %s179 = scalar_select %p178, %s18, 1
      %p180 = scmp.lt.s32.totalorder %s19, 1
      %s181 = scalar_select %p180, %s19, 1
      %s182 = smul.addr %s179, 2
      %s183 = sadd.s32 %s181, %s182
      %s184 = smul.addr %s183, 8
      %s185 = scalar_lea.vmem %s3, %s184
      %p186 = scmp.lt.s32.totalorder %s18, 1
      %s187 = scalar_select %p186, %s18, 1
      %p188 = scmp.lt.s32.totalorder %s19, 1
      %s189 = scalar_select %p188, %s19, 1
      %s190 = smul.addr %s187, 2
      %s191 = sadd.s32 %s189, %s190
      %s192 = smul.addr %s191, 4
      %s193 = scalar_lea.vmem %s0, %s192
      %p194 = scmp.lt.s32.totalorder %s18, 1
      %s195 = scalar_select %p194, %s18, 1
      %p196 = scmp.lt.s32.totalorder %s19, 1
      %s197 = scalar_select %p196, %s19, 1
      %s198 = smul.addr %s195, 2
      %s199 = sadd.s32 %s197, %s198
      %s200 = smul.addr %s199, 8
      %s201 = scalar_lea.vmem %s3, %s200
      %v202 = vld [vmem:[%s193] sm:$0xf]
      %v203 = vunpack.c.l.bf16 %v202
      %v204 = vld [vmem:[%s1] sm:$0xff]
      %206 = vset.pattern.permute.xlu0 0
      %207 = vperm.xlu0 %206, %v204
      %v208 = vpop.permute.xlu0 %207
      %v210 = vmul.f32 %v203, %v208
      %v211 = vld [vmem:[%s2] sm:$0xff]
      %213 = vset.pattern.permute.xlu0 0
      %214 = vperm.xlu0 %213, %v211
      %v215 = vpop.permute.xlu0 %214
      %v217 = vadd.f32 %v210, %v215
      %v218 = vmax.f32 %v217, 0.0
      %219 = vst [vmem:[%s201] sm:$0xff] %v218
      %p220 = scmp.lt.s32.totalorder %s18, 1
      %s221 = scalar_select %p220, %s18, 1
      %p222 = scmp.lt.s32.totalorder %s19, 1
      %s223 = scalar_select %p222, %s19, 1
      %s224 = smul.addr %s221, 2
      %s225 = sadd.s32 %s223, %s224
      %s226 = smul.addr %s225, 8
      %s227 = scalar_lea.vmem %s3, %s226
      // Predicated region
      $region33: #{conv2d_block_forward.3} parent=31 // pred_check
        %p228 = pneg %p116
      $region34: #{conv2d_block_forward.3} parent=31 // pred_check_branch
        %230 = sbr.rel (%p228) target = $region36
      $region35: #{conv2d_block_forward.3} parent=31 // pred_region
        _
      $region36: #{conv2d_block_forward.3} parent=31 // pred_fallthru
        _
    $region32: #{conv2d_block_forward.3} parent=5 // pred_fallthru
      _
    %p231 = scmp.le.s32.totalorder 2, %s9
    // Predicated region
    $region37: #{conv2d_block_forward.3} parent=5 // pred_check
      %p232 = pneg %p231
    $region38: #{conv2d_block_forward.3} parent=5 // pred_check_branch
      %234 = sbr.rel (%p232) target = $region40
    $region39: #{conv2d_block_forward.3} parent=5 // pred_region
      %s235 = ssub.s32 %s9, 2
      // Predicated region
      $region41: #{conv2d_block_forward.3} parent=39 // pred_check
        %p236 = pneg %p122
      $region42: #{conv2d_block_forward.3} parent=39 // pred_check_branch
        %238 = sbr.rel (%p236) target = $region44
      $region43: #{conv2d_block_forward.3} parent=39 // pred_region
        %p239 = scmp.lt.s32.totalorder %s20, 1
        %s240 = scalar_select %p239, %s20, 1
        %p241 = scmp.lt.s32.totalorder %s21, 1
        %s242 = scalar_select %p241, %s21, 1
        %s243 = smul.addr %s240, 2
        %s244 = sadd.s32 %s242, %s243
        %s245 = smul.addr %s244, 8
        %s246 = scalar_lea.vmem %s3, %s245
      $region44: #{conv2d_block_forward.3} parent=39 // pred_fallthru
        _
    $region40: #{conv2d_block_forward.3} parent=5 // pred_fallthru
      _
  $region6: #{conv2d_block_forward.3} parent=0 // loop_footer
    %s13 = sadd.s32 1, %s9
  $region7: #{conv2d_block_forward.3} parent=0 // loop_footer_branch
    %8 = sbr.rel target = $region3
  $region8: #{conv2d_block_forward.3} parent=0 // loop_exit
    _

// kernel: conv2d_block_forward.2
$region0: #{conv2d_block_forward.2}
  #allocation0 [shape = 'u32[]', space=smem, size = 0x4, offset = 0x4, fixed_abs, tag = 'smem constant byte address 0x4 - core index']
  #allocation1 [shape = 'u32[144,128]{1,0:T(1,128)}', space=vmem, size = 0x12000, scoped, tag = 'internal scratch']
  #allocation2 [shape = 'bf16[256,36]{1,0:T(16,128)(2,1)}', space=vmem, size = 0x10000, scoped, tag = 'scratch operand']
  %s0 = inlined_call_operand.vmem [shape: bf16[2,18,18,4], index: 0, kind: input, shape index: {}]
  %s1 = inlined_call_operand.vmem [shape: bf16[36,128], index: 1, kind: input, shape index: {}]
  %s2 = inlined_call_operand.vmem [shape: bf16[2,8,256], index: 2, kind: output, shape index: {0}]
  %s3 = inlined_call_operand.vmem [shape: f32[2,1,128], index: 3, kind: output, shape index: {1}]
  %s4 = inlined_call_operand.vmem [shape: f32[2,1,128], index: 4, kind: output, shape index: {2}]
  %5 = xla_tuple %s2, %s3, %s4
  %s6 = sld [smem:[#allocation0]]
  $region57: #{conv2d_block_forward.2} parent=0
    _
  %s8 = ssub.s32 1, %s6
  %s9 = scalar_select 0, %s8, %s6
  loop: start=0, step=1, limit=4
  $region2: #{conv2d_block_forward.2} parent=0 // loop_pre_header
    _
  $region3: #{conv2d_block_forward.2} parent=0 // loop_header
    %s11 = sphi 0, %s15
    %p12 = scmp.ge.s32.totalorder %s11, 4
    %s21 = sphi 0, %s23
    %s24 = sphi 0, %s21
    %s25 = sphi 0, %s24
    %s41 = sphi 0, %s25
    %s45 = sphi 0, %s45
    %s47 = sphi 0, %s45
    %s48 = sphi 0, %s47
    %s62 = sphi 0, %s48
    %s68 = sphi 0, %s70
    %s71 = sphi 0, %s68
    %s72 = sphi 0, %s71
    %s88 = sphi 0, %s72
    %s94 = sphi 0, %s96
    %s97 = sphi 0, %s94
    %s98 = sphi 0, %s97
    %s114 = sphi 0, %s98
    %s120 = sphi 0, %s122
    %s123 = sphi 0, %s120
    %s124 = sphi 0, %s123
    %s140 = sphi 0, %s124
  $region4: #{conv2d_block_forward.2} parent=0 // loop_header_branch
    %14 = sbr.rel (%p12) target = $region8
  $region5: #{conv2d_block_forward.2} parent=0 // loop_body
    %s16 = ssub.s32 %s11, 1
    %s17 = ssub.s32 %s11, 2
    %s18 = sadd.s32 %s11, 1
    %s19 = ssub.s32 %s11, %s18
    %p20 = scmp.eq.s32.totalorder %s19, 0
    %s22 = sadd.s32 %s21, 1
    %s23 = scalar_select %p20, %s21, %s22
    %p26 = pneg %p20
    %p27 = scmp.eq.s32.totalorder %s11, 1
    %p28 = por %p26, %p27
    %p29 = scmp.ne.s32.totalorder %s21, %s24
    %p30 = scmp.eq.s32.totalorder %s11, 0
    %p31 = por %p29, %p30
    %p32 = scmp.ne.s32.totalorder %s21, %s24
    %p33 = scmp.eq.s32.totalorder %s16, 1
    %p34 = por %p32, %p33
    %p35 = scmp.ne.s32.totalorder %s24, %s25
    %p36 = scmp.eq.s32.totalorder %s16, 0
    %p37 = por %p35, %p36
    %p38 = scmp.ne.s32.totalorder %s24, %s25
    %p39 = scmp.eq.s32.totalorder %s17, 1
    %p40 = por %p38, %p39
    %p42 = scmp.ne.s32.totalorder %s25, %s41
    %p43 = scmp.eq.s32.totalorder %s17, 0
    %p44 = por %p42, %p43
    %s46 = sadd.s32 %s45, 1
    %p49 = scmp.eq.s32.totalorder %s11, 1
    %p50 = scmp.ne.s32.totalorder %s45, %s47
    %p51 = scmp.eq.s32.totalorder %s11, 0
    %p52 = por %p50, %p51
    %p53 = scmp.ne.s32.totalorder %s45, %s47
    %p54 = scmp.eq.s32.totalorder %s16, 1
    %p55 = por %p53, %p54
    %p56 = scmp.ne.s32.totalorder %s47, %s48
    %p57 = scmp.eq.s32.totalorder %s16, 0
    %p58 = por %p56, %p57
    %p59 = scmp.ne.s32.totalorder %s47, %s48
    %p60 = scmp.eq.s32.totalorder %s17, 1
    %p61 = por %p59, %p60
    %p63 = scmp.ne.s32.totalorder %s48, %s62
    %p64 = scmp.eq.s32.totalorder %s17, 0
    %p65 = por %p63, %p64
    %s66 = ssub.s32 %s11, %s18
    %p67 = scmp.eq.s32.totalorder %s66, 0
    %s69 = sadd.s32 %s68, 1
    %s70 = scalar_select %p67, %s68, %s69
    %p73 = pneg %p67
    %p74 = scmp.eq.s32.totalorder %s11, 1
    %p75 = por %p73, %p74
    %p76 = scmp.ne.s32.totalorder %s68, %s71
    %p77 = scmp.eq.s32.totalorder %s11, 0
    %p78 = por %p76, %p77
    %p79 = scmp.ne.s32.totalorder %s68, %s71
    %p80 = scmp.eq.s32.totalorder %s16, 1
    %p81 = por %p79, %p80
    %p82 = scmp.ne.s32.totalorder %s71, %s72
    %p83 = scmp.eq.s32.totalorder %s16, 0
    %p84 = por %p82, %p83
    %p85 = scmp.ne.s32.totalorder %s71, %s72
    %p86 = scmp.eq.s32.totalorder %s17, 1
    %p87 = por %p85, %p86
    %p89 = scmp.ne.s32.totalorder %s72, %s88
    %p90 = scmp.eq.s32.totalorder %s17, 0
    %p91 = por %p89, %p90
    %s92 = ssub.s32 %s11, %s18
    %p93 = scmp.eq.s32.totalorder %s92, 0
    %s95 = sadd.s32 %s94, 1
    %s96 = scalar_select %p93, %s94, %s95
    %p99 = pneg %p93
    %p100 = scmp.eq.s32.totalorder %s11, 1
    %p101 = por %p99, %p100
    %p102 = scmp.ne.s32.totalorder %s94, %s97
    %p103 = scmp.eq.s32.totalorder %s11, 0
    %p104 = por %p102, %p103
    %p105 = scmp.ne.s32.totalorder %s94, %s97
    %p106 = scmp.eq.s32.totalorder %s16, 1
    %p107 = por %p105, %p106
    %p108 = scmp.ne.s32.totalorder %s97, %s98
    %p109 = scmp.eq.s32.totalorder %s16, 0
    %p110 = por %p108, %p109
    %p111 = scmp.ne.s32.totalorder %s97, %s98
    %p112 = scmp.eq.s32.totalorder %s17, 1
    %p113 = por %p111, %p112
    %p115 = scmp.ne.s32.totalorder %s98, %s114
    %p116 = scmp.eq.s32.totalorder %s17, 0
    %p117 = por %p115, %p116
    %s118 = ssub.s32 %s11, %s18
    %p119 = scmp.eq.s32.totalorder %s118, 0
    %s121 = sadd.s32 %s120, 1
    %s122 = scalar_select %p119, %s120, %s121
    %p125 = pneg %p119
    %p126 = scmp.eq.s32.totalorder %s11, 1
    %p127 = por %p125, %p126
    %p128 = scmp.ne.s32.totalorder %s120, %s123
    %p129 = scmp.eq.s32.totalorder %s11, 0
    %p130 = por %p128, %p129
    %p131 = scmp.ne.s32.totalorder %s120, %s123
    %p132 = scmp.eq.s32.totalorder %s16, 1
    %p133 = por %p131, %p132
    %p134 = scmp.ne.s32.totalorder %s123, %s124
    %p135 = scmp.eq.s32.totalorder %s16, 0
    %p136 = por %p134, %p135
    %p137 = scmp.ne.s32.totalorder %s123, %s124
    %p138 = scmp.eq.s32.totalorder %s17, 1
    %p139 = por %p137, %p138
    %p141 = scmp.ne.s32.totalorder %s124, %s140
    %p142 = scmp.eq.s32.totalorder %s17, 0
    %p143 = por %p141, %p142
    %p144 = scmp.le.s32.totalorder 1, %s11
    %p145 = scmp.lt.s32.totalorder %s11, 3
    %p146 = pnand %p144, %p145
    %p147 = pneg %p146
    // Predicated region
    $region9: #{conv2d_block_forward.2} parent=5 // pred_check
      _
    $region10: #{conv2d_block_forward.2} parent=5 // pred_check_branch
      %149 = sbr.rel (%p146) target = $region12
    $region11: #{conv2d_block_forward.2} parent=5 // pred_region
      %s150 = ssub.s32 %s11, 1
      // Predicated region
      $region13: #{conv2d_block_forward.2} parent=11 // pred_check
        %p151 = pneg %p58
      $region14: #{conv2d_block_forward.2} parent=11 // pred_check_branch
        %153 = sbr.rel (%p151) target = $region16
      $region15: #{conv2d_block_forward.2} parent=11 // pred_region
        _
      $region16: #{conv2d_block_forward.2} parent=11 // pred_fallthru
        _
    $region12: #{conv2d_block_forward.2} parent=5 // pred_fallthru
      _
    %p154 = scmp.lt.s32.totalorder %s11, 2
    // Predicated region
    $region17: #{conv2d_block_forward.2} parent=5 // pred_check
      %p155 = pneg %p154
    $region18: #{conv2d_block_forward.2} parent=5 // pred_check_branch
      %157 = sbr.rel (%p155) target = $region20
    $region19: #{conv2d_block_forward.2} parent=5 // pred_region
      // Predicated region
      $region21: #{conv2d_block_forward.2} parent=19 // pred_check
        %p158 = pneg %p31
      $region22: #{conv2d_block_forward.2} parent=19 // pred_check_branch
        %160 = sbr.rel (%p158) target = $region24
      $region23: #{conv2d_block_forward.2} parent=19 // pred_region
        %p161 = scmp.lt.s32.totalorder %s11, 1
        %s162 = scalar_select %p161, %s11, 1
        %s163 = smul.addr %s162, 54
        %s164 = smul.addr %s163, 4
        %s165 = scalar_lea.vmem %s0, %s164
      $region24: #{conv2d_block_forward.2} parent=19 // pred_fallthru
        _
    $region20: #{conv2d_block_forward.2} parent=5 // pred_fallthru
      _
    %p166 = scmp.le.s32.totalorder 1, %s11
    %p167 = scmp.lt.s32.totalorder %s11, 3
    %p168 = pnand %p166, %p167
    %p169 = pneg %p168
    // Predicated region
    $region25: #{conv2d_block_forward.2} parent=5 // pred_check
      _
    $region26: #{conv2d_block_forward.2} parent=5 // pred_check_branch
      %171 = sbr.rel (%p168) target = $region28
    $region27: #{conv2d_block_forward.2} parent=5 // pred_region
      %s172 = ssub.s32 %s11, 1
      %p173 = scmp.lt.s32.totalorder %s16, 1
      %s174 = scalar_select %p173, %s16, 1
      %s175 = smul.addr %s174, 54
      %s176 = smul.addr %s175, 4
      %s177 = scalar_lea.vmem %s0, %s176
      %p178 = pneg %p37
      %p179 = pneg %p34
      %p180 = pneg %p58
      %p181 = pneg %p55
      %p182 = pneg %p84
      %p183 = pneg %p81
      %p184 = scmp.lt.s32.totalorder %s16, 1
      %s185 = scalar_select %p184, %s16, 1
      %s186 = smul.addr %s185, 2
      %s187 = smul.addr %s186, 4
      %s188 = scalar_lea.vmem %s2, %s187
      %p189 = pneg %p110
      %p190 = pneg %p107
      %p191 = scmp.lt.s32.totalorder %s16, 1
      %s192 = scalar_select %p191, %s16, 1
      %s193 = scalar_lea.vmem %s3, %s192
      %p194 = pneg %p136
      %p195 = pneg %p133
      %p196 = scmp.lt.s32.totalorder %s16, 1
      %s197 = scalar_select %p196, %s16, 1
      %s198 = scalar_lea.vmem %s4, %s197
      %p199 = scmp.lt.s32.totalorder %s16, 1
      %s200 = scalar_select %p199, %s16, 1
      %s201 = smul.addr %s200, 54
      %s202 = smul.addr %s201, 4
      %s203 = scalar_lea.vmem %s0, %s202
      %p204 = scmp.lt.s32.totalorder %s16, 1
      %s205 = scalar_select %p204, %s16, 1
      %s206 = smul.addr %s205, 2
      %s207 = smul.addr %s206, 4
      %s208 = scalar_lea.vmem %s2, %s207
      %p209 = scmp.lt.s32.totalorder %s16, 1
      %s210 = scalar_select %p209, %s16, 1
      %s211 = scalar_lea.vmem %s3, %s210
      %p212 = scmp.lt.s32.totalorder %s16, 1
      %s213 = scalar_select %p212, %s16, 1
      %s214 = scalar_lea.vmem %s4, %s213
      %v216 = vld [vmem:[%s203] sm:$0xf]
      %v217 = vld [vmem:[%s203 + $0x4] sm:$0xf]
      %v218 = vld [vmem:[%s203 + $0xc] sm:$0xf]
      %v219 = vld [vmem:[%s203 + $0x10] sm:$0xf]
      %v220 = vld [vmem:[%s203 + $0x18] sm:$0xf]
      %v221 = vld [vmem:[%s203 + $0x1c] sm:$0xf]
      %v222 = vld [vmem:[%s203 + $0x24] sm:$0xf]
      %v223 = vld [vmem:[%s203 + $0x28] sm:$0xf]
      %v224 = vld [vmem:[%s203 + $0x30] sm:$0xf]
      %v225 = vld [vmem:[%s203 + $0x34] sm:$0xf]
      %v226 = vld [vmem:[%s203 + $0x3c] sm:$0xf]
      %v227 = vld [vmem:[%s203 + $0x40] sm:$0xf]
      %v228 = vld [vmem:[%s203 + $0x48] sm:$0xf]
      %v229 = vld [vmem:[%s203 + $0x4c] sm:$0xf]
      %v230 = vld [vmem:[%s203 + $0x54] sm:$0xf]
      %v231 = vld [vmem:[%s203 + $0x58] sm:$0xf]
      %v232 = vld [vmem:[%s203 + $0x60] sm:$0xf]
      %v233 = vld [vmem:[%s203 + $0x64] sm:$0xf]
      %v234 = vld [vmem:[%s203 + $0x6c] sm:$0xf]
      %v235 = vld [vmem:[%s203 + $0x70] sm:$0xf]
      %v236 = vld [vmem:[%s203 + $0x78] sm:$0xf]
      %v237 = vld [vmem:[%s203 + $0x7c] sm:$0xf]
      %v238 = vld [vmem:[%s203 + $0x84] sm:$0xf]
      %v239 = vld [vmem:[%s203 + $0x88] sm:$0xf]
      %v240 = vld [vmem:[%s203 + $0x90] sm:$0xf]
      %v241 = vld [vmem:[%s203 + $0x94] sm:$0xf]
      %v242 = vld [vmem:[%s203 + $0x9c] sm:$0xf]
      %v243 = vld [vmem:[%s203 + $0xa0] sm:$0xf]
      %v244 = vld [vmem:[%s203 + $0xa8] sm:$0xf]
      %v245 = vld [vmem:[%s203 + $0xac] sm:$0xf]
      %v246 = vld [vmem:[%s203 + $0xb4] sm:$0xf]
      %v247 = vld [vmem:[%s203 + $0xb8] sm:$0xf]
      %v280 = vunpack.c.l.b16 %v216
      %v281 = vunpack.c.l.b16 %v217
      %v282 = vunpack.c.l.b16 %v218
      %v283 = vunpack.c.l.b16 %v219
      %v284 = vunpack.c.l.b16 %v220
      %v285 = vunpack.c.l.b16 %v221
      %v286 = vunpack.c.l.b16 %v222
      %v287 = vunpack.c.l.b16 %v223
      %v288 = vunpack.c.l.b16 %v224
      %v289 = vunpack.c.l.b16 %v225
      %v290 = vunpack.c.l.b16 %v226
      %v291 = vunpack.c.l.b16 %v227
      %v292 = vunpack.c.l.b16 %v228
      %v293 = vunpack.c.l.b16 %v229
      %v294 = vunpack.c.l.b16 %v230
      %v295 = vunpack.c.l.b16 %v231
      %v296 = vunpack.c.l.b16 %v232
      %v297 = vunpack.c.l.b16 %v233
      %v298 = vunpack.c.l.b16 %v234
      %v299 = vunpack.c.l.b16 %v235
      %v300 = vunpack.c.l.b16 %v236
      %v301 = vunpack.c.l.b16 %v237
      %v302 = vunpack.c.l.b16 %v238
      %v303 = vunpack.c.l.b16 %v239
      %v304 = vunpack.c.l.b16 %v240
      %v305 = vunpack.c.l.b16 %v241
      %v306 = vunpack.c.l.b16 %v242
      %v307 = vunpack.c.l.b16 %v243
      %v308 = vunpack.c.l.b16 %v244
      %v309 = vunpack.c.l.b16 %v245
      %v310 = vunpack.c.l.b16 %v246
      %v311 = vunpack.c.l.b16 %v247
      %v312 = vpack.c.b16 %v281, %v280
      %v313 = vpack.c.b16 %v283, %v282
      %v314 = vpack.c.b16 %v285, %v284
      %v315 = vpack.c.b16 %v287, %v286
      %v316 = vpack.c.b16 %v289, %v288
      %v317 = vpack.c.b16 %v291, %v290
      %v318 = vpack.c.b16 %v293, %v292
      %v319 = vpack.c.b16 %v295, %v294
      %v320 = vpack.c.b16 %v297, %v296
      %v321 = vpack.c.b16 %v299, %v298
      %v322 = vpack.c.b16 %v301, %v300
      %v323 = vpack.c.b16 %v303, %v302
      %v324 = vpack.c.b16 %v305, %v304
      %v325 = vpack.c.b16 %v307, %v306
      %v326 = vpack.c.b16 %v309, %v308
      %v327 = vpack.c.b16 %v311, %v310
      %vm344 = vcmask 31744
      %345 = vst.msk [vmem:[#allocation2] sm:$0xff] %vm344, %v312
      %346 = vst.msk [vmem:[#allocation2 + $0x8] sm:$0xff] %vm344, %v313
      %347 = vst.msk [vmem:[#allocation2 + $0x10] sm:$0xff] %vm344, %v314
      %348 = vst.msk [vmem:[#allocation2 + $0x18] sm:$0xff] %vm344, %v315
      %349 = vst.msk [vmem:[#allocation2 + $0x20] sm:$0xff] %vm344, %v316
      %350 = vst.msk [vmem:[#allocation2 + $0x28] sm:$0xff] %vm344, %v317
      %351 = vst.msk [vmem:[#allocation2 + $0x30] sm:$0xff] %vm344, %v318
      %352 = vst.msk [vmem:[#allocation2 + $0x38] sm:$0xff] %vm344, %v319
      %353 = vst.msk [vmem:[#allocation2 + $0x40] sm:$0xff] %vm344, %v320
      %354 = vst.msk [vmem:[#allocation2 + $0x48] sm:$0xff] %vm344, %v321
      %355 = vst.msk [vmem:[#allocation2 + $0x50] sm:$0xff] %vm344, %v322
      %356 = vst.msk [vmem:[#allocation2 + $0x58] sm:$0xff] %vm344, %v323
      %357 = vst.msk [vmem:[#allocation2 + $0x60] sm:$0xff] %vm344, %v324
      %358 = vst.msk [vmem:[#allocation2 + $0x68] sm:$0xff] %vm344, %v325
      %359 = vst.msk [vmem:[#allocation2 + $0x70] sm:$0xff] %vm344, %v326
      %360 = vst.msk [vmem:[#allocation2 + $0x78] sm:$0xff] %vm344, %v327
      %v361 = vld [vmem:[%s203] sm:$0xf]
      %v362 = vld [vmem:[%s203 + $0x4] sm:$0xf]
      %v363 = vld [vmem:[%s203 + $0x8] sm:$0x1]
      %v364 = vld [vmem:[%s203 + $0xc] sm:$0xf]
      %v365 = vld [vmem:[%s203 + $0x10] sm:$0xf]
      %v366 = vld [vmem:[%s203 + $0x14] sm:$0x1]
      %v367 = vld [vmem:[%s203 + $0x18] sm:$0xf]
      %v368 = vld [vmem:[%s203 + $0x1c] sm:$0xf]
      %v369 = vld [vmem:[%s203 + $0x20] sm:$0x1]
      %v370 = vld [vmem:[%s203 + $0x24] sm:$0xf]
      %v371 = vld [vmem:[%s203 + $0x28] sm:$0xf]
      %v372 = vld [vmem:[%s203 + $0x2c] sm:$0x1]
      %v373 = vld [vmem:[%s203 + $0x30] sm:$0xf]
      %v374 = vld [vmem:[%s203 + $0x34] sm:$0xf]
      %v375 = vld [vmem:[%s203 + $0x38] sm:$0x1]
      %v376 = vld [vmem:[%s203 + $0x3c] sm:$0xf]
      %v377 = vld [vmem:[%s203 + $0x40] sm:$0xf]
      %v378 = vld [vmem:[%s203 + $0x44] sm:$0x1]
      %v379 = vld [vmem:[%s203 + $0x48] sm:$0xf]
      %v380 = vld [vmem:[%s203 + $0x4c] sm:$0xf]
      %v381 = vld [vmem:[%s203 + $0x50] sm:$0x1]
      %v382 = vld [vmem:[%s203 + $0x54] sm:$0xf]
      %v383 = vld [vmem:[%s203 + $0x58] sm:$0xf]
      %v384 = vld [vmem:[%s203 + $0x5c] sm:$0x1]
      %v385 = vld [vmem:[%s203 + $0x60] sm:$0xf]
      %v386 = vld [vmem:[%s203 + $0x64] sm:$0xf]
      %v387 = vld [vmem:[%s203 + $0x68] sm:$0x1]
      %v388 = vld [vmem:[%s203 + $0x6c] sm:$0xf]
      %v389 = vld [vmem:[%s203 + $0x70] sm:$0xf]
      %v390 = vld [vmem:[%s203 + $0x74] sm:$0x1]
      %v391 = vld [vmem:[%s203 + $0x78] sm:$0xf]
      %v392 = vld [vmem:[%s203 + $0x7c] sm:$0xf]
      %v393 = vld [vmem:[%s203 + $0x80] sm:$0x1]
      %v394 = vld [vmem:[%s203 + $0x84] sm:$0xf]
      %v395 = vld [vmem:[%s203 + $0x88] sm:$0xf]
      %v396 = vld [vmem:[%s203 + $0x8c] sm:$0x1]
      %v397 = vld [vmem:[%s203 + $0x90] sm:$0xf]
      %v398 = vld [vmem:[%s203 + $0x94] sm:$0xf]
      %v399 = vld [vmem:[%s203 + $0x98] sm:$0x1]
      %v400 = vld [vmem:[%s203 + $0x9c] sm:$0xf]
      %v401 = vld [vmem:[%s203 + $0xa0] sm:$0xf]
      %v402 = vld [vmem:[%s203 + $0xa4] sm:$0x1]
      %v403 = vld [vmem:[%s203 + $0xa8] sm:$0xf]
      %v404 = vld [vmem:[%s203 + $0xac] sm:$0xf]
      %v405 = vld [vmem:[%s203 + $0xb0] sm:$0x1]
      %v406 = vld [vmem:[%s203 + $0xb4] sm:$0xf]
      %v407 = vld [vmem:[%s203 + $0xb8] sm:$0xf]
      %v408 = vld [vmem:[%s203 + $0xbc] sm:$0x1]
      %vm409 = vsmask.f32 3328
      %vm410 = vsmask.f32 7440
      %vm411 = vmor %vm409, %vm410
      %v413 = vshrl.u32 %v361, 16
      %v415 = vrot.slane %v413, 4
      %v416 = vshll.u32 %v361, 16
      %v418 = vrot.slane %v416, 5
      %v419 = vor.u32 %v415, %v418
      %v420 = vrot.slane %v419, 4
      %v422 = vshll.u32 %v362, 16
      %v424 = vrot.slane %v422, 5
      %v425 = vsel %vm411, %v420, %v424
      %v426 = vshrl.u32 %v362, 16
      %v428 = vrot.slane %v426, 4
      %v429 = vor.u32 %v428, %v424
      %v430 = vrot.slane %v429, 4
      %v432 = vshll.u32 %v363, 16
      %v434 = vrot.slane %v432, 5
      %v435 = vsel %vm411, %v430, %v434
      %v437 = vshrl.u32 %v364, 16
      %v439 = vrot.slane %v437, 4
      %v440 = vshll.u32 %v364, 16
      %v442 = vrot.slane %v440, 5
      %v443 = vor.u32 %v439, %v442
      %v444 = vrot.slane %v443, 4
      %v446 = vshll.u32 %v365, 16
      %v448 = vrot.slane %v446, 5
      %v449 = vsel %vm411, %v444, %v448
      %v450 = vshrl.u32 %v365, 16
      %v452 = vrot.slane %v450, 4
      %v453 = vor.u32 %v452, %v448
      %v454 = vrot.slane %v453, 4
      %v456 = vshll.u32 %v366, 16
      %v458 = vrot.slane %v456, 5
      %v459 = vsel %vm411, %v454, %v458
      %v461 = vshrl.u32 %v367, 16
      %v463 = vrot.slane %v461, 4
      %v464 = vshll.u32 %v367, 16
      %v466 = vrot.slane %v464, 5
      %v467 = vor.u32 %v463, %v466
      %v468 = vrot.slane %v467, 4
      %v470 = vshll.u32 %v368, 16
      %v472 = vrot.slane %v470, 5
      %v473 = vsel %vm411, %v468, %v472
      %v474 = vshrl.u32 %v368, 16
      %v476 = vrot.slane %v474, 4
      %v477 = vor.u32 %v476, %v472
      %v478 = vrot.slane %v477, 4
      %v480 = vshll.u32 %v369, 16
      %v482 = vrot.slane %v480, 5
      %v483 = vsel %vm411, %v478, %v482
      %v485 = vshrl.u32 %v370, 16
      %v487 = vrot.slane %v485, 4
      %v488 = vshll.u32 %v370, 16
      %v490 = vrot.slane %v488, 5
      %v491 = vor.u32 %v487, %v490
      %v492 = vrot.slane %v491, 4
      %v494 = vshll.u32 %v371, 16
      %v496 = vrot.slane %v494, 5
      %v497 = vsel %vm411, %v492, %v496
      %v498 = vshrl.u32 %v371, 16
      %v500 = vrot.slane %v498, 4
      %v501 = vor.u32 %v500, %v496
      %v502 = vrot.slane %v501, 4
      %v504 = vshll.u32 %v372, 16
      %v506 = vrot.slane %v504, 5
      %v507 = vsel %vm411, %v502, %v506
      %v509 = vshrl.u32 %v373, 16
      %v511 = vrot.slane %v509, 4
      %v512 = vshll.u32 %v373, 16
      %v514 = vrot.slane %v512, 5
      %v515 = vor.u32 %v511, %v514
      %v516 = vrot.slane %v515, 4
      %v518 = vshll.u32 %v374, 16
      %v520 = vrot.slane %v518, 5
      %v521 = vsel %vm411, %v516, %v520
      %v522 = vshrl.u32 %v374, 16
      %v524 = vrot.slane %v522, 4
      %v525 = vor.u32 %v524, %v520
      %v526 = vrot.slane %v525, 4
      %v528 = vshll.u32 %v375, 16
      %v530 = vrot.slane %v528, 5
      %v531 = vsel %vm411, %v526, %v530
      %v533 = vshrl.u32 %v376, 16
      %v535 = vrot.slane %v533, 4
      %v536 = vshll.u32 %v376, 16
      %v538 = vrot.slane %v536, 5
      %v539 = vor.u32 %v535, %v538
      %v540 = vrot.slane %v539, 4
      %v542 = vshll.u32 %v377, 16
      %v544 = vrot.slane %v542, 5
      %v545 = vsel %vm411, %v540, %v544
      %v546 = vshrl.u32 %v377, 16
      %v548 = vrot.slane %v546, 4
      %v549 = vor.u32 %v548, %v544
      %v550 = vrot.slane %v549, 4
      %v552 = vshll.u32 %v378, 16
      %v554 = vrot.slane %v552, 5
      %v555 = vsel %vm411, %v550, %v554
      %v557 = vshrl.u32 %v379, 16
      %v559 = vrot.slane %v557, 4
      %v560 = vshll.u32 %v379, 16
      %v562 = vrot.slane %v560, 5
      %v563 = vor.u32 %v559, %v562
      %v564 = vrot.slane %v563, 4
      %v566 = vshll.u32 %v380, 16
      %v568 = vrot.slane %v566, 5
      %v569 = vsel %vm411, %v564, %v568
      %v570 = vshrl.u32 %v380, 16
      %v572 = vrot.slane %v570, 4
      %v573 = vor.u32 %v572, %v568
      %v574 = vrot.slane %v573, 4
      %v576 = vshll.u32 %v381, 16
      %v578 = vrot.slane %v576, 5
      %v579 = vsel %vm411, %v574, %v578
      %v581 = vshrl.u32 %v382, 16
      %v583 = vrot.slane %v581, 4
      %v584 = vshll.u32 %v382, 16
      %v586 = vrot.slane %v584, 5
      %v587 = vor.u32 %v583, %v586
      %v588 = vrot.slane %v587, 4
      %v590 = vshll.u32 %v383, 16
      %v592 = vrot.slane %v590, 5
      %v593 = vsel %vm411, %v588, %v592
      %v594 = vshrl.u32 %v383, 16
      %v596 = vrot.slane %v594, 4
      %v597 = vor.u32 %v596, %v592
      %v598 = vrot.slane %v597, 4
      %v600 = vshll.u32 %v384, 16
      %v602 = vrot.slane %v600, 5
      %v603 = vsel %vm411, %v598, %v602
      %v605 = vshrl.u32 %v385, 16
      %v607 = vrot.slane %v605, 4
      %v608 = vshll.u32 %v385, 16
      %v610 = vrot.slane %v608, 5
      %v611 = vor.u32 %v607, %v610
      %v612 = vrot.slane %v611, 4
      %v614 = vshll.u32 %v386, 16
      %v616 = vrot.slane %v614, 5
      %v617 = vsel %vm411, %v612, %v616
      %v618 = vshrl.u32 %v386, 16
      %v620 = vrot.slane %v618, 4
      %v621 = vor.u32 %v620, %v616
      %v622 = vrot.slane %v621, 4
      %v624 = vshll.u32 %v387, 16
      %v626 = vrot.slane %v624, 5
      %v627 = vsel %vm411, %v622, %v626
      %v629 = vshrl.u32 %v388, 16
      %v631 = vrot.slane %v629, 4
      %v632 = vshll.u32 %v388, 16
      %v634 = vrot.slane %v632, 5
      %v635 = vor.u32 %v631, %v634
      %v636 = vrot.slane %v635, 4
      %v638 = vshll.u32 %v389, 16
      %v640 = vrot.slane %v638, 5
      %v641 = vsel %vm411, %v636, %v640
      %v642 = vshrl.u32 %v389, 16
      %v644 = vrot.slane %v642, 4
      %v645 = vor.u32 %v644, %v640
      %v646 = vrot.slane %v645, 4
      %v648 = vshll.u32 %v390, 16
      %v650 = vrot.slane %v648, 5
      %v651 = vsel %vm411, %v646, %v650
      %v653 = vshrl.u32 %v391, 16
      %v655 = vrot.slane %v653, 4
      %v656 = vshll.u32 %v391, 16
      %v658 = vrot.slane %v656, 5
      %v659 = vor.u32 %v655, %v658
      %v660 = vrot.slane %v659, 4
      %v662 = vshll.u32 %v392, 16
      %v664 = vrot.slane %v662, 5
      %v665 = vsel %vm411, %v660, %v664
      %v666 = vshrl.u32 %v392, 16
      %v668 = vrot.slane %v666, 4
      %v669 = vor.u32 %v668, %v664
      %v670 = vrot.slane %v669, 4
      %v672 = vshll.u32 %v393, 16
      %v674 = vrot.slane %v672, 5
      %v675 = vsel %vm411, %v670, %v674
      %v677 = vshrl.u32 %v394, 16
      %v679 = vrot.slane %v677, 4
      %v680 = vshll.u32 %v394, 16
      %v682 = vrot.slane %v680, 5
      %v683 = vor.u32 %v679, %v682
      %v684 = vrot.slane %v683, 4
      %v686 = vshll.u32 %v395, 16
      %v688 = vrot.slane %v686, 5
      %v689 = vsel %vm411, %v684, %v688
      %v690 = vshrl.u32 %v395, 16
      %v692 = vrot.slane %v690, 4
      %v693 = vor.u32 %v692, %v688
      %v694 = vrot.slane %v693, 4
      %v696 = vshll.u32 %v396, 16
      %v698 = vrot.slane %v696, 5
      %v699 = vsel %vm411, %v694, %v698
      %v701 = vshrl.u32 %v397, 16
      %v703 = vrot.slane %v701, 4
      %v704 = vshll.u32 %v397, 16
      %v706 = vrot.slane %v704, 5
      %v707 = vor.u32 %v703, %v706
      %v708 = vrot.slane %v707, 4
      %v710 = vshll.u32 %v398, 16
      %v712 = vrot.slane %v710, 5
      %v713 = vsel %vm411, %v708, %v712
      %v714 = vshrl.u32 %v398, 16
      %v716 = vrot.slane %v714, 4
      %v717 = vor.u32 %v716, %v712
      %v718 = vrot.slane %v717, 4
      %v720 = vshll.u32 %v399, 16
      %v722 = vrot.slane %v720, 5
      %v723 = vsel %vm411, %v718, %v722
      %v725 = vshrl.u32 %v400, 16
      %v727 = vrot.slane %v725, 4
      %v728 = vshll.u32 %v400, 16
      %v730 = vrot.slane %v728, 5
      %v731 = vor.u32 %v727, %v730
      %v732 = vrot.slane %v731, 4
      %v734 = vshll.u32 %v401, 16
      %v736 = vrot.slane %v734, 5
      %v737 = vsel %vm411, %v732, %v736
      %v738 = vshrl.u32 %v401, 16
      %v740 = vrot.slane %v738, 4
      %v741 = vor.u32 %v740, %v736
      %v742 = vrot.slane %v741, 4
      %v744 = vshll.u32 %v402, 16
      %v746 = vrot.slane %v744, 5
      %v747 = vsel %vm411, %v742, %v746
      %v749 = vshrl.u32 %v403, 16
      %v751 = vrot.slane %v749, 4
      %v752 = vshll.u32 %v403, 16
      %v754 = vrot.slane %v752, 5
      %v755 = vor.u32 %v751, %v754
      %v756 = vrot.slane %v755, 4
      %v758 = vshll.u32 %v404, 16
      %v760 = vrot.slane %v758, 5
      %v761 = vsel %vm411, %v756, %v760
      %v762 = vshrl.u32 %v404, 16
      %v764 = vrot.slane %v762, 4
      %v765 = vor.u32 %v764, %v760
      %v766 = vrot.slane %v765, 4
      %v768 = vshll.u32 %v405, 16
      %v770 = vrot.slane %v768, 5
      %v771 = vsel %vm411, %v766, %v770
      %v773 = vshrl.u32 %v406, 16
      %v775 = vrot.slane %v773, 4
      %v776 = vshll.u32 %v406, 16
      %v778 = vrot.slane %v776, 5
      %v779 = vor.u32 %v775, %v778
      %v780 = vrot.slane %v779, 4
      %v782 = vshll.u32 %v407, 16
      %v784 = vrot.slane %v782, 5
      %v785 = vsel %vm411, %v780, %v784
      %v786 = vshrl.u32 %v407, 16
      %v788 = vrot.slane %v786, 4
      %v789 = vor.u32 %v788, %v784
      %v790 = vrot.slane %v789, 4
      %v792 = vshll.u32 %v408, 16
      %v794 = vrot.slane %v792, 5
      %v795 = vsel %vm411, %v790, %v794
      %v796 = vunpack.c.l.b16 %v425
      %v797 = vunpack.c.l.b16 %v435
      %v798 = vunpack.c.l.b16 %v449
      %v799 = vunpack.c.l.b16 %v459
      %v800 = vunpack.c.l.b16 %v473
      %v801 = vunpack.c.l.b16 %v483
      %v802 = vunpack.c.l.b16 %v497
      %v803 = vunpack.c.l.b16 %v507
      %v804 = vunpack.c.l.b16 %v521
      %v805 = vunpack.c.l.b16 %v531
      %v806 = vunpack.c.l.b16 %v545
      %v807 = vunpack.c.l.b16 %v555
      %v808 = vunpack.c.l.b16 %v569
      %v809 = vunpack.c.l.b16 %v579
      %v810 = vunpack.c.l.b16 %v593
      %v811 = vunpack.c.l.b16 %v603
      %v812 = vunpack.c.l.b16 %v617
      %v813 = vunpack.c.l.b16 %v627
      %v814 = vunpack.c.l.b16 %v641
      %v815 = vunpack.c.l.b16 %v651
      %v816 = vunpack.c.l.b16 %v665
      %v817 = vunpack.c.l.b16 %v675
      %v818 = vunpack.c.l.b16 %v689
      %v819 = vunpack.c.l.b16 %v699
      %v820 = vunpack.c.l.b16 %v713
      %v821 = vunpack.c.l.b16 %v723
      %v822 = vunpack.c.l.b16 %v737
      %v823 = vunpack.c.l.b16 %v747
      %v824 = vunpack.c.l.b16 %v761
      %v825 = vunpack.c.l.b16 %v771
      %v826 = vunpack.c.l.b16 %v785
      %v827 = vunpack.c.l.b16 %v795
      %v828 = vpack.c.b16 %v797, %v796
      %v829 = vpack.c.b16 %v799, %v798
      %v830 = vpack.c.b16 %v801, %v800
      %v831 = vpack.c.b16 %v803, %v802
      %v832 = vpack.c.b16 %v805, %v804
      %v833 = vpack.c.b16 %v807, %v806
      %v834 = vpack.c.b16 %v809, %v808
      %v835 = vpack.c.b16 %v811, %v810
      %v836 = vpack.c.b16 %v813, %v812
      %v837 = vpack.c.b16 %v815, %v814
      %v838 = vpack.c.b16 %v817, %v816
      %v839 = vpack.c.b16 %v819, %v818
      %v840 = vpack.c.b16 %v821, %v820
      %v841 = vpack.c.b16 %v823, %v822
      %v842 = vpack.c.b16 %v825, %v824
      %v843 = vpack.c.b16 %v827, %v826
      %844 = vrot.lane.b32.xlu0 %v828, 4
      %v845 = vpop.permute.xlu0 %844
      %846 = vrot.lane.b32.xlu0 %v829, 4
      %v847 = vpop.permute.xlu0 %846
      %848 = vrot.lane.b32.xlu0 %v830, 4
      %v849 = vpop.permute.xlu0 %848
      %850 = vrot.lane.b32.xlu0 %v831, 4
      %v851 = vpop.permute.xlu0 %850
      %852 = vrot.lane.b32.xlu0 %v832, 4
      %v853 = vpop.permute.xlu0 %852
      %854 = vrot.lane.b32.xlu0 %v833, 4
      %v855 = vpop.permute.xlu0 %854
      %856 = vrot.lane.b32.xlu0 %v834, 4
      %v857 = vpop.permute.xlu0 %856
      %858 = vrot.lane.b32.xlu0 %v835, 4
      %v859 = vpop.permute.xlu0 %858
      %860 = vrot.lane.b32.xlu0 %v836, 4
      %v861 = vpop.permute.xlu0 %860
      %862 = vrot.lane.b32.xlu0 %v837, 4
      %v863 = vpop.permute.xlu0 %862
      %864 = vrot.lane.b32.xlu0 %v838, 4
      %v865 = vpop.permute.xlu0 %864
      %866 = vrot.lane.b32.xlu0 %v839, 4
      %v867 = vpop.permute.xlu0 %866
      %868 = vrot.lane.b32.xlu0 %v840, 4
      %v869 = vpop.permute.xlu0 %868
      %870 = vrot.lane.b32.xlu0 %v841, 4
      %v871 = vpop.permute.xlu0 %870
      %872 = vrot.lane.b32.xlu0 %v842, 4
      %v873 = vpop.permute.xlu0 %872
      %874 = vrot.lane.b32.xlu0 %v843, 4
      %v875 = vpop.permute.xlu0 %874
      %vm892 = vcmask 64544
      %893 = vst.msk [vmem:[#allocation2] sm:$0xff] %vm892, %v845
      %894 = vst.msk [vmem:[#allocation2 + $0x8] sm:$0xff] %vm892, %v847
      %895 = vst.msk [vmem:[#allocation2 + $0x10] sm:$0xff] %vm892, %v849
      %896 = vst.msk [vmem:[#allocation2 + $0x18] sm:$0xff] %vm892, %v851
      %897 = vst.msk [vmem:[#allocation2 + $0x20] sm:$0xff] %vm892, %v853
      %898 = vst.msk [vmem:[#allocation2 + $0x28] sm:$0xff] %vm892, %v855
      %899 = vst.msk [vmem:[#allocation2 + $0x30] sm:$0xff] %vm892, %v857
      %900 = vst.msk [vmem:[#allocation2 + $0x38] sm:$0xff] %vm892, %v859
      %901 = vst.msk [vmem:[#allocation2 + $0x40] sm:$0xff] %vm892, %v861
      %902 = vst.msk [vmem:[#allocation2 + $0x48] sm:$0xff] %vm892, %v863
      %903 = vst.msk [vmem:[#allocation2 + $0x50] sm:$0xff] %vm892, %v865
      %904 = vst.msk [vmem:[#allocation2 + $0x58] sm:$0xff] %vm892, %v867
      %905 = vst.msk [vmem:[#allocation2 + $0x60] sm:$0xff] %vm892, %v869
      %906 = vst.msk [vmem:[#allocation2 + $0x68] sm:$0xff] %vm892, %v871
      %907 = vst.msk [vmem:[#allocation2 + $0x70] sm:$0xff] %vm892, %v873
      %908 = vst.msk [vmem:[#allocation2 + $0x78] sm:$0xff] %vm892, %v875
      %v909 = vld [vmem:[%s203] sm:$0xe]
      %v910 = vld [vmem:[%s203 + $0x4] sm:$0xf]
      %v911 = vld [vmem:[%s203 + $0x8] sm:$0x1]
      %v912 = vld [vmem:[%s203 + $0xc] sm:$0xe]
      %v913 = vld [vmem:[%s203 + $0x10] sm:$0xf]
      %v914 = vld [vmem:[%s203 + $0x14] sm:$0x1]
      %v915 = vld [vmem:[%s203 + $0x18] sm:$0xe]
      %v916 = vld [vmem:[%s203 + $0x1c] sm:$0xf]
      %v917 = vld [vmem:[%s203 + $0x20] sm:$0x1]
      %v918 = vld [vmem:[%s203 + $0x24] sm:$0xe]
      %v919 = vld [vmem:[%s203 + $0x28] sm:$0xf]
      %v920 = vld [vmem:[%s203 + $0x2c] sm:$0x1]
      %v921 = vld [vmem:[%s203 + $0x30] sm:$0xe]
      %v922 = vld [vmem:[%s203 + $0x34] sm:$0xf]
      %v923 = vld [vmem:[%s203 + $0x38] sm:$0x1]
      %v924 = vld [vmem:[%s203 + $0x3c] sm:$0xe]
      %v925 = vld [vmem:[%s203 + $0x40] sm:$0xf]
      %v926 = vld [vmem:[%s203 + $0x44] sm:$0x1]
      %v927 = vld [vmem:[%s203 + $0x48] sm:$0xe]
      %v928 = vld [vmem:[%s203 + $0x4c] sm:$0xf]
      %v929 = vld [vmem:[%s203 + $0x50] sm:$0x1]
      %v930 = vld [vmem:[%s203 + $0x54] sm:$0xe]
      %v931 = vld [vmem:[%s203 + $0x58] sm:$0xf]
      %v932 = vld [vmem:[%s203 + $0x5c] sm:$0x1]
      %v933 = vld [vmem:[%s203 + $0x60] sm:$0xe]
      %v934 = vld [vmem:[%s203 + $0x64] sm:$0xf]
      %v935 = vld [vmem:[%s203 + $0x68] sm:$0x1]
      %v936 = vld [vmem:[%s203 + $0x6c] sm:$0xe]
      %v937 = vld [vmem:[%s203 + $0x70] sm:$0xf]
      %v938 = vld [vmem:[%s203 + $0x74] sm:$0x1]
      %v939 = vld [vmem:[%s203 + $0x78] sm:$0xe]
      %v940 = vld [vmem:[%s203 + $0x7c] sm:$0xf]
      %v941 = vld [vmem:[%s203 + $0x80] sm:$0x1]
      %v942 = vld [vmem:[%s203 + $0x84] sm:$0xe]
      %v943 = vld [vmem:[%s203 + $0x88] sm:$0xf]
      %v944 = vld [vmem:[%s203 + $0x8c] sm:$0x1]
      %v945 = vld [vmem:[%s203 + $0x90] sm:$0xe]
      %v946 = vld [vmem:[%s203 + $0x94] sm:$0xf]
      %v947 = vld [vmem:[%s203 + $0x98] sm:$0x1]
      %v948 = vld [vmem:[%s203 + $0x9c] sm:$0xe]
      %v949 = vld [vmem:[%s203 + $0xa0] sm:$0xf]
      %v950 = vld [vmem:[%s203 + $0xa4] sm:$0x1]
      %v951 = vld [vmem:[%s203 + $0xa8] sm:$0xe]
      %v952 = vld [vmem:[%s203 + $0xac] sm:$0xf]
      %v953 = vld [vmem:[%s203 + $0xb0] sm:$0x1]
      %v954 = vld [vmem:[%s203 + $0xb4] sm:$0xe]
      %v955 = vld [vmem:[%s203 + $0xb8] sm:$0xf]
      %v956 = vld [vmem:[%s203 + $0xbc] sm:$0x1]
      %vm1005 = vcmask 1042432
      %vm1006 = vcmask 1046532
      %vm1007 = vmor %vm1005, %vm1006
      %v1008 = vrot.slane %v909, 5
      %v1009 = vrot.slane %v1008, 4
      %v1010 = vrot.slane %v910, 5
      %v1011 = vsel %vm1007, %v1009, %v1010
      %v1012 = vrot.slane %v1010, 4
      %v1013 = vrot.slane %v911, 5
      %v1014 = vsel %vm1007, %v1012, %v1013
      %v1015 = vrot.slane %v912, 5
      %v1016 = vrot.slane %v1015, 4
      %v1017 = vrot.slane %v913, 5
      %v1018 = vsel %vm1007, %v1016, %v1017
      %v1019 = vrot.slane %v1017, 4
      %v1020 = vrot.slane %v914, 5
      %v1021 = vsel %vm1007, %v1019, %v1020
      %v1022 = vrot.slane %v915, 5
      %v1023 = vrot.slane %v1022, 4
      %v1024 = vrot.slane %v916, 5
      %v1025 = vsel %vm1007, %v1023, %v1024
      %v1026 = vrot.slane %v1024, 4
      %v1027 = vrot.slane %v917, 5
      %v1028 = vsel %vm1007, %v1026, %v1027
      %v1029 = vrot.slane %v918, 5
      %v1030 = vrot.slane %v1029, 4
      %v1031 = vrot.slane %v919, 5
      %v1032 = vsel %vm1007, %v1030, %v1031
      %v1033 = vrot.slane %v1031, 4
      %v1034 = vrot.slane %v920, 5
      %v1035 = vsel %vm1007, %v1033, %v1034
      %v1036 = vrot.slane %v921, 5
      %v1037 = vrot.slane %v1036, 4
      %v1038 = vrot.slane %v922, 5
      %v1039 = vsel %vm1007, %v1037, %v1038
      %v1040 = vrot.slane %v1038, 4
      %v1041 = vrot.slane %v923, 5
      %v1042 = vsel %vm1007, %v1040, %v1041
      %v1043 = vrot.slane %v924, 5
      %v1044 = vrot.slane %v1043, 4
      %v1045 = vrot.slane %v925, 5
      %v1046 = vsel %vm1007, %v1044, %v1045
      %v1047 = vrot.slane %v1045, 4
      %v1048 = vrot.slane %v926, 5
      %v1049 = vsel %vm1007, %v1047, %v1048
      %v1050 = vrot.slane %v927, 5
      %v1051 = vrot.slane %v1050, 4
      %v1052 = vrot.slane %v928, 5
      %v1053 = vsel %vm1007, %v1051, %v1052
      %v1054 = vrot.slane %v1052, 4
      %v1055 = vrot.slane %v929, 5
      %v1056 = vsel %vm1007, %v1054, %v1055
      %v1057 = vrot.slane %v930, 5
      %v1058 = vrot.slane %v1057, 4
      %v1059 = vrot.slane %v931, 5
      %v1060 = vsel %vm1007, %v1058, %v1059
      %v1061 = vrot.slane %v1059, 4
      %v1062 = vrot.slane %v932, 5
      %v1063 = vsel %vm1007, %v1061, %v1062
      %v1064 = vrot.slane %v933, 5
      %v1065 = vrot.slane %v1064, 4
      %v1066 = vrot.slane %v934, 5
      %v1067 = vsel %vm1007, %v1065, %v1066
      %v1068 = vrot.slane %v1066, 4
      %v1069 = vrot.slane %v935, 5
      %v1070 = vsel %vm1007, %v1068, %v1069
      %v1071 = vrot.slane %v936, 5
      %v1072 = vrot.slane %v1071, 4
      %v1073 = vrot.slane %v937, 5
      %v1074 = vsel %vm1007, %v1072, %v1073
      %v1075 = vrot.slane %v1073, 4
      %v1076 = vrot.slane %v938, 5
      %v1077 = vsel %vm1007, %v1075, %v1076
      %v1078 = vrot.slane %v939, 5
      %v1079 = vrot.slane %v1078, 4
      %v1080 = vrot.slane %v940, 5
      %v1081 = vsel %vm1007, %v1079, %v1080
      %v1082 = vrot.slane %v1080, 4
      %v1083 = vrot.slane %v941, 5
      %v1084 = vsel %vm1007, %v1082, %v1083
      %v1085 = vrot.slane %v942, 5
      %v1086 = vrot.slane %v1085, 4
      %v1087 = vrot.slane %v943, 5
      %v1088 = vsel %vm1007, %v1086, %v1087
      %v1089 = vrot.slane %v1087, 4
      %v1090 = vrot.slane %v944, 5
      %v1091 = vsel %vm1007, %v1089, %v1090
      %v1092 = vrot.slane %v945, 5
      %v1093 = vrot.slane %v1092, 4
      %v1094 = vrot.slane %v946, 5
      %v1095 = vsel %vm1007, %v1093, %v1094
      %v1096 = vrot.slane %v1094, 4
      %v1097 = vrot.slane %v947, 5
      %v1098 = vsel %vm1007, %v1096, %v1097
      %v1099 = vrot.slane %v948, 5
      %v1100 = vrot.slane %v1099, 4
      %v1101 = vrot.slane %v949, 5
      %v1102 = vsel %vm1007, %v1100, %v1101
      %v1103 = vrot.slane %v1101, 4
      %v1104 = vrot.slane %v950, 5
      %v1105 = vsel %vm1007, %v1103, %v1104
      %v1106 = vrot.slane %v951, 5
      %v1107 = vrot.slane %v1106, 4
      %v1108 = vrot.slane %v952, 5
      %v1109 = vsel %vm1007, %v1107, %v1108
      %v1110 = vrot.slane %v1108, 4
      %v1111 = vrot.slane %v953, 5
      %v1112 = vsel %vm1007, %v1110, %v1111
      %v1113 = vrot.slane %v954, 5
      %v1114 = vrot.slane %v1113, 4
      %v1115 = vrot.slane %v955, 5
      %v1116 = vsel %vm1007, %v1114, %v1115
      %v1117 = vrot.slane %v1115, 4
      %v1118 = vrot.slane %v956, 5
      %v1119 = vsel %vm1007, %v1117, %v1118
      %v1120 = vunpack.c.l.b16 %v1011
      %v1121 = vunpack.c.l.b16 %v1014
      %v1122 = vunpack.c.l.b16 %v1018
      %v1123 = vunpack.c.l.b16 %v1021
      %v1124 = vunpack.c.l.b16 %v1025
      %v1125 = vunpack.c.l.b16 %v1028
      %v1126 = vunpack.c.l.b16 %v1032
      %v1127 = vunpack.c.l.b16 %v1035
      %v1128 = vunpack.c.l.b16 %v1039
      %v1129 = vunpack.c.l.b16 %v1042
      %v1130 = vunpack.c.l.b16 %v1046
      %v1131 = vunpack.c.l.b16 %v1049
      %v1132 = vunpack.c.l.b16 %v1053
      %v1133 = vunpack.c.l.b16 %v1056
      %v1134 = vunpack.c.l.b16 %v1060
      %v1135 = vunpack.c.l.b16 %v1063
      %v1136 = vunpack.c.l.b16 %v1067
      %v1137 = vunpack.c.l.b16 %v1070
      %v1138 = vunpack.c.l.b16 %v1074
      %v1139 = vunpack.c.l.b16 %v1077
      %v1140 = vunpack.c.l.b16 %v1081
      %v1141 = vunpack.c.l.b16 %v1084
      %v1142 = vunpack.c.l.b16 %v1088
      %v1143 = vunpack.c.l.b16 %v1091
      %v1144 = vunpack.c.l.b16 %v1095
      %v1145 = vunpack.c.l.b16 %v1098
      %v1146 = vunpack.c.l.b16 %v1102
      %v1147 = vunpack.c.l.b16 %v1105
      %v1148 = vunpack.c.l.b16 %v1109
      %v1149 = vunpack.c.l.b16 %v1112
      %v1150 = vunpack.c.l.b16 %v1116
      %v1151 = vunpack.c.l.b16 %v1119
      %v1152 = vpack.c.b16 %v1121, %v1120
      %v1153 = vpack.c.b16 %v1123, %v1122
      %v1154 = vpack.c.b16 %v1125, %v1124
      %v1155 = vpack.c.b16 %v1127, %v1126
      %v1156 = vpack.c.b16 %v1129, %v1128
      %v1157 = vpack.c.b16 %v1131, %v1130
      %v1158 = vpack.c.b16 %v1133, %v1132
      %v1159 = vpack.c.b16 %v1135, %v1134
      %v1160 = vpack.c.b16 %v1137, %v1136
      %v1161 = vpack.c.b16 %v1139, %v1138
      %v1162 = vpack.c.b16 %v1141, %v1140
      %v1163 = vpack.c.b16 %v1143, %v1142
      %v1164 = vpack.c.b16 %v1145, %v1144
      %v1165 = vpack.c.b16 %v1147, %v1146
      %v1166 = vpack.c.b16 %v1149, %v1148
      %v1167 = vpack.c.b16 %v1151, %v1150
      %1168 = vrot.lane.b32.xlu0 %v1152, 8
      %v1169 = vpop.permute.xlu0 %1168
      %1170 = vrot.lane.b32.xlu0 %v1153, 8
      %v1171 = vpop.permute.xlu0 %1170
      %1172 = vrot.lane.b32.xlu0 %v1154, 8
      %v1173 = vpop.permute.xlu0 %1172
      %1174 = vrot.lane.b32.xlu0 %v1155, 8
      %v1175 = vpop.permute.xlu0 %1174
      %1176 = vrot.lane.b32.xlu0 %v1156, 8
      %v1177 = vpop.permute.xlu0 %1176
      %1178 = vrot.lane.b32.xlu0 %v1157, 8
      %v1179 = vpop.permute.xlu0 %1178
      %1180 = vrot.lane.b32.xlu0 %v1158, 8
      %v1181 = vpop.permute.xlu0 %1180
      %1182 = vrot.lane.b32.xlu0 %v1159, 8
      %v1183 = vpop.permute.xlu0 %1182
      %1184 = vrot.lane.b32.xlu0 %v1160, 8
      %v1185 = vpop.permute.xlu0 %1184
      %1186 = vrot.lane.b32.xlu0 %v1161, 8
      %v1187 = vpop.permute.xlu0 %1186
      %1188 = vrot.lane.b32.xlu0 %v1162, 8
      %v1189 = vpop.permute.xlu0 %1188
      %1190 = vrot.lane.b32.xlu0 %v1163, 8
      %v1191 = vpop.permute.xlu0 %1190
      %1192 = vrot.lane.b32.xlu0 %v1164, 8
      %v1193 = vpop.permute.xlu0 %1192
      %1194 = vrot.lane.b32.xlu0 %v1165, 8
      %v1195 = vpop.permute.xlu0 %1194
      %1196 = vrot.lane.b32.xlu0 %v1166, 8
      %v1197 = vpop.permute.xlu0 %1196
      %1198 = vrot.lane.b32.xlu0 %v1167, 8
      %v1199 = vpop.permute.xlu0 %1198
      %vm1216 = vcmask 97344
      %1217 = vst.msk [vmem:[#allocation2] sm:$0xff] %vm1216, %v1169
      %1218 = vst.msk [vmem:[#allocation2 + $0x8] sm:$0xff] %vm1216, %v1171
      %1219 = vst.msk [vmem:[#allocation2 + $0x10] sm:$0xff] %vm1216, %v1173
      %1220 = vst.msk [vmem:[#allocation2 + $0x18] sm:$0xff] %vm1216, %v1175
      %1221 = vst.msk [vmem:[#allocation2 + $0x20] sm:$0xff] %vm1216, %v1177
      %1222 = vst.msk [vmem:[#allocation2 + $0x28] sm:$0xff] %vm1216, %v1179
      %1223 = vst.msk [vmem:[#allocation2 + $0x30] sm:$0xff] %vm1216, %v1181
      %1224 = vst.msk [vmem:[#allocation2 + $0x38] sm:$0xff] %vm1216, %v1183
      %1225 = vst.msk [vmem:[#allocation2 + $0x40] sm:$0xff] %vm1216, %v1185
      %1226 = vst.msk [vmem:[#allocation2 + $0x48] sm:$0xff] %vm1216, %v1187
      %1227 = vst.msk [vmem:[#allocation2 + $0x50] sm:$0xff] %vm1216, %v1189
      %1228 = vst.msk [vmem:[#allocation2 + $0x58] sm:$0xff] %vm1216, %v1191
      %1229 = vst.msk [vmem:[#allocation2 + $0x60] sm:$0xff] %vm1216, %v1193
      %1230 = vst.msk [vmem:[#allocation2 + $0x68] sm:$0xff] %vm1216, %v1195
      %1231 = vst.msk [vmem:[#allocation2 + $0x70] sm:$0xff] %vm1216, %v1197
      %1232 = vst.msk [vmem:[#allocation2 + $0x78] sm:$0xff] %vm1216, %v1199
      %s1233 = scalar_lea.vmem %s203, 12
      %v1234 = vld [vmem:[%s1233] sm:$0xf]
      %v1235 = vld [vmem:[%s1233 + $0x4] sm:$0xf]
      %v1236 = vld [vmem:[%s1233 + $0xc] sm:$0xf]
      %v1237 = vld [vmem:[%s1233 + $0x10] sm:$0xf]
      %v1238 = vld [vmem:[%s1233 + $0x18] sm:$0xf]
      %v1239 = vld [vmem:[%s1233 + $0x1c] sm:$0xf]
      %v1240 = vld [vmem:[%s1233 + $0x24] sm:$0xf]
      %v1241 = vld [vmem:[%s1233 + $0x28] sm:$0xf]
      %v1242 = vld [vmem:[%s1233 + $0x30] sm:$0xf]
      %v1243 = vld [vmem:[%s1233 + $0x34] sm:$0xf]
      %v1244 = vld [vmem:[%s1233 + $0x3c] sm:$0xf]
      %v1245 = vld [vmem:[%s1233 + $0x40] sm:$0xf]
      %v1246 = vld [vmem:[%s1233 + $0x48] sm:$0xf]
      %v1247 = vld [vmem:[%s1233 + $0x4c] sm:$0xf]
      %v1248 = vld [vmem:[%s1233 + $0x54] sm:$0xf]
      %v1249 = vld [vmem:[%s1233 + $0x58] sm:$0xf]
      %v1250 = vld [vmem:[%s1233 + $0x60] sm:$0xf]
      %v1251 = vld [vmem:[%s1233 + $0x64] sm:$0xf]
      %v1252 = vld [vmem:[%s1233 + $0x6c] sm:$0xf]
      %v1253 = vld [vmem:[%s1233 + $0x70] sm:$0xf]
      %v1254 = vld [vmem:[%s1233 + $0x78] sm:$0xf]
      %v1255 = vld [vmem:[%s1233 + $0x7c] sm:$0xf]
      %v1256 = vld [vmem:[%s1233 + $0x84] sm:$0xf]
      %v1257 = vld [vmem:[%s1233 + $0x88] sm:$0xf]
      %v1258 = vld [vmem:[%s1233 + $0x90] sm:$0xf]
      %v1259 = vld [vmem:[%s1233 + $0x94] sm:$0xf]
      %v1260 = vld [vmem:[%s1233 + $0x9c] sm:$0xf]
      %v1261 = vld [vmem:[%s1233 + $0xa0] sm:$0xf]
      %v1262 = vld [vmem:[%s1233 + $0xa8] sm:$0xf]
      %v1263 = vld [vmem:[%s1233 + $0xac] sm:$0xf]
      %v1264 = vld [vmem:[%s1233 + $0xb4] sm:$0xf]
      %v1265 = vld [vmem:[%s1233 + $0xb8] sm:$0xf]
      %v1298 = vunpack.c.l.b16 %v1234
      %v1299 = vunpack.c.l.b16 %v1235
      %v1300 = vunpack.c.l.b16 %v1236
      %v1301 = vunpack.c.l.b16 %v1237
      %v1302 = vunpack.c.l.b16 %v1238
      %v1303 = vunpack.c.l.b16 %v1239
      %v1304 = vunpack.c.l.b16 %v1240
      %v1305 = vunpack.c.l.b16 %v1241
      %v1306 = vunpack.c.l.b16 %v1242
      %v1307 = vunpack.c.l.b16 %v1243
      %v1308 = vunpack.c.l.b16 %v1244
      %v1309 = vunpack.c.l.b16 %v1245
      %v1310 = vunpack.c.l.b16 %v1246
      %v1311 = vunpack.c.l.b16 %v1247
      %v1312 = vunpack.c.l.b16 %v1248
      %v1313 = vunpack.c.l.b16 %v1249
      %v1314 = vunpack.c.l.b16 %v1250
      %v1315 = vunpack.c.l.b16 %v1251
      %v1316 = vunpack.c.l.b16 %v1252
      %v1317 = vunpack.c.l.b16 %v1253
      %v1318 = vunpack.c.l.b16 %v1254
      %v1319 = vunpack.c.l.b16 %v1255
      %v1320 = vunpack.c.l.b16 %v1256
      %v1321 = vunpack.c.l.b16 %v1257
      %v1322 = vunpack.c.l.b16 %v1258
      %v1323 = vunpack.c.l.b16 %v1259
      %v1324 = vunpack.c.l.b16 %v1260
      %v1325 = vunpack.c.l.b16 %v1261
      %v1326 = vunpack.c.l.b16 %v1262
      %v1327 = vunpack.c.l.b16 %v1263
      %v1328 = vunpack.c.l.b16 %v1264
      %v1329 = vunpack.c.l.b16 %v1265
      %v1330 = vpack.c.b16 %v1299, %v1298
      %v1331 = vpack.c.b16 %v1301, %v1300
      %v1332 = vpack.c.b16 %v1303, %v1302
      %v1333 = vpack.c.b16 %v1305, %v1304
      %v1334 = vpack.c.b16 %v1307, %v1306
      %v1335 = vpack.c.b16 %v1309, %v1308
      %v1336 = vpack.c.b16 %v1311, %v1310
      %v1337 = vpack.c.b16 %v1313, %v1312
      %v1338 = vpack.c.b16 %v1315, %v1314
      %v1339 = vpack.c.b16 %v1317, %v1316
      %v1340 = vpack.c.b16 %v1319, %v1318
      %v1341 = vpack.c.b16 %v1321, %v1320
      %v1342 = vpack.c.b16 %v1323, %v1322
      %v1343 = vpack.c.b16 %v1325, %v1324
      %v1344 = vpack.c.b16 %v1327, %v1326
      %v1345 = vpack.c.b16 %v1329, %v1328
      %1346 = vrot.lane.b32.xlu0 %v1330, 12
      %v1347 = vpop.permute.xlu0 %1346
      %1348 = vrot.lane.b32.xlu0 %v1331, 12
      %v1349 = vpop.permute.xlu0 %1348
      %1350 = vrot.lane.b32.xlu0 %v1332, 12
      %v1351 = vpop.permute.xlu0 %1350
      %1352 = vrot.lane.b32.xlu0 %v1333, 12
      %v1353 = vpop.permute.xlu0 %1352
      %1354 = vrot.lane.b32.xlu0 %v1334, 12
      %v1355 = vpop.permute.xlu0 %1354
      %1356 = vrot.lane.b32.xlu0 %v1335, 12
      %v1357 = vpop.permute.xlu0 %1356
      %1358 = vrot.lane.b32.xlu0 %v1336, 12
      %v1359 = vpop.permute.xlu0 %1358
      %1360 = vrot.lane.b32.xlu0 %v1337, 12
      %v1361 = vpop.permute.xlu0 %1360
      %1362 = vrot.lane.b32.xlu0 %v1338, 12
      %v1363 = vpop.permute.xlu0 %1362
      %1364 = vrot.lane.b32.xlu0 %v1339, 12
      %v1365 = vpop.permute.xlu0 %1364
      %1366 = vrot.lane.b32.xlu0 %v1340, 12
      %v1367 = vpop.permute.xlu0 %1366
      %1368 = vrot.lane.b32.xlu0 %v1341, 12
      %v1369 = vpop.permute.xlu0 %1368
      %1370 = vrot.lane.b32.xlu0 %v1342, 12
      %v1371 = vpop.permute.xlu0 %1370
      %1372 = vrot.lane.b32.xlu0 %v1343, 12
      %v1373 = vpop.permute.xlu0 %1372
      %1374 = vrot.lane.b32.xlu0 %v1344, 12
      %v1375 = vpop.permute.xlu0 %1374
      %1376 = vrot.lane.b32.xlu0 %v1345, 12
      %v1377 = vpop.permute.xlu0 %1376
      %vm1394 = vcmask 130144
      %1395 = vst.msk [vmem:[#allocation2] sm:$0xff] %vm1394, %v1347
      %1396 = vst.msk [vmem:[#allocation2 + $0x8] sm:$0xff] %vm1394, %v1349
      %1397 = vst.msk [vmem:[#allocation2 + $0x10] sm:$0xff] %vm1394, %v1351
      %1398 = vst.msk [vmem:[#allocation2 + $0x18] sm:$0xff] %vm1394, %v1353
      %1399 = vst.msk [vmem:[#allocation2 + $0x20] sm:$0xff] %vm1394, %v1355
      %1400 = vst.msk [vmem:[#allocation2 + $0x28] sm:$0xff] %vm1394, %v1357
      %1401 = vst.msk [vmem:[#allocation2 + $0x30] sm:$0xff] %vm1394, %v1359
      %1402 = vst.msk [vmem:[#allocation2 + $0x38] sm:$0xff] %vm1394, %v1361
      %1403 = vst.msk [vmem:[#allocation2 + $0x40] sm:$0xff] %vm1394, %v1363
      %1404 = vst.msk [vmem:[#allocation2 + $0x48] sm:$0xff] %vm1394, %v1365
      %1405 = vst.msk [vmem:[#allocation2 + $0x50] sm:$0xff] %vm1394, %v1367
      %1406 = vst.msk [vmem:[#allocation2 + $0x58] sm:$0xff] %vm1394, %v1369
      %1407 = vst.msk [vmem:[#allocation2 + $0x60] sm:$0xff] %vm1394, %v1371
      %1408 = vst.msk [vmem:[#allocation2 + $0x68] sm:$0xff] %vm1394, %v1373
      %1409 = vst.msk [vmem:[#allocation2 + $0x70] sm:$0xff] %vm1394, %v1375
      %1410 = vst.msk [vmem:[#allocation2 + $0x78] sm:$0xff] %vm1394, %v1377
      %v1411 = vld [vmem:[%s1233] sm:$0xf]
      %v1412 = vld [vmem:[%s1233 + $0x4] sm:$0xf]
      %v1413 = vld [vmem:[%s1233 + $0x8] sm:$0x1]
      %v1414 = vld [vmem:[%s1233 + $0xc] sm:$0xf]
      %v1415 = vld [vmem:[%s1233 + $0x10] sm:$0xf]
      %v1416 = vld [vmem:[%s1233 + $0x14] sm:$0x1]
      %v1417 = vld [vmem:[%s1233 + $0x18] sm:$0xf]
      %v1418 = vld [vmem:[%s1233 + $0x1c] sm:$0xf]
      %v1419 = vld [vmem:[%s1233 + $0x20] sm:$0x1]
      %v1420 = vld [vmem:[%s1233 + $0x24] sm:$0xf]
      %v1421 = vld [vmem:[%s1233 + $0x28] sm:$0xf]
      %v1422 = vld [vmem:[%s1233 + $0x2c] sm:$0x1]
      %v1423 = vld [vmem:[%s1233 + $0x30] sm:$0xf]
      %v1424 = vld [vmem:[%s1233 + $0x34] sm:$0xf]
      %v1425 = vld [vmem:[%s1233 + $0x38] sm:$0x1]
      %v1426 = vld [vmem:[%s1233 + $0x3c] sm:$0xf]
      %v1427 = vld [vmem:[%s1233 + $0x40] sm:$0xf]
      %v1428 = vld [vmem:[%s1233 + $0x44] sm:$0x1]
      %v1429 = vld [vmem:[%s1233 + $0x48] sm:$0xf]
      %v1430 = vld [vmem:[%s1233 + $0x4c] sm:$0xf]
      %v1431 = vld [vmem:[%s1233 + $0x50] sm:$0x1]
      %v1432 = vld [vmem:[%s1233 + $0x54] sm:$0xf]
      %v1433 = vld [vmem:[%s1233 + $0x58] sm:$0xf]
      %v1434 = vld [vmem:[%s1233 + $0x5c] sm:$0x1]
      %v1435 = vld [vmem:[%s1233 + $0x60] sm:$0xf]
      %v1436 = vld [vmem:[%s1233 + $0x64] sm:$0xf]
      %v1437 = vld [vmem:[%s1233 + $0x68] sm:$0x1]
      %v1438 = vld [vmem:[%s1233 + $0x6c] sm:$0xf]
      %v1439 = vld [vmem:[%s1233 + $0x70] sm:$0xf]
      %v1440 = vld [vmem:[%s1233 + $0x74] sm:$0x1]
      %v1441 = vld [vmem:[%s1233 + $0x78] sm:$0xf]
      %v1442 = vld [vmem:[%s1233 + $0x7c] sm:$0xf]
      %v1443 = vld [vmem:[%s1233 + $0x80] sm:$0x1]
      %v1444 = vld [vmem:[%s1233 + $0x84] sm:$0xf]
      %v1445 = vld [vmem:[%s1233 + $0x88] sm:$0xf]
      %v1446 = vld [vmem:[%s1233 + $0x8c] sm:$0x1]
      %v1447 = vld [vmem:[%s1233 + $0x90] sm:$0xf]
      %v1448 = vld [vmem:[%s1233 + $0x94] sm:$0xf]
      %v1449 = vld [vmem:[%s1233 + $0x98] sm:$0x1]
      %v1450 = vld [vmem:[%s1233 + $0x9c] sm:$0xf]
      %v1451 = vld [vmem:[%s1233 + $0xa0] sm:$0xf]
      %v1452 = vld [vmem:[%s1233 + $0xa4] sm:$0x1]
      %v1453 = vld [vmem:[%s1233 + $0xa8] sm:$0xf]
      %v1454 = vld [vmem:[%s1233 + $0xac] sm:$0xf]
      %v1455 = vld [vmem:[%s1233 + $0xb0] sm:$0x1]
      %v1456 = vld [vmem:[%s1233 + $0xb4] sm:$0xf]
      %v1457 = vld [vmem:[%s1233 + $0xb8] sm:$0xf]
      %v1458 = vld [vmem:[%s1233 + $0xbc] sm:$0x1]
      %v1460 = vshrl.u32 %v1411, 16
      %v1462 = vrot.slane %v1460, 4
      %v1463 = vshll.u32 %v1411, 16
      %v1465 = vrot.slane %v1463, 5
      %v1466 = vor.u32 %v1462, %v1465
      %v1467 = vrot.slane %v1466, 4
      %v1469 = vshll.u32 %v1412, 16
      %v1471 = vrot.slane %v1469, 5
      %v1472 = vsel %vm411, %v1467, %v1471
      %v1473 = vshrl.u32 %v1412, 16
      %v1475 = vrot.slane %v1473, 4
      %v1476 = vor.u32 %v1475, %v1471
      %v1477 = vrot.slane %v1476, 4
      %v1479 = vshll.u32 %v1413, 16
      %v1481 = vrot.slane %v1479, 5
      %v1482 = vsel %vm411, %v1477, %v1481
      %v1484 = vshrl.u32 %v1414, 16
      %v1486 = vrot.slane %v1484, 4
      %v1487 = vshll.u32 %v1414, 16
      %v1489 = vrot.slane %v1487, 5
      %v1490 = vor.u32 %v1486, %v1489
      %v1491 = vrot.slane %v1490, 4
      %v1493 = vshll.u32 %v1415, 16
      %v1495 = vrot.slane %v1493, 5
      %v1496 = vsel %vm411, %v1491, %v1495
      %v1497 = vshrl.u32 %v1415, 16
      %v1499 = vrot.slane %v1497, 4
      %v1500 = vor.u32 %v1499, %v1495
      %v1501 = vrot.slane %v1500, 4
      %v1503 = vshll.u32 %v1416, 16
      %v1505 = vrot.slane %v1503, 5
      %v1506 = vsel %vm411, %v1501, %v1505
      %v1508 = vshrl.u32 %v1417, 16
      %v1510 = vrot.slane %v1508, 4
      %v1511 = vshll.u32 %v1417, 16
      %v1513 = vrot.slane %v1511, 5
      %v1514 = vor.u32 %v1510, %v1513
      %v1515 = vrot.slane %v1514, 4
      %v1517 = vshll.u32 %v1418, 16
      %v1519 = vrot.slane %v1517, 5
      %v1520 = vsel %vm411, %v1515, %v1519
      %v1521 = vshrl.u32 %v1418, 16
      %v1523 = vrot.slane %v1521, 4
      %v1524 = vor.u32 %v1523, %v1519
      %v1525 = vrot.slane %v1524, 4
      %v1527 = vshll.u32 %v1419, 16
      %v1529 = vrot.slane %v1527, 5
      %v1530 = vsel %vm411, %v1525, %v1529
      %v1532 = vshrl.u32 %v1420, 16
      %v1534 = vrot.slane %v1532, 4
      %v1535 = vshll.u32 %v1420, 16
      %v1537 = vrot.slane %v1535, 5
      %v1538 = vor.u32 %v1534, %v1537
      %v1539 = vrot.slane %v1538, 4
      %v1541 = vshll.u32 %v1421, 16
      %v1543 = vrot.slane %v1541, 5
      %v1544 = vsel %vm411, %v1539, %v1543
      %v1545 = vshrl.u32 %v1421, 16
      %v1547 = vrot.slane %v1545, 4
      %v1548 = vor.u32 %v1547, %v1543
      %v1549 = vrot.slane %v1548, 4
      %v1551 = vshll.u32 %v1422, 16
      %v1553 = vrot.slane %v1551, 5
      %v1554 = vsel %vm411, %v1549, %v1553
      %v1556 = vshrl.u32 %v1423, 16
      %v1558 = vrot.slane %v1556, 4
      %v1559 = vshll.u32 %v1423, 16
      %v1561 = vrot.slane %v1559, 5
      %v1562 = vor.u32 %v1558, %v1561
      %v1563 = vrot.slane %v1562, 4
      %v1565 = vshll.u32 %v1424, 16
      %v1567 = vrot.slane %v1565, 5
      %v1568 = vsel %vm411, %v1563, %v1567
      %v1569 = vshrl.u32 %v1424, 16
      %v1571 = vrot.slane %v1569, 4
      %v1572 = vor.u32 %v1571, %v1567
      %v1573 = vrot.slane %v1572, 4
      %v1575 = vshll.u32 %v1425, 16
      %v1577 = vrot.slane %v1575, 5
      %v1578 = vsel %vm411, %v1573, %v1577
      %v1580 = vshrl.u32 %v1426, 16
      %v1582 = vrot.slane %v1580, 4
      %v1583 = vshll.u32 %v1426, 16
      %v1585 = vrot.slane %v1583, 5
      %v1586 = vor.u32 %v1582, %v1585
      %v1587 = vrot.slane %v1586, 4
      %v1589 = vshll.u32 %v1427, 16
      %v1591 = vrot.slane %v1589, 5
      %v1592 = vsel %vm411, %v1587, %v1591
      %v1593 = vshrl.u32 %v1427, 16
      %v1595 = vrot.slane %v1593, 4
      %v1596 = vor.u32 %v1595, %v1591
      %v1597 = vrot.slane %v1596, 4
      %v1599 = vshll.u32 %v1428, 16
      %v1601 = vrot.slane %v1599, 5
      %v1602 = vsel %vm411, %v1597, %v1601
      %v1604 = vshrl.u32 %v1429, 16
      %v1606 = vrot.slane %v1604, 4
      %v1607 = vshll.u32 %v1429, 16
      %v1609 = vrot.slane %v1607, 5
      %v1610 = vor.u32 %v1606, %v1609
      %v1611 = vrot.slane %v1610, 4
      %v1613 = vshll.u32 %v1430, 16
      %v1615 = vrot.slane %v1613, 5
      %v1616 = vsel %vm411, %v1611, %v1615
      %v1617 = vshrl.u32 %v1430, 16
      %v1619 = vrot.slane %v1617, 4
      %v1620 = vor.u32 %v1619, %v1615
      %v1621 = vrot.slane %v1620, 4
      %v1623 = vshll.u32 %v1431, 16
      %v1625 = vrot.slane %v1623, 5
      %v1626 = vsel %vm411, %v1621, %v1625
      %v1628 = vshrl.u32 %v1432, 16
      %v1630 = vrot.slane %v1628, 4
      %v1631 = vshll.u32 %v1432, 16
      %v1633 = vrot.slane %v1631, 5
      %v1634 = vor.u32 %v1630, %v1633
      %v1635 = vrot.slane %v1634, 4
      %v1637 = vshll.u32 %v1433, 16
      %v1639 = vrot.slane %v1637, 5
      %v1640 = vsel %vm411, %v1635, %v1639
      %v1641 = vshrl.u32 %v1433, 16
      %v1643 = vrot.slane %v1641, 4
      %v1644 = vor.u32 %v1643, %v1639
      %v1645 = vrot.slane %v1644, 4
      %v1647 = vshll.u32 %v1434, 16
      %v1649 = vrot.slane %v1647, 5
      %v1650 = vsel %vm411, %v1645, %v1649
      %v1652 = vshrl.u32 %v1435, 16
      %v1654 = vrot.slane %v1652, 4
      %v1655 = vshll.u32 %v1435, 16
      %v1657 = vrot.slane %v1655, 5
      %v1658 = vor.u32 %v1654, %v1657
      %v1659 = vrot.slane %v1658, 4
      %v1661 = vshll.u32 %v1436, 16
      %v1663 = vrot.slane %v1661, 5
      %v1664 = vsel %vm411, %v1659, %v1663
      %v1665 = vshrl.u32 %v1436, 16
      %v1667 = vrot.slane %v1665, 4
      %v1668 = vor.u32 %v1667, %v1663
      %v1669 = vrot.slane %v1668, 4
      %v1671 = vshll.u32 %v1437, 16
      %v1673 = vrot.slane %v1671, 5
      %v1674 = vsel %vm411, %v1669, %v1673
      %v1676 = vshrl.u32 %v1438, 16
      %v1678 = vrot.slane %v1676, 4
      %v1679 = vshll.u32 %v1438, 16
      %v1681 = vrot.slane %v1679, 5
      %v1682 = vor.u32 %v1678, %v1681
      %v1683 = vrot.slane %v1682, 4
      %v1685 = vshll.u32 %v1439, 16
      %v1687 = vrot.slane %v1685, 5
      %v1688 = vsel %vm411, %v1683, %v1687
      %v1689 = vshrl.u32 %v1439, 16
      %v1691 = vrot.slane %v1689, 4
      %v1692 = vor.u32 %v1691, %v1687
      %v1693 = vrot.slane %v1692, 4
      %v1695 = vshll.u32 %v1440, 16
      %v1697 = vrot.slane %v1695, 5
      %v1698 = vsel %vm411, %v1693, %v1697
      %v1700 = vshrl.u32 %v1441, 16
      %v1702 = vrot.slane %v1700, 4
      %v1703 = vshll.u32 %v1441, 16
      %v1705 = vrot.slane %v1703, 5
      %v1706 = vor.u32 %v1702, %v1705
      %v1707 = vrot.slane %v1706, 4
      %v1709 = vshll.u32 %v1442, 16
      %v1711 = vrot.slane %v1709, 5
      %v1712 = vsel %vm411, %v1707, %v1711
      %v1713 = vshrl.u32 %v1442, 16
      %v1715 = vrot.slane %v1713, 4
      %v1716 = vor.u32 %v1715, %v1711
      %v1717 = vrot.slane %v1716, 4
      %v1719 = vshll.u32 %v1443, 16
      %v1721 = vrot.slane %v1719, 5
      %v1722 = vsel %vm411, %v1717, %v1721
      %v1724 = vshrl.u32 %v1444, 16
      %v1726 = vrot.slane %v1724, 4
      %v1727 = vshll.u32 %v1444, 16
      %v1729 = vrot.slane %v1727, 5
      %v1730 = vor.u32 %v1726, %v1729
      %v1731 = vrot.slane %v1730, 4
      %v1733 = vshll.u32 %v1445, 16
      %v1735 = vrot.slane %v1733, 5
      %v1736 = vsel %vm411, %v1731, %v1735
      %v1737 = vshrl.u32 %v1445, 16
      %v1739 = vrot.slane %v1737, 4
      %v1740 = vor.u32 %v1739, %v1735
      %v1741 = vrot.slane %v1740, 4
      %v1743 = vshll.u32 %v1446, 16
      %v1745 = vrot.slane %v1743, 5
      %v1746 = vsel %vm411, %v1741, %v1745
      %v1748 = vshrl.u32 %v1447, 16
      %v1750 = vrot.slane %v1748, 4
      %v1751 = vshll.u32 %v1447, 16
      %v1753 = vrot.slane %v1751, 5
      %v1754 = vor.u32 %v1750, %v1753
      %v1755 = vrot.slane %v1754, 4
      %v1757 = vshll.u32 %v1448, 16
      %v1759 = vrot.slane %v1757, 5
      %v1760 = vsel %vm411, %v1755, %v1759
      %v1761 = vshrl.u32 %v1448, 16
      %v1763 = vrot.slane %v1761, 4
      %v1764 = vor.u32 %v1763, %v1759
      %v1765 = vrot.slane %v1764, 4
      %v1767 = vshll.u32 %v1449, 16
      %v1769 = vrot.slane %v1767, 5
      %v1770 = vsel %vm411, %v1765, %v1769
      %v1772 = vshrl.u32 %v1450, 16
      %v1774 = vrot.slane %v1772, 4
      %v1775 = vshll.u32 %v1450, 16
      %v1777 = vrot.slane %v1775, 5
      %v1778 = vor.u32 %v1774, %v1777
      %v1779 = vrot.slane %v1778, 4
      %v1781 = vshll.u32 %v1451, 16
      %v1783 = vrot.slane %v1781, 5
      %v1784 = vsel %vm411, %v1779, %v1783
      %v1785 = vshrl.u32 %v1451, 16
      %v1787 = vrot.slane %v1785, 4
      %v1788 = vor.u32 %v1787, %v1783
      %v1789 = vrot.slane %v1788, 4
      %v1791 = vshll.u32 %v1452, 16
      %v1793 = vrot.slane %v1791, 5
      %v1794 = vsel %vm411, %v1789, %v1793
      %v1796 = vshrl.u32 %v1453, 16
      %v1798 = vrot.slane %v1796, 4
      %v1799 = vshll.u32 %v1453, 16
      %v1801 = vrot.slane %v1799, 5
      %v1802 = vor.u32 %v1798, %v1801
      %v1803 = vrot.slane %v1802, 4
      %v1805 = vshll.u32 %v1454, 16
      %v1807 = vrot.slane %v1805, 5
      %v1808 = vsel %vm411, %v1803, %v1807
      %v1809 = vshrl.u32 %v1454, 16
      %v1811 = vrot.slane %v1809, 4
      %v1812 = vor.u32 %v1811, %v1807
      %v1813 = vrot.slane %v1812, 4
      %v1815 = vshll.u32 %v1455, 16
      %v1817 = vrot.slane %v1815, 5
      %v1818 = vsel %vm411, %v1813, %v1817
      %v1820 = vshrl.u32 %v1456, 16
      %v1822 = vrot.slane %v1820, 4
      %v1823 = vshll.u32 %v1456, 16
      %v1825 = vrot.slane %v1823, 5
      %v1826 = vor.u32 %v1822, %v1825
      %v1827 = vrot.slane %v1826, 4
      %v1829 = vshll.u32 %v1457, 16
      %v1831 = vrot.slane %v1829, 5
      %v1832 = vsel %vm411, %v1827, %v1831
      %v1833 = vshrl.u32 %v1457, 16
      %v1835 = vrot.slane %v1833, 4
      %v1836 = vor.u32 %v1835, %v1831
      %v1837 = vrot.slane %v1836, 4
      %v1839 = vshll.u32 %v1458, 16
      %v1841 = vrot.slane %v1839, 5
      %v1842 = vsel %vm411, %v1837, %v1841
      %v1843 = vunpack.c.l.b16 %v1472
      %v1844 = vunpack.c.l.b16 %v1482
      %v1845 = vunpack.c.l.b16 %v1496
      %v1846 = vunpack.c.l.b16 %v1506
      %v1847 = vunpack.c.l.b16 %v1520
      %v1848 = vunpack.c.l.b16 %v1530
      %v1849 = vunpack.c.l.b16 %v1544
      %v1850 = vunpack.c.l.b16 %v1554
      %v1851 = vunpack.c.l.b16 %v1568
      %v1852 = vunpack.c.l.b16 %v1578
      %v1853 = vunpack.c.l.b16 %v1592
      %v1854 = vunpack.c.l.b16 %v1602
      %v1855 = vunpack.c.l.b16 %v1616
      %v1856 = vunpack.c.l.b16 %v1626
      %v1857 = vunpack.c.l.b16 %v1640
      %v1858 = vunpack.c.l.b16 %v1650
      %v1859 = vunpack.c.l.b16 %v1664
      %v1860 = vunpack.c.l.b16 %v1674
      %v1861 = vunpack.c.l.b16 %v1688
      %v1862 = vunpack.c.l.b16 %v1698
      %v1863 = vunpack.c.l.b16 %v1712
      %v1864 = vunpack.c.l.b16 %v1722
      %v1865 = vunpack.c.l.b16 %v1736
      %v1866 = vunpack.c.l.b16 %v1746
      %v1867 = vunpack.c.l.b16 %v1760
      %v1868 = vunpack.c.l.b16 %v1770
      %v1869 = vunpack.c.l.b16 %v1784
      %v1870 = vunpack.c.l.b16 %v1794
      %v1871 = vunpack.c.l.b16 %v1808
      %v1872 = vunpack.c.l.b16 %v1818
      %v1873 = vunpack.c.l.b16 %v1832
      %v1874 = vunpack.c.l.b16 %v1842
      %v1875 = vpack.c.b16 %v1844, %v1843
      %v1876 = vpack.c.b16 %v1846, %v1845
      %v1877 = vpack.c.b16 %v1848, %v1847
      %v1878 = vpack.c.b16 %v1850, %v1849
      %v1879 = vpack.c.b16 %v1852, %v1851
      %v1880 = vpack.c.b16 %v1854, %v1853
      %v1881 = vpack.c.b16 %v1856, %v1855
      %v1882 = vpack.c.b16 %v1858, %v1857
      %v1883 = vpack.c.b16 %v1860, %v1859
      %v1884 = vpack.c.b16 %v1862, %v1861
      %v1885 = vpack.c.b16 %v1864, %v1863
      %v1886 = vpack.c.b16 %v1866, %v1865
      %v1887 = vpack.c.b16 %v1868, %v1867
      %v1888 = vpack.c.b16 %v1870, %v1869
      %v1889 = vpack.c.b16 %v1872, %v1871
      %v1890 = vpack.c.b16 %v1874, %v1873
      %1891 = vrot.lane.b32.xlu0 %v1875, 16
      %v1892 = vpop.permute.xlu0 %1891
      %1893 = vrot.lane.b32.xlu0 %v1876, 16
      %v1894 = vpop.permute.xlu0 %1893
      %1895 = vrot.lane.b32.xlu0 %v1877, 16
      %v1896 = vpop.permute.xlu0 %1895
      %1897 = vrot.lane.b32.xlu0 %v1878, 16
      %v1898 = vpop.permute.xlu0 %1897
      %1899 = vrot.lane.b32.xlu0 %v1879, 16
      %v1900 = vpop.permute.xlu0 %1899
      %1901 = vrot.lane.b32.xlu0 %v1880, 16
      %v1902 = vpop.permute.xlu0 %1901
      %1903 = vrot.lane.b32.xlu0 %v1881, 16
      %v1904 = vpop.permute.xlu0 %1903
      %1905 = vrot.lane.b32.xlu0 %v1882, 16
      %v1906 = vpop.permute.xlu0 %1905
      %1907 = vrot.lane.b32.xlu0 %v1883, 16
      %v1908 = vpop.permute.xlu0 %1907
      %1909 = vrot.lane.b32.xlu0 %v1884, 16
      %v1910 = vpop.permute.xlu0 %1909
      %1911 = vrot.lane.b32.xlu0 %v1885, 16
      %v1912 = vpop.permute.xlu0 %1911
      %1913 = vrot.lane.b32.xlu0 %v1886, 16
      %v1914 = vpop.permute.xlu0 %1913
      %1915 = vrot.lane.b32.xlu0 %v1887, 16
      %v1916 = vpop.permute.xlu0 %1915
      %1917 = vrot.lane.b32.xlu0 %v1888, 16
      %v1918 = vpop.permute.xlu0 %1917
      %1919 = vrot.lane.b32.xlu0 %v1889, 16
      %v1920 = vpop.permute.xlu0 %1919
      %1921 = vrot.lane.b32.xlu0 %v1890, 16
      %v1922 = vpop.permute.xlu0 %1921
      %vm1939 = vcmask 162944
      %1940 = vst.msk [vmem:[#allocation2] sm:$0xff] %vm1939, %v1892
      %1941 = vst.msk [vmem:[#allocation2 + $0x8] sm:$0xff] %vm1939, %v1894
      %1942 = vst.msk [vmem:[#allocation2 + $0x10] sm:$0xff] %vm1939, %v1896
      %1943 = vst.msk [vmem:[#allocation2 + $0x18] sm:$0xff] %vm1939, %v1898
      %1944 = vst.msk [vmem:[#allocation2 + $0x20] sm:$0xff] %vm1939, %v1900
      %1945 = vst.msk [vmem:[#allocation2 + $0x28] sm:$0xff] %vm1939, %v1902
      %1946 = vst.msk [vmem:[#allocation2 + $0x30] sm:$0xff] %vm1939, %v1904
      %1947 = vst.msk [vmem:[#allocation2 + $0x38] sm:$0xff] %vm1939, %v1906
      %1948 = vst.msk [vmem:[#allocation2 + $0x40] sm:$0xff] %vm1939, %v1908
      %1949 = vst.msk [vmem:[#allocation2 + $0x48] sm:$0xff] %vm1939, %v1910
      %1950 = vst.msk [vmem:[#allocation2 + $0x50] sm:$0xff] %vm1939, %v1912
      %1951 = vst.msk [vmem:[#allocation2 + $0x58] sm:$0xff] %vm1939, %v1914
      %1952 = vst.msk [vmem:[#allocation2 + $0x60] sm:$0xff] %vm1939, %v1916
      %1953 = vst.msk [vmem:[#allocation2 + $0x68] sm:$0xff] %vm1939, %v1918
      %1954 = vst.msk [vmem:[#allocation2 + $0x70] sm:$0xff] %vm1939, %v1920
      %1955 = vst.msk [vmem:[#allocation2 + $0x78] sm:$0xff] %vm1939, %v1922
      %v1956 = vld [vmem:[%s1233] sm:$0xe]
      %v1957 = vld [vmem:[%s1233 + $0x4] sm:$0xf]
      %v1958 = vld [vmem:[%s1233 + $0x8] sm:$0x1]
      %v1959 = vld [vmem:[%s1233 + $0xc] sm:$0xe]
      %v1960 = vld [vmem:[%s1233 + $0x10] sm:$0xf]
      %v1961 = vld [vmem:[%s1233 + $0x14] sm:$0x1]
      %v1962 = vld [vmem:[%s1233 + $0x18] sm:$0xe]
      %v1963 = vld [vmem:[%s1233 + $0x1c] sm:$0xf]
      %v1964 = vld [vmem:[%s1233 + $0x20] sm:$0x1]
      %v1965 = vld [vmem:[%s1233 + $0x24] sm:$0xe]
      %v1966 = vld [vmem:[%s1233 + $0x28] sm:$0xf]
      %v1967 = vld [vmem:[%s1233 + $0x2c] sm:$0x1]
      %v1968 = vld [vmem:[%s1233 + $0x30] sm:$0xe]
      %v1969 = vld [vmem:[%s1233 + $0x34] sm:$0xf]
      %v1970 = vld [vmem:[%s1233 + $0x38] sm:$0x1]
      %v1971 = vld [vmem:[%s1233 + $0x3c] sm:$0xe]
      %v1972 = vld [vmem:[%s1233 + $0x40] sm:$0xf]
      %v1973 = vld [vmem:[%s1233 + $0x44] sm:$0x1]
      %v1974 = vld [vmem:[%s1233 + $0x48] sm:$0xe]
      %v1975 = vld [vmem:[%s1233 + $0x4c] sm:$0xf]
      %v1976 = vld [vmem:[%s1233 + $0x50] sm:$0x1]
      %v1977 = vld [vmem:[%s1233 + $0x54] sm:$0xe]
      %v1978 = vld [vmem:[%s1233 + $0x58] sm:$0xf]
      %v1979 = vld [vmem:[%s1233 + $0x5c] sm:$0x1]
      %v1980 = vld [vmem:[%s1233 + $0x60] sm:$0xe]
      %v1981 = vld [vmem:[%s1233 + $0x64] sm:$0xf]
      %v1982 = vld [vmem:[%s1233 + $0x68] sm:$0x1]
      %v1983 = vld [vmem:[%s1233 + $0x6c] sm:$0xe]
      %v1984 = vld [vmem:[%s1233 + $0x70] sm:$0xf]
      %v1985 = vld [vmem:[%s1233 + $0x74] sm:$0x1]
      %v1986 = vld [vmem:[%s1233 + $0x78] sm:$0xe]
      %v1987 = vld [vmem:[%s1233 + $0x7c] sm:$0xf]
      %v1988 = vld [vmem:[%s1233 + $0x80] sm:$0x1]
      %v1989 = vld [vmem:[%s1233 + $0x84] sm:$0xe]
      %v1990 = vld [vmem:[%s1233 + $0x88] sm:$0xf]
      %v1991 = vld [vmem:[%s1233 + $0x8c] sm:$0x1]
      %v1992 = vld [vmem:[%s1233 + $0x90] sm:$0xe]
      %v1993 = vld [vmem:[%s1233 + $0x94] sm:$0xf]
      %v1994 = vld [vmem:[%s1233 + $0x98] sm:$0x1]
      %v1995 = vld [vmem:[%s1233 + $0x9c] sm:$0xe]
      %v1996 = vld [vmem:[%s1233 + $0xa0] sm:$0xf]
      %v1997 = vld [vmem:[%s1233 + $0xa4] sm:$0x1]
      %v1998 = vld [vmem:[%s1233 + $0xa8] sm:$0xe]
      %v1999 = vld [vmem:[%s1233 + $0xac] sm:$0xf]
      %v2000 = vld [vmem:[%s1233 + $0xb0] sm:$0x1]
      %v2001 = vld [vmem:[%s1233 + $0xb4] sm:$0xe]
      %v2002 = vld [vmem:[%s1233 + $0xb8] sm:$0xf]
      %v2003 = vld [vmem:[%s1233 + $0xbc] sm:$0x1]
      %v2052 = vrot.slane %v1956, 5
      %v2053 = vrot.slane %v2052, 4
      %v2054 = vrot.slane %v1957, 5
      %v2055 = vsel %vm1007, %v2053, %v2054
      %v2056 = vrot.slane %v2054, 4
      %v2057 = vrot.slane %v1958, 5
      %v2058 = vsel %vm1007, %v2056, %v2057
      %v2059 = vrot.slane %v1959, 5
      %v2060 = vrot.slane %v2059, 4
      %v2061 = vrot.slane %v1960, 5
      %v2062 = vsel %vm1007, %v2060, %v2061
      %v2063 = vrot.slane %v2061, 4
      %v2064 = vrot.slane %v1961, 5
      %v2065 = vsel %vm1007, %v2063, %v2064
      %v2066 = vrot.slane %v1962, 5
      %v2067 = vrot.slane %v2066, 4
      %v2068 = vrot.slane %v1963, 5
      %v2069 = vsel %vm1007, %v2067, %v2068
      %v2070 = vrot.slane %v2068, 4
      %v2071 = vrot.slane %v1964, 5
      %v2072 = vsel %vm1007, %v2070, %v2071
      %v2073 = vrot.slane %v1965, 5
      %v2074 = vrot.slane %v2073, 4
      %v2075 = vrot.slane %v1966, 5
      %v2076 = vsel %vm1007, %v2074, %v2075
      %v2077 = vrot.slane %v2075, 4
      %v2078 = vrot.slane %v1967, 5
      %v2079 = vsel %vm1007, %v2077, %v2078
      %v2080 = vrot.slane %v1968, 5
      %v2081 = vrot.slane %v2080, 4
      %v2082 = vrot.slane %v1969, 5
      %v2083 = vsel %vm1007, %v2081, %v2082
      %v2084 = vrot.slane %v2082, 4
      %v2085 = vrot.slane %v1970, 5
      %v2086 = vsel %vm1007, %v2084, %v2085
      %v2087 = vrot.slane %v1971, 5
      %v2088 = vrot.slane %v2087, 4
      %v2089 = vrot.slane %v1972, 5
      %v2090 = vsel %vm1007, %v2088, %v2089
      %v2091 = vrot.slane %v2089, 4
      %v2092 = vrot.slane %v1973, 5
      %v2093 = vsel %vm1007, %v2091, %v2092
      %v2094 = vrot.slane %v1974, 5
      %v2095 = vrot.slane %v2094, 4
      %v2096 = vrot.slane %v1975, 5
      %v2097 = vsel %vm1007, %v2095, %v2096
      %v2098 = vrot.slane %v2096, 4
      %v2099 = vrot.slane %v1976, 5
      %v2100 = vsel %vm1007, %v2098, %v2099
      %v2101 = vrot.slane %v1977, 5
      %v2102 = vrot.slane %v2101, 4
      %v2103 = vrot.slane %v1978, 5
      %v2104 = vsel %vm1007, %v2102, %v2103
      %v2105 = vrot.slane %v2103, 4
      %v2106 = vrot.slane %v1979, 5
      %v2107 = vsel %vm1007, %v2105, %v2106
      %v2108 = vrot.slane %v1980, 5
      %v2109 = vrot.slane %v2108, 4
      %v2110 = vrot.slane %v1981, 5
      %v2111 = vsel %vm1007, %v2109, %v2110
      %v2112 = vrot.slane %v2110, 4
      %v2113 = vrot.slane %v1982, 5
      %v2114 = vsel %vm1007, %v2112, %v2113
      %v2115 = vrot.slane %v1983, 5
      %v2116 = vrot.slane %v2115, 4
      %v2117 = vrot.slane %v1984, 5
      %v2118 = vsel %vm1007, %v2116, %v2117
      %v2119 = vrot.slane %v2117, 4
      %v2120 = vrot.slane %v1985, 5
      %v2121 = vsel %vm1007, %v2119, %v2120
      %v2122 = vrot.slane %v1986, 5
      %v2123 = vrot.slane %v2122, 4
      %v2124 = vrot.slane %v1987, 5
      %v2125 = vsel %vm1007, %v2123, %v2124
      %v2126 = vrot.slane %v2124, 4
      %v2127 = vrot.slane %v1988, 5
      %v2128 = vsel %vm1007, %v2126, %v2127
      %v2129 = vrot.slane %v1989, 5
      %v2130 = vrot.slane %v2129, 4
      %v2131 = vrot.slane %v1990, 5
      %v2132 = vsel %vm1007, %v2130, %v2131
      %v2133 = vrot.slane %v2131, 4
      %v2134 = vrot.slane %v1991, 5
      %v2135 = vsel %vm1007, %v2133, %v2134
      %v2136 = vrot.slane %v1992, 5
      %v2137 = vrot.slane %v2136, 4
      %v2138 = vrot.slane %v1993, 5
      %v2139 = vsel %vm1007, %v2137, %v2138
      %v2140 = vrot.slane %v2138, 4
      %v2141 = vrot.slane %v1994, 5
      %v2142 = vsel %vm1007, %v2140, %v2141
      %v2143 = vrot.slane %v1995, 5
      %v2144 = vrot.slane %v2143, 4
      %v2145 = vrot.slane %v1996, 5
      %v2146 = vsel %vm1007, %v2144, %v2145
      %v2147 = vrot.slane %v2145, 4
      %v2148 = vrot.slane %v1997, 5
      %v2149 = vsel %vm1007, %v2147, %v2148
      %v2150 = vrot.slane %v1998, 5
      %v2151 = vrot.slane %v2150, 4
      %v2152 = vrot.slane %v1999, 5
      %v2153 = vsel %vm1007, %v2151, %v2152
      %v2154 = vrot.slane %v2152, 4
      %v2155 = vrot.slane %v2000, 5
      %v2156 = vsel %vm1007, %v2154, %v2155
      %v2157 = vrot.slane %v2001, 5
      %v2158 = vrot.slane %v2157, 4
      %v2159 = vrot.slane %v2002, 5
      %v2160 = vsel %vm1007, %v2158, %v2159
      %v2161 = vrot.slane %v2159, 4
      %v2162 = vrot.slane %v2003, 5
      %v2163 = vsel %vm1007, %v2161, %v2162
      %v2164 = vunpack.c.l.b16 %v2055
      %v2165 = vunpack.c.l.b16 %v2058
      %v2166 = vunpack.c.l.b16 %v2062
      %v2167 = vunpack.c.l.b16 %v2065
      %v2168 = vunpack.c.l.b16 %v2069
      %v2169 = vunpack.c.l.b16 %v2072
      %v2170 = vunpack.c.l.b16 %v2076
      %v2171 = vunpack.c.l.b16 %v2079
      %v2172 = vunpack.c.l.b16 %v2083
      %v2173 = vunpack.c.l.b16 %v2086
      %v2174 = vunpack.c.l.b16 %v2090
      %v2175 = vunpack.c.l.b16 %v2093
      %v2176 = vunpack.c.l.b16 %v2097
      %v2177 = vunpack.c.l.b16 %v2100
      %v2178 = vunpack.c.l.b16 %v2104
      %v2179 = vunpack.c.l.b16 %v2107
      %v2180 = vunpack.c.l.b16 %v2111
      %v2181 = vunpack.c.l.b16 %v2114
      %v2182 = vunpack.c.l.b16 %v2118
      %v2183 = vunpack.c.l.b16 %v2121
      %v2184 = vunpack.c.l.b16 %v2125
      %v2185 = vunpack.c.l.b16 %v2128
      %v2186 = vunpack.c.l.b16 %v2132
      %v2187 = vunpack.c.l.b16 %v2135
      %v2188 = vunpack.c.l.b16 %v2139
      %v2189 = vunpack.c.l.b16 %v2142
      %v2190 = vunpack.c.l.b16 %v2146
      %v2191 = vunpack.c.l.b16 %v2149
      %v2192 = vunpack.c.l.b16 %v2153
      %v2193 = vunpack.c.l.b16 %v2156
      %v2194 = vunpack.c.l.b16 %v2160
      %v2195 = vunpack.c.l.b16 %v2163
      %v2196 = vpack.c.b16 %v2165, %v2164
      %v2197 = vpack.c.b16 %v2167, %v2166
      %v2198 = vpack.c.b16 %v2169, %v2168
      %v2199 = vpack.c.b16 %v2171, %v2170
      %v2200 = vpack.c.b16 %v2173, %v2172
      %v2201 = vpack.c.b16 %v2175, %v2174
      %v2202 = vpack.c.b16 %v2177, %v2176
      %v2203 = vpack.c.b16 %v2179, %v2178
      %v2204 = vpack.c.b16 %v2181, %v2180
      %v2205 = vpack.c.b16 %v2183, %v2182
      %v2206 = vpack.c.b16 %v2185, %v2184
      %v2207 = vpack.c.b16 %v2187, %v2186
      %v2208 = vpack.c.b16 %v2189, %v2188
      %v2209 = vpack.c.b16 %v2191, %v2190
      %v2210 = vpack.c.b16 %v2193, %v2192
      %v2211 = vpack.c.b16 %v2195, %v2194
      %2212 = vrot.lane.b32.xlu0 %v2196, 20
      %v2213 = vpop.permute.xlu0 %2212
      %2214 = vrot.lane.b32.xlu0 %v2197, 20
      %v2215 = vpop.permute.xlu0 %2214
      %2216 = vrot.lane.b32.xlu0 %v2198, 20
      %v2217 = vpop.permute.xlu0 %2216
      %2218 = vrot.lane.b32.xlu0 %v2199, 20
      %v2219 = vpop.permute.xlu0 %2218
      %2220 = vrot.lane.b32.xlu0 %v2200, 20
      %v2221 = vpop.permute.xlu0 %2220
      %2222 = vrot.lane.b32.xlu0 %v2201, 20
      %v2223 = vpop.permute.xlu0 %2222
      %2224 = vrot.lane.b32.xlu0 %v2202, 20
      %v2225 = vpop.permute.xlu0 %2224
      %2226 = vrot.lane.b32.xlu0 %v2203, 20
      %v2227 = vpop.permute.xlu0 %2226
      %2228 = vrot.lane.b32.xlu0 %v2204, 20
      %v2229 = vpop.permute.xlu0 %2228
      %2230 = vrot.lane.b32.xlu0 %v2205, 20
      %v2231 = vpop.permute.xlu0 %2230
      %2232 = vrot.lane.b32.xlu0 %v2206, 20
      %v2233 = vpop.permute.xlu0 %2232
      %2234 = vrot.lane.b32.xlu0 %v2207, 20
      %v2235 = vpop.permute.xlu0 %2234
      %2236 = vrot.lane.b32.xlu0 %v2208, 20
      %v2237 = vpop.permute.xlu0 %2236
      %2238 = vrot.lane.b32.xlu0 %v2209, 20
      %v2239 = vpop.permute.xlu0 %2238
      %2240 = vrot.lane.b32.xlu0 %v2210, 20
      %v2241 = vpop.permute.xlu0 %2240
      %2242 = vrot.lane.b32.xlu0 %v2211, 20
      %v2243 = vpop.permute.xlu0 %2242
      %vm2260 = vcmask 195744
      %2261 = vst.msk [vmem:[#allocation2] sm:$0xff] %vm2260, %v2213
      %2262 = vst.msk [vmem:[#allocation2 + $0x8] sm:$0xff] %vm2260, %v2215
      %2263 = vst.msk [vmem:[#allocation2 + $0x10] sm:$0xff] %vm2260, %v2217
      %2264 = vst.msk [vmem:[#allocation2 + $0x18] sm:$0xff] %vm2260, %v2219
      %2265 = vst.msk [vmem:[#allocation2 + $0x20] sm:$0xff] %vm2260, %v2221
      %2266 = vst.msk [vmem:[#allocation2 + $0x28] sm:$0xff] %vm2260, %v2223
      %2267 = vst.msk [vmem:[#allocation2 + $0x30] sm:$0xff] %vm2260, %v2225
      %2268 = vst.msk [vmem:[#allocation2 + $0x38] sm:$0xff] %vm2260, %v2227
      %2269 = vst.msk [vmem:[#allocation2 + $0x40] sm:$0xff] %vm2260, %v2229
      %2270 = vst.msk [vmem:[#allocation2 + $0x48] sm:$0xff] %vm2260, %v2231
      %2271 = vst.msk [vmem:[#allocation2 + $0x50] sm:$0xff] %vm2260, %v2233
      %2272 = vst.msk [vmem:[#allocation2 + $0x58] sm:$0xff] %vm2260, %v2235
      %2273 = vst.msk [vmem:[#allocation2 + $0x60] sm:$0xff] %vm2260, %v2237
      %2274 = vst.msk [vmem:[#allocation2 + $0x68] sm:$0xff] %vm2260, %v2239
      %2275 = vst.msk [vmem:[#allocation2 + $0x70] sm:$0xff] %vm2260, %v2241
      %2276 = vst.msk [vmem:[#allocation2 + $0x78] sm:$0xff] %vm2260, %v2243
      %s2277 = scalar_lea.vmem %s203, 24
      %v2278 = vld [vmem:[%s2277] sm:$0xf]
      %v2279 = vld [vmem:[%s2277 + $0x4] sm:$0xf]
      %v2280 = vld [vmem:[%s2277 + $0xc] sm:$0xf]
      %v2281 = vld [vmem:[%s2277 + $0x10] sm:$0xf]
      %v2282 = vld [vmem:[%s2277 + $0x18] sm:$0xf]
      %v2283 = vld [vmem:[%s2277 + $0x1c] sm:$0xf]
      %v2284 = vld [vmem:[%s2277 + $0x24] sm:$0xf]
      %v2285 = vld [vmem:[%s2277 + $0x28] sm:$0xf]
      %v2286 = vld [vmem:[%s2277 + $0x30] sm:$0xf]
      %v2287 = vld [vmem:[%s2277 + $0x34] sm:$0xf]
      %v2288 = vld [vmem:[%s2277 + $0x3c] sm:$0xf]
      %v2289 = vld [vmem:[%s2277 + $0x40] sm:$0xf]
      %v2290 = vld [vmem:[%s2277 + $0x48] sm:$0xf]
      %v2291 = vld [vmem:[%s2277 + $0x4c] sm:$0xf]
      %v2292 = vld [vmem:[%s2277 + $0x54] sm:$0xf]
      %v2293 = vld [vmem:[%s2277 + $0x58] sm:$0xf]
      %v2294 = vld [vmem:[%s2277 + $0x60] sm:$0xf]
      %v2295 = vld [vmem:[%s2277 + $0x64] sm:$0xf]
      %v2296 = vld [vmem:[%s2277 + $0x6c] sm:$0xf]
      %v2297 = vld [vmem:[%s2277 + $0x70] sm:$0xf]
      %v2298 = vld [vmem:[%s2277 + $0x78] sm:$0xf]
      %v2299 = vld [vmem:[%s2277 + $0x7c] sm:$0xf]
      %v2300 = vld [vmem:[%s2277 + $0x84] sm:$0xf]
      %v2301 = vld [vmem:[%s2277 + $0x88] sm:$0xf]
      %v2302 = vld [vmem:[%s2277 + $0x90] sm:$0xf]
      %v2303 = vld [vmem:[%s2277 + $0x94] sm:$0xf]
      %v2304 = vld [vmem:[%s2277 + $0x9c] sm:$0xf]
      %v2305 = vld [vmem:[%s2277 + $0xa0] sm:$0xf]
      %v2306 = vld [vmem:[%s2277 + $0xa8] sm:$0xf]
      %v2307 = vld [vmem:[%s2277 + $0xac] sm:$0xf]
      %v2308 = vld [vmem:[%s2277 + $0xb4] sm:$0xf]
      %v2309 = vld [vmem:[%s2277 + $0xb8] sm:$0xf]
      %v2342 = vunpack.c.l.b16 %v2278
      %v2343 = vunpack.c.l.b16 %v2279
      %v2344 = vunpack.c.l.b16 %v2280
      %v2345 = vunpack.c.l.b16 %v2281
      %v2346 = vunpack.c.l.b16 %v2282
      %v2347 = vunpack.c.l.b16 %v2283
      %v2348 = vunpack.c.l.b16 %v2284
      %v2349 = vunpack.c.l.b16 %v2285
      %v2350 = vunpack.c.l.b16 %v2286
      %v2351 = vunpack.c.l.b16 %v2287
      %v2352 = vunpack.c.l.b16 %v2288
      %v2353 = vunpack.c.l.b16 %v2289
      %v2354 = vunpack.c.l.b16 %v2290
      %v2355 = vunpack.c.l.b16 %v2291
      %v2356 = vunpack.c.l.b16 %v2292
      %v2357 = vunpack.c.l.b16 %v2293
      %v2358 = vunpack.c.l.b16 %v2294
      %v2359 = vunpack.c.l.b16 %v2295
      %v2360 = vunpack.c.l.b16 %v2296
      %v2361 = vunpack.c.l.b16 %v2297
      %v2362 = vunpack.c.l.b16 %v2298
      %v2363 = vunpack.c.l.b16 %v2299
      %v2364 = vunpack.c.l.b16 %v2300
      %v2365 = vunpack.c.l.b16 %v2301
      %v2366 = vunpack.c.l.b16 %v2302
      %v2367 = vunpack.c.l.b16 %v2303
      %v2368 = vunpack.c.l.b16 %v2304
      %v2369 = vunpack.c.l.b16 %v2305
      %v2370 = vunpack.c.l.b16 %v2306
      %v2371 = vunpack.c.l.b16 %v2307
      %v2372 = vunpack.c.l.b16 %v2308
      %v2373 = vunpack.c.l.b16 %v2309
      %v2374 = vpack.c.b16 %v2343, %v2342
      %v2375 = vpack.c.b16 %v2345, %v2344
      %v2376 = vpack.c.b16 %v2347, %v2346
      %v2377 = vpack.c.b16 %v2349, %v2348
      %v2378 = vpack.c.b16 %v2351, %v2350
      %v2379 = vpack.c.b16 %v2353, %v2352
      %v2380 = vpack.c.b16 %v2355, %v2354
      %v2381 = vpack.c.b16 %v2357, %v2356
      %v2382 = vpack.c.b16 %v2359, %v2358
      %v2383 = vpack.c.b16 %v2361, %v2360
      %v2384 = vpack.c.b16 %v2363, %v2362
      %v2385 = vpack.c.b16 %v2365, %v2364
      %v2386 = vpack.c.b16 %v2367, %v2366
      %v2387 = vpack.c.b16 %v2369, %v2368
      %v2388 = vpack.c.b16 %v2371, %v2370
      %v2389 = vpack.c.b16 %v2373, %v2372
      %2390 = vrot.lane.b32.xlu0 %v2374, 24
      %v2391 = vpop.permute.xlu0 %2390
      %2392 = vrot.lane.b32.xlu0 %v2375, 24
      %v2393 = vpop.permute.xlu0 %2392
      %2394 = vrot.lane.b32.xlu0 %v2376, 24
      %v2395 = vpop.permute.xlu0 %2394
      %2396 = vrot.lane.b32.xlu0 %v2377, 24
      %v2397 = vpop.permute.xlu0 %2396
      %2398 = vrot.lane.b32.xlu0 %v2378, 24
      %v2399 = vpop.permute.xlu0 %2398
      %2400 = vrot.lane.b32.xlu0 %v2379, 24
      %v2401 = vpop.permute.xlu0 %2400
      %2402 = vrot.lane.b32.xlu0 %v2380, 24
      %v2403 = vpop.permute.xlu0 %2402
      %2404 = vrot.lane.b32.xlu0 %v2381, 24
      %v2405 = vpop.permute.xlu0 %2404
      %2406 = vrot.lane.b32.xlu0 %v2382, 24
      %v2407 = vpop.permute.xlu0 %2406
      %2408 = vrot.lane.b32.xlu0 %v2383, 24
      %v2409 = vpop.permute.xlu0 %2408
      %2410 = vrot.lane.b32.xlu0 %v2384, 24
      %v2411 = vpop.permute.xlu0 %2410
      %2412 = vrot.lane.b32.xlu0 %v2385, 24
      %v2413 = vpop.permute.xlu0 %2412
      %2414 = vrot.lane.b32.xlu0 %v2386, 24
      %v2415 = vpop.permute.xlu0 %2414
      %2416 = vrot.lane.b32.xlu0 %v2387, 24
      %v2417 = vpop.permute.xlu0 %2416
      %2418 = vrot.lane.b32.xlu0 %v2388, 24
      %v2419 = vpop.permute.xlu0 %2418
      %2420 = vrot.lane.b32.xlu0 %v2389, 24
      %v2421 = vpop.permute.xlu0 %2420
      %vm2438 = vcmask 228544
      %2439 = vst.msk [vmem:[#allocation2] sm:$0xff] %vm2438, %v2391
      %2440 = vst.msk [vmem:[#allocation2 + $0x8] sm:$0xff] %vm2438, %v2393
      %2441 = vst.msk [vmem:[#allocation2 + $0x10] sm:$0xff] %vm2438, %v2395
      %2442 = vst.msk [vmem:[#allocation2 + $0x18] sm:$0xff] %vm2438, %v2397
      %2443 = vst.msk [vmem:[#allocation2 + $0x20] sm:$0xff] %vm2438, %v2399
      %2444 = vst.msk [vmem:[#allocation2 + $0x28] sm:$0xff] %vm2438, %v2401
      %2445 = vst.msk [vmem:[#allocation2 + $0x30] sm:$0xff] %vm2438, %v2403
      %2446 = vst.msk [vmem:[#allocation2 + $0x38] sm:$0xff] %vm2438, %v2405
      %2447 = vst.msk [vmem:[#allocation2 + $0x40] sm:$0xff] %vm2438, %v2407
      %2448 = vst.msk [vmem:[#allocation2 + $0x48] sm:$0xff] %vm2438, %v2409
      %2449 = vst.msk [vmem:[#allocation2 + $0x50] sm:$0xff] %vm2438, %v2411
      %2450 = vst.msk [vmem:[#allocation2 + $0x58] sm:$0xff] %vm2438, %v2413
      %2451 = vst.msk [vmem:[#allocation2 + $0x60] sm:$0xff] %vm2438, %v2415
      %2452 = vst.msk [vmem:[#allocation2 + $0x68] sm:$0xff] %vm2438, %v2417
      %2453 = vst.msk [vmem:[#allocation2 + $0x70] sm:$0xff] %vm2438, %v2419
      %2454 = vst.msk [vmem:[#allocation2 + $0x78] sm:$0xff] %vm2438, %v2421
      %v2455 = vld [vmem:[%s2277] sm:$0xf]
      %v2456 = vld [vmem:[%s2277 + $0x4] sm:$0xf]
      %v2457 = vld [vmem:[%s2277 + $0x8] sm:$0x1]
      %v2458 = vld [vmem:[%s2277 + $0xc] sm:$0xf]
      %v2459 = vld [vmem:[%s2277 + $0x10] sm:$0xf]
      %v2460 = vld [vmem:[%s2277 + $0x14] sm:$0x1]
      %v2461 = vld [vmem:[%s2277 + $0x18] sm:$0xf]
      %v2462 = vld [vmem:[%s2277 + $0x1c] sm:$0xf]
      %v2463 = vld [vmem:[%s2277 + $0x20] sm:$0x1]
      %v2464 = vld [vmem:[%s2277 + $0x24] sm:$0xf]
      %v2465 = vld [vmem:[%s2277 + $0x28] sm:$0xf]
      %v2466 = vld [vmem:[%s2277 + $0x2c] sm:$0x1]
      %v2467 = vld [vmem:[%s2277 + $0x30] sm:$0xf]
      %v2468 = vld [vmem:[%s2277 + $0x34] sm:$0xf]
      %v2469 = vld [vmem:[%s2277 + $0x38] sm:$0x1]
      %v2470 = vld [vmem:[%s2277 + $0x3c] sm:$0xf]
      %v2471 = vld [vmem:[%s2277 + $0x40] sm:$0xf]
      %v2472 = vld [vmem:[%s2277 + $0x44] sm:$0x1]
      %v2473 = vld [vmem:[%s2277 + $0x48] sm:$0xf]
      %v2474 = vld [vmem:[%s2277 + $0x4c] sm:$0xf]
      %v2475 = vld [vmem:[%s2277 + $0x50] sm:$0x1]
      %v2476 = vld [vmem:[%s2277 + $0x54] sm:$0xf]
      %v2477 = vld [vmem:[%s2277 + $0x58] sm:$0xf]
      %v2478 = vld [vmem:[%s2277 + $0x5c] sm:$0x1]
      %v2479 = vld [vmem:[%s2277 + $0x60] sm:$0xf]
      %v2480 = vld [vmem:[%s2277 + $0x64] sm:$0xf]
      %v2481 = vld [vmem:[%s2277 + $0x68] sm:$0x1]
      %v2482 = vld [vmem:[%s2277 + $0x6c] sm:$0xf]
      %v2483 = vld [vmem:[%s2277 + $0x70] sm:$0xf]
      %v2484 = vld [vmem:[%s2277 + $0x74] sm:$0x1]
      %v2485 = vld [vmem:[%s2277 + $0x78] sm:$0xf]
      %v2486 = vld [vmem:[%s2277 + $0x7c] sm:$0xf]
      %v2487 = vld [vmem:[%s2277 + $0x80] sm:$0x1]
      %v2488 = vld [vmem:[%s2277 + $0x84] sm:$0xf]
      %v2489 = vld [vmem:[%s2277 + $0x88] sm:$0xf]
      %v2490 = vld [vmem:[%s2277 + $0x8c] sm:$0x1]
      %v2491 = vld [vmem:[%s2277 + $0x90] sm:$0xf]
      %v2492 = vld [vmem:[%s2277 + $0x94] sm:$0xf]
      %v2493 = vld [vmem:[%s2277 + $0x98] sm:$0x1]
      %v2494 = vld [vmem:[%s2277 + $0x9c] sm:$0xf]
      %v2495 = vld [vmem:[%s2277 + $0xa0] sm:$0xf]
      %v2496 = vld [vmem:[%s2277 + $0xa4] sm:$0x1]
      %v2497 = vld [vmem:[%s2277 + $0xa8] sm:$0xf]
      %v2498 = vld [vmem:[%s2277 + $0xac] sm:$0xf]
      %v2499 = vld [vmem:[%s2277 + $0xb0] sm:$0x1]
      %v2500 = vld [vmem:[%s2277 + $0xb4] sm:$0xf]
      %v2501 = vld [vmem:[%s2277 + $0xb8] sm:$0xf]
      %v2502 = vld [vmem:[%s2277 + $0xbc] sm:$0x1]
      %v2504 = vshrl.u32 %v2455, 16
      %v2506 = vrot.slane %v2504, 4
      %v2507 = vshll.u32 %v2455, 16
      %v2509 = vrot.slane %v2507, 5
      %v2510 = vor.u32 %v2506, %v2509
      %v2511 = vrot.slane %v2510, 4
      %v2513 = vshll.u32 %v2456, 16
      %v2515 = vrot.slane %v2513, 5
      %v2516 = vsel %vm411, %v2511, %v2515
      %v2517 = vshrl.u32 %v2456, 16
      %v2519 = vrot.slane %v2517, 4
      %v2520 = vor.u32 %v2519, %v2515
      %v2521 = vrot.slane %v2520, 4
      %v2523 = vshll.u32 %v2457, 16
      %v2525 = vrot.slane %v2523, 5
      %v2526 = vsel %vm411, %v2521, %v2525
      %v2528 = vshrl.u32 %v2458, 16
      %v2530 = vrot.slane %v2528, 4
      %v2531 = vshll.u32 %v2458, 16
      %v2533 = vrot.slane %v2531, 5
      %v2534 = vor.u32 %v2530, %v2533
      %v2535 = vrot.slane %v2534, 4
      %v2537 = vshll.u32 %v2459, 16
      %v2539 = vrot.slane %v2537, 5
      %v2540 = vsel %vm411, %v2535, %v2539
      %v2541 = vshrl.u32 %v2459, 16
      %v2543 = vrot.slane %v2541, 4
      %v2544 = vor.u32 %v2543, %v2539
      %v2545 = vrot.slane %v2544, 4
      %v2547 = vshll.u32 %v2460, 16
      %v2549 = vrot.slane %v2547, 5
      %v2550 = vsel %vm411, %v2545, %v2549
      %v2552 = vshrl.u32 %v2461, 16
      %v2554 = vrot.slane %v2552, 4
      %v2555 = vshll.u32 %v2461, 16
      %v2557 = vrot.slane %v2555, 5
      %v2558 = vor.u32 %v2554, %v2557
      %v2559 = vrot.slane %v2558, 4
      %v2561 = vshll.u32 %v2462, 16
      %v2563 = vrot.slane %v2561, 5
      %v2564 = vsel %vm411, %v2559, %v2563
      %v2565 = vshrl.u32 %v2462, 16
      %v2567 = vrot.slane %v2565, 4
      %v2568 = vor.u32 %v2567, %v2563
      %v2569 = vrot.slane %v2568, 4
      %v2571 = vshll.u32 %v2463, 16
      %v2573 = vrot.slane %v2571, 5
      %v2574 = vsel %vm411, %v2569, %v2573
      %v2576 = vshrl.u32 %v2464, 16
      %v2578 = vrot.slane %v2576, 4
      %v2579 = vshll.u32 %v2464, 16
      %v2581 = vrot.slane %v2579, 5
      %v2582 = vor.u32 %v2578, %v2581
      %v2583 = vrot.slane %v2582, 4
      %v2585 = vshll.u32 %v2465, 16
      %v2587 = vrot.slane %v2585, 5
      %v2588 = vsel %vm411, %v2583, %v2587
      %v2589 = vshrl.u32 %v2465, 16
      %v2591 = vrot.slane %v2589, 4
      %v2592 = vor.u32 %v2591, %v2587
      %v2593 = vrot.slane %v2592, 4
      %v2595 = vshll.u32 %v2466, 16
      %v2597 = vrot.slane %v2595, 5
      %v2598 = vsel %vm411, %v2593, %v2597
      %v2600 = vshrl.u32 %v2467, 16
      %v2602 = vrot.slane %v2600, 4
      %v2603 = vshll.u32 %v2467, 16
      %v2605 = vrot.slane %v2603, 5
      %v2606 = vor.u32 %v2602, %v2605
      %v2607 = vrot.slane %v2606, 4
      %v2609 = vshll.u32 %v2468, 16
      %v2611 = vrot.slane %v2609, 5
      %v2612 = vsel %vm411, %v2607, %v2611
      %v2613 = vshrl.u32 %v2468, 16
      %v2615 = vrot.slane %v2613, 4
      %v2616 = vor.u32 %v2615, %v2611
      %v2617 = vrot.slane %v2616, 4
      %v2619 = vshll.u32 %v2469, 16
      %v2621 = vrot.slane %v2619, 5
      %v2622 = vsel %vm411, %v2617, %v2621
      %v2624 = vshrl.u32 %v2470, 16
      %v2626 = vrot.slane %v2624, 4
      %v2627 = vshll.u32 %v2470, 16
      %v2629 = vrot.slane %v2627, 5
      %v2630 = vor.u32 %v2626, %v2629
      %v2631 = vrot.slane %v2630, 4
      %v2633 = vshll.u32 %v2471, 16
      %v2635 = vrot.slane %v2633, 5
      %v2636 = vsel %vm411, %v2631, %v2635
      %v2637 = vshrl.u32 %v2471, 16
      %v2639 = vrot.slane %v2637, 4
      %v2640 = vor.u32 %v2639, %v2635
      %v2641 = vrot.slane %v2640, 4
      %v2643 = vshll.u32 %v2472, 16
      %v2645 = vrot.slane %v2643, 5
      %v2646 = vsel %vm411, %v2641, %v2645
      %v2648 = vshrl.u32 %v2473, 16
      %v2650 = vrot.slane %v2648, 4
      %v2651 = vshll.u32 %v2473, 16
      %v2653 = vrot.slane %v2651, 5
      %v2654 = vor.u32 %v2650, %v2653
      %v2655 = vrot.slane %v2654, 4
      %v2657 = vshll.u32 %v2474, 16
      %v2659 = vrot.slane %v2657, 5
      %v2660 = vsel %vm411, %v2655, %v2659
      %v2661 = vshrl.u32 %v2474, 16
      %v2663 = vrot.slane %v2661, 4
      %v2664 = vor.u32 %v2663, %v2659
      %v2665 = vrot.slane %v2664, 4
      %v2667 = vshll.u32 %v2475, 16
      %v2669 = vrot.slane %v2667, 5
      %v2670 = vsel %vm411, %v2665, %v2669
      %v2672 = vshrl.u32 %v2476, 16
      %v2674 = vrot.slane %v2672, 4
      %v2675 = vshll.u32 %v2476, 16
      %v2677 = vrot.slane %v2675, 5
      %v2678 = vor.u32 %v2674, %v2677
      %v2679 = vrot.slane %v2678, 4
      %v2681 = vshll.u32 %v2477, 16
      %v2683 = vrot.slane %v2681, 5
      %v2684 = vsel %vm411, %v2679, %v2683
      %v2685 = vshrl.u32 %v2477, 16
      %v2687 = vrot.slane %v2685, 4
      %v2688 = vor.u32 %v2687, %v2683
      %v2689 = vrot.slane %v2688, 4
      %v2691 = vshll.u32 %v2478, 16
      %v2693 = vrot.slane %v2691, 5
      %v2694 = vsel %vm411, %v2689, %v2693
      %v2696 = vshrl.u32 %v2479, 16
      %v2698 = vrot.slane %v2696, 4
      %v2699 = vshll.u32 %v2479, 16
      %v2701 = vrot.slane %v2699, 5
      %v2702 = vor.u32 %v2698, %v2701
      %v2703 = vrot.slane %v2702, 4
      %v2705 = vshll.u32 %v2480, 16
      %v2707 = vrot.slane %v2705, 5
      %v2708 = vsel %vm411, %v2703, %v2707
      %v2709 = vshrl.u32 %v2480, 16
      %v2711 = vrot.slane %v2709, 4
      %v2712 = vor.u32 %v2711, %v2707
      %v2713 = vrot.slane %v2712, 4
      %v2715 = vshll.u32 %v2481, 16
      %v2717 = vrot.slane %v2715, 5
      %v2718 = vsel %vm411, %v2713, %v2717
      %v2720 = vshrl.u32 %v2482, 16
      %v2722 = vrot.slane %v2720, 4
      %v2723 = vshll.u32 %v2482, 16
      %v2725 = vrot.slane %v2723, 5
      %v2726 = vor.u32 %v2722, %v2725
      %v2727 = vrot.slane %v2726, 4
      %v2729 = vshll.u32 %v2483, 16
      %v2731 = vrot.slane %v2729, 5
      %v2732 = vsel %vm411, %v2727, %v2731
      %v2733 = vshrl.u32 %v2483, 16
      %v2735 = vrot.slane %v2733, 4
      %v2736 = vor.u32 %v2735, %v2731
      %v2737 = vrot.slane %v2736, 4
      %v2739 = vshll.u32 %v2484, 16
      %v2741 = vrot.slane %v2739, 5
      %v2742 = vsel %vm411, %v2737, %v2741
      %v2744 = vshrl.u32 %v2485, 16
      %v2746 = vrot.slane %v2744, 4
      %v2747 = vshll.u32 %v2485, 16
      %v2749 = vrot.slane %v2747, 5
      %v2750 = vor.u32 %v2746, %v2749
      %v2751 = vrot.slane %v2750, 4
      %v2753 = vshll.u32 %v2486, 16
      %v2755 = vrot.slane %v2753, 5
      %v2756 = vsel %vm411, %v2751, %v2755
      %v2757 = vshrl.u32 %v2486, 16
      %v2759 = vrot.slane %v2757, 4
      %v2760 = vor.u32 %v2759, %v2755
      %v2761 = vrot.slane %v2760, 4
      %v2763 = vshll.u32 %v2487, 16
      %v2765 = vrot.slane %v2763, 5
      %v2766 = vsel %vm411, %v2761, %v2765
      %v2768 = vshrl.u32 %v2488, 16
      %v2770 = vrot.slane %v2768, 4
      %v2771 = vshll.u32 %v2488, 16
      %v2773 = vrot.slane %v2771, 5
      %v2774 = vor.u32 %v2770, %v2773
      %v2775 = vrot.slane %v2774, 4
      %v2777 = vshll.u32 %v2489, 16
      %v2779 = vrot.slane %v2777, 5
      %v2780 = vsel %vm411, %v2775, %v2779
      %v2781 = vshrl.u32 %v2489, 16
      %v2783 = vrot.slane %v2781, 4
      %v2784 = vor.u32 %v2783, %v2779
      %v2785 = vrot.slane %v2784, 4
      %v2787 = vshll.u32 %v2490, 16
      %v2789 = vrot.slane %v2787, 5
      %v2790 = vsel %vm411, %v2785, %v2789
      %v2792 = vshrl.u32 %v2491, 16
      %v2794 = vrot.slane %v2792, 4
      %v2795 = vshll.u32 %v2491, 16
      %v2797 = vrot.slane %v2795, 5
      %v2798 = vor.u32 %v2794, %v2797
      %v2799 = vrot.slane %v2798, 4
      %v2801 = vshll.u32 %v2492, 16
      %v2803 = vrot.slane %v2801, 5
      %v2804 = vsel %vm411, %v2799, %v2803
      %v2805 = vshrl.u32 %v2492, 16
      %v2807 = vrot.slane %v2805, 4
      %v2808 = vor.u32 %v2807, %v2803
      %v2809 = vrot.slane %v2808, 4
      %v2811 = vshll.u32 %v2493, 16
      %v2813 = vrot.slane %v2811, 5
      %v2814 = vsel %vm411, %v2809, %v2813
      %v2816 = vshrl.u32 %v2494, 16
      %v2818 = vrot.slane %v2816, 4
      %v2819 = vshll.u32 %v2494, 16
      %v2821 = vrot.slane %v2819, 5
      %v2822 = vor.u32 %v2818, %v2821
      %v2823 = vrot.slane %v2822, 4
      %v2825 = vshll.u32 %v2495, 16
      %v2827 = vrot.slane %v2825, 5
      %v2828 = vsel %vm411, %v2823, %v2827
      %v2829 = vshrl.u32 %v2495, 16
      %v2831 = vrot.slane %v2829, 4
      %v2832 = vor.u32 %v2831, %v2827
      %v2833 = vrot.slane %v2832, 4
      %v2835 = vshll.u32 %v2496, 16
      %v2837 = vrot.slane %v2835, 5
      %v2838 = vsel %vm411, %v2833, %v2837
      %v2840 = vshrl.u32 %v2497, 16
      %v2842 = vrot.slane %v2840, 4
      %v2843 = vshll.u32 %v2497, 16
      %v2845 = vrot.slane %v2843, 5
      %v2846 = vor.u32 %v2842, %v2845
      %v2847 = vrot.slane %v2846, 4
      %v2849 = vshll.u32 %v2498, 16
      %v2851 = vrot.slane %v2849, 5
      %v2852 = vsel %vm411, %v2847, %v2851
      %v2853 = vshrl.u32 %v2498, 16
      %v2855 = vrot.slane %v2853, 4
      %v2856 = vor.u32 %v2855, %v2851
      %v2857 = vrot.slane %v2856, 4
      %v2859 = vshll.u32 %v2499, 16
      %v2861 = vrot.slane %v2859, 5
      %v2862 = vsel %vm411, %v2857, %v2861
      %v2864 = vshrl.u32 %v2500, 16
      %v2866 = vrot.slane %v2864, 4
      %v2867 = vshll.u32 %v2500, 16
      %v2869 = vrot.slane %v2867, 5
      %v2870 = vor.u32 %v2866, %v2869
      %v2871 = vrot.slane %v2870, 4
      %v2873 = vshll.u32 %v2501, 16
      %v2875 = vrot.slane %v2873, 5
      %v2876 = vsel %vm411, %v2871, %v2875
      %v2877 = vshrl.u32 %v2501, 16
      %v2879 = vrot.slane %v2877, 4
      %v2880 = vor.u32 %v2879, %v2875
      %v2881 = vrot.slane %v2880, 4
      %v2883 = vshll.u32 %v2502, 16
      %v2885 = vrot.slane %v2883, 5
      %v2886 = vsel %vm411, %v2881, %v2885
      %v2887 = vunpack.c.l.b16 %v2516
      %v2888 = vunpack.c.l.b16 %v2526
      %v2889 = vunpack.c.l.b16 %v2540
      %v2890 = vunpack.c.l.b16 %v2550
      %v2891 = vunpack.c.l.b16 %v2564
      %v2892 = vunpack.c.l.b16 %v2574
      %v2893 = vunpack.c.l.b16 %v2588
      %v2894 = vunpack.c.l.b16 %v2598
      %v2895 = vunpack.c.l.b16 %v2612
      %v2896 = vunpack.c.l.b16 %v2622
      %v2897 = vunpack.c.l.b16 %v2636
      %v2898 = vunpack.c.l.b16 %v2646
      %v2899 = vunpack.c.l.b16 %v2660
      %v2900 = vunpack.c.l.b16 %v2670
      %v2901 = vunpack.c.l.b16 %v2684
      %v2902 = vunpack.c.l.b16 %v2694
      %v2903 = vunpack.c.l.b16 %v2708
      %v2904 = vunpack.c.l.b16 %v2718
      %v2905 = vunpack.c.l.b16 %v2732
      %v2906 = vunpack.c.l.b16 %v2742
      %v2907 = vunpack.c.l.b16 %v2756
      %v2908 = vunpack.c.l.b16 %v2766
      %v2909 = vunpack.c.l.b16 %v2780
      %v2910 = vunpack.c.l.b16 %v2790
      %v2911 = vunpack.c.l.b16 %v2804
      %v2912 = vunpack.c.l.b16 %v2814
      %v2913 = vunpack.c.l.b16 %v2828
      %v2914 = vunpack.c.l.b16 %v2838
      %v2915 = vunpack.c.l.b16 %v2852
      %v2916 = vunpack.c.l.b16 %v2862
      %v2917 = vunpack.c.l.b16 %v2876
      %v2918 = vunpack.c.l.b16 %v2886
      %v2919 = vpack.c.b16 %v2888, %v2887
      %v2920 = vpack.c.b16 %v2890, %v2889
      %v2921 = vpack.c.b16 %v2892, %v2891
      %v2922 = vpack.c.b16 %v2894, %v2893
      %v2923 = vpack.c.b16 %v2896, %v2895
      %v2924 = vpack.c.b16 %v2898, %v2897
      %v2925 = vpack.c.b16 %v2900, %v2899
      %v2926 = vpack.c.b16 %v2902, %v2901
      %v2927 = vpack.c.b16 %v2904, %v2903
      %v2928 = vpack.c.b16 %v2906, %v2905
      %v2929 = vpack.c.b16 %v2908, %v2907
      %v2930 = vpack.c.b16 %v2910, %v2909
      %v2931 = vpack.c.b16 %v2912, %v2911
      %v2932 = vpack.c.b16 %v2914, %v2913
      %v2933 = vpack.c.b16 %v2916, %v2915
      %v2934 = vpack.c.b16 %v2918, %v2917
      %2935 = vrot.lane.b32.xlu0 %v2919, 28
      %v2936 = vpop.permute.xlu0 %2935
      %2937 = vrot.lane.b32.xlu0 %v2920, 28
      %v2938 = vpop.permute.xlu0 %2937
      %2939 = vrot.lane.b32.xlu0 %v2921, 28
      %v2940 = vpop.permute.xlu0 %2939
      %2941 = vrot.lane.b32.xlu0 %v2922, 28
      %v2942 = vpop.permute.xlu0 %2941
      %2943 = vrot.lane.b32.xlu0 %v2923, 28
      %v2944 = vpop.permute.xlu0 %2943
      %2945 = vrot.lane.b32.xlu0 %v2924, 28
      %v2946 = vpop.permute.xlu0 %2945
      %2947 = vrot.lane.b32.xlu0 %v2925, 28
      %v2948 = vpop.permute.xlu0 %2947
      %2949 = vrot.lane.b32.xlu0 %v2926, 28
      %v2950 = vpop.permute.xlu0 %2949
      %2951 = vrot.lane.b32.xlu0 %v2927, 28
      %v2952 = vpop.permute.xlu0 %2951
      %2953 = vrot.lane.b32.xlu0 %v2928, 28
      %v2954 = vpop.permute.xlu0 %2953
      %2955 = vrot.lane.b32.xlu0 %v2929, 28
      %v2956 = vpop.permute.xlu0 %2955
      %2957 = vrot.lane.b32.xlu0 %v2930, 28
      %v2958 = vpop.permute.xlu0 %2957
      %2959 = vrot.lane.b32.xlu0 %v2931, 28
      %v2960 = vpop.permute.xlu0 %2959
      %2961 = vrot.lane.b32.xlu0 %v2932, 28
      %v2962 = vpop.permute.xlu0 %2961
      %2963 = vrot.lane.b32.xlu0 %v2933, 28
      %v2964 = vpop.permute.xlu0 %2963
      %2965 = vrot.lane.b32.xlu0 %v2934, 28
      %v2966 = vpop.permute.xlu0 %2965
      %vm2983 = vcmask 261344
      %2984 = vst.msk [vmem:[#allocation2] sm:$0xff] %vm2983, %v2936
      %2985 = vst.msk [vmem:[#allocation2 + $0x8] sm:$0xff] %vm2983, %v2938
      %2986 = vst.msk [vmem:[#allocation2 + $0x10] sm:$0xff] %vm2983, %v2940
      %2987 = vst.msk [vmem:[#allocation2 + $0x18] sm:$0xff] %vm2983, %v2942
      %2988 = vst.msk [vmem:[#allocation2 + $0x20] sm:$0xff] %vm2983, %v2944
      %2989 = vst.msk [vmem:[#allocation2 + $0x28] sm:$0xff] %vm2983, %v2946
      %2990 = vst.msk [vmem:[#allocation2 + $0x30] sm:$0xff] %vm2983, %v2948
      %2991 = vst.msk [vmem:[#allocation2 + $0x38] sm:$0xff] %vm2983, %v2950
      %2992 = vst.msk [vmem:[#allocation2 + $0x40] sm:$0xff] %vm2983, %v2952
      %2993 = vst.msk [vmem:[#allocation2 + $0x48] sm:$0xff] %vm2983, %v2954
      %2994 = vst.msk [vmem:[#allocation2 + $0x50] sm:$0xff] %vm2983, %v2956
      %2995 = vst.msk [vmem:[#allocation2 + $0x58] sm:$0xff] %vm2983, %v2958
      %2996 = vst.msk [vmem:[#allocation2 + $0x60] sm:$0xff] %vm2983, %v2960
      %2997 = vst.msk [vmem:[#allocation2 + $0x68] sm:$0xff] %vm2983, %v2962
      %2998 = vst.msk [vmem:[#allocation2 + $0x70] sm:$0xff] %vm2983, %v2964
      %2999 = vst.msk [vmem:[#allocation2 + $0x78] sm:$0xff] %vm2983, %v2966
      %v3000 = vld [vmem:[%s2277] sm:$0xe]
      %v3001 = vld [vmem:[%s2277 + $0x4] sm:$0xf]
      %v3002 = vld [vmem:[%s2277 + $0x8] sm:$0x1]
      %v3003 = vld [vmem:[%s2277 + $0xc] sm:$0xe]
      %v3004 = vld [vmem:[%s2277 + $0x10] sm:$0xf]
      %v3005 = vld [vmem:[%s2277 + $0x14] sm:$0x1]
      %v3006 = vld [vmem:[%s2277 + $0x18] sm:$0xe]
      %v3007 = vld [vmem:[%s2277 + $0x1c] sm:$0xf]
      %v3008 = vld [vmem:[%s2277 + $0x20] sm:$0x1]
      %v3009 = vld [vmem:[%s2277 + $0x24] sm:$0xe]
      %v3010 = vld [vmem:[%s2277 + $0x28] sm:$0xf]
      %v3011 = vld [vmem:[%s2277 + $0x2c] sm:$0x1]
      %v3012 = vld [vmem:[%s2277 + $0x30] sm:$0xe]
      %v3013 = vld [vmem:[%s2277 + $0x34] sm:$0xf]
      %v3014 = vld [vmem:[%s2277 + $0x38] sm:$0x1]
      %v3015 = vld [vmem:[%s2277 + $0x3c] sm:$0xe]
      %v3016 = vld [vmem:[%s2277 + $0x40] sm:$0xf]
      %v3017 = vld [vmem:[%s2277 + $0x44] sm:$0x1]
      %v3018 = vld [vmem:[%s2277 + $0x48] sm:$0xe]
      %v3019 = vld [vmem:[%s2277 + $0x4c] sm:$0xf]
      %v3020 = vld [vmem:[%s2277 + $0x50] sm:$0x1]
      %v3021 = vld [vmem:[%s2277 + $0x54] sm:$0xe]
      %v3022 = vld [vmem:[%s2277 + $0x58] sm:$0xf]
      %v3023 = vld [vmem:[%s2277 + $0x5c] sm:$0x1]
      %v3024 = vld [vmem:[%s2277 + $0x60] sm:$0xe]
      %v3025 = vld [vmem:[%s2277 + $0x64] sm:$0xf]
      %v3026 = vld [vmem:[%s2277 + $0x68] sm:$0x1]
      %v3027 = vld [vmem:[%s2277 + $0x6c] sm:$0xe]
      %v3028 = vld [vmem:[%s2277 + $0x70] sm:$0xf]
      %v3029 = vld [vmem:[%s2277 + $0x74] sm:$0x1]
      %v3030 = vld [vmem:[%s2277 + $0x78] sm:$0xe]
      %v3031 = vld [vmem:[%s2277 + $0x7c] sm:$0xf]
      %v3032 = vld [vmem:[%s2277 + $0x80] sm:$0x1]
      %v3033 = vld [vmem:[%s2277 + $0x84] sm:$0xe]
      %v3034 = vld [vmem:[%s2277 + $0x88] sm:$0xf]
      %v3035 = vld [vmem:[%s2277 + $0x8c] sm:$0x1]
      %v3036 = vld [vmem:[%s2277 + $0x90] sm:$0xe]
      %v3037 = vld [vmem:[%s2277 + $0x94] sm:$0xf]
      %v3038 = vld [vmem:[%s2277 + $0x98] sm:$0x1]
      %v3039 = vld [vmem:[%s2277 + $0x9c] sm:$0xe]
      %v3040 = vld [vmem:[%s2277 + $0xa0] sm:$0xf]
      %v3041 = vld [vmem:[%s2277 + $0xa4] sm:$0x1]
      %v3042 = vld [vmem:[%s2277 + $0xa8] sm:$0xe]
      %v3043 = vld [vmem:[%s2277 + $0xac] sm:$0xf]
      %v3044 = vld [vmem:[%s2277 + $0xb0] sm:$0x1]
      %v3045 = vld [vmem:[%s2277 + $0xb4] sm:$0xe]
      %v3046 = vld [vmem:[%s2277 + $0xb8] sm:$0xf]
      %v3047 = vld [vmem:[%s2277 + $0xbc] sm:$0x1]
      %v3096 = vrot.slane %v3000, 5
      %v3097 = vrot.slane %v3096, 4
      %v3098 = vrot.slane %v3001, 5
      %v3099 = vsel %vm1007, %v3097, %v3098
      %v3100 = vrot.slane %v3098, 4
      %v3101 = vrot.slane %v3002, 5
      %v3102 = vsel %vm1007, %v3100, %v3101
      %v3103 = vrot.slane %v3003, 5
      %v3104 = vrot.slane %v3103, 4
      %v3105 = vrot.slane %v3004, 5
      %v3106 = vsel %vm1007, %v3104, %v3105
      %v3107 = vrot.slane %v3105, 4
      %v3108 = vrot.slane %v3005, 5
      %v3109 = vsel %vm1007, %v3107, %v3108
      %v3110 = vrot.slane %v3006, 5
      %v3111 = vrot.slane %v3110, 4
      %v3112 = vrot.slane %v3007, 5
      %v3113 = vsel %vm1007, %v3111, %v3112
      %v3114 = vrot.slane %v3112, 4
      %v3115 = vrot.slane %v3008, 5
      %v3116 = vsel %vm1007, %v3114, %v3115
      %v3117 = vrot.slane %v3009, 5
      %v3118 = vrot.slane %v3117, 4
      %v3119 = vrot.slane %v3010, 5
      %v3120 = vsel %vm1007, %v3118, %v3119
      %v3121 = vrot.slane %v3119, 4
      %v3122 = vrot.slane %v3011, 5
      %v3123 = vsel %vm1007, %v3121, %v3122
      %v3124 = vrot.slane %v3012, 5
      %v3125 = vrot.slane %v3124, 4
      %v3126 = vrot.slane %v3013, 5
      %v3127 = vsel %vm1007, %v3125, %v3126
      %v3128 = vrot.slane %v3126, 4
      %v3129 = vrot.slane %v3014, 5
      %v3130 = vsel %vm1007, %v3128, %v3129
      %v3131 = vrot.slane %v3015, 5
      %v3132 = vrot.slane %v3131, 4
      %v3133 = vrot.slane %v3016, 5
      %v3134 = vsel %vm1007, %v3132, %v3133
      %v3135 = vrot.slane %v3133, 4
      %v3136 = vrot.slane %v3017, 5
      %v3137 = vsel %vm1007, %v3135, %v3136
      %v3138 = vrot.slane %v3018, 5
      %v3139 = vrot.slane %v3138, 4
      %v3140 = vrot.slane %v3019, 5
      %v3141 = vsel %vm1007, %v3139, %v3140
      %v3142 = vrot.slane %v3140, 4
      %v3143 = vrot.slane %v3020, 5
      %v3144 = vsel %vm1007, %v3142, %v3143
      %v3145 = vrot.slane %v3021, 5
      %v3146 = vrot.slane %v3145, 4
      %v3147 = vrot.slane %v3022, 5
      %v3148 = vsel %vm1007, %v3146, %v3147
      %v3149 = vrot.slane %v3147, 4
      %v3150 = vrot.slane %v3023, 5
      %v3151 = vsel %vm1007, %v3149, %v3150
      %v3152 = vrot.slane %v3024, 5
      %v3153 = vrot.slane %v3152, 4
      %v3154 = vrot.slane %v3025, 5
      %v3155 = vsel %vm1007, %v3153, %v3154
      %v3156 = vrot.slane %v3154, 4
      %v3157 = vrot.slane %v3026, 5
      %v3158 = vsel %vm1007, %v3156, %v3157
      %v3159 = vrot.slane %v3027, 5
      %v3160 = vrot.slane %v3159, 4
      %v3161 = vrot.slane %v3028, 5
      %v3162 = vsel %vm1007, %v3160, %v3161
      %v3163 = vrot.slane %v3161, 4
      %v3164 = vrot.slane %v3029, 5
      %v3165 = vsel %vm1007, %v3163, %v3164
      %v3166 = vrot.slane %v3030, 5
      %v3167 = vrot.slane %v3166, 4
      %v3168 = vrot.slane %v3031, 5
      %v3169 = vsel %vm1007, %v3167, %v3168
      %v3170 = vrot.slane %v3168, 4
      %v3171 = vrot.slane %v3032, 5
      %v3172 = vsel %vm1007, %v3170, %v3171
      %v3173 = vrot.slane %v3033, 5
      %v3174 = vrot.slane %v3173, 4
      %v3175 = vrot.slane %v3034, 5
      %v3176 = vsel %vm1007, %v3174, %v3175
      %v3177 = vrot.slane %v3175, 4
      %v3178 = vrot.slane %v3035, 5
      %v3179 = vsel %vm1007, %v3177, %v3178
      %v3180 = vrot.slane %v3036, 5
      %v3181 = vrot.slane %v3180, 4
      %v3182 = vrot.slane %v3037, 5
      %v3183 = vsel %vm1007, %v3181, %v3182
      %v3184 = vrot.slane %v3182, 4
      %v3185 = vrot.slane %v3038, 5
      %v3186 = vsel %vm1007, %v3184, %v3185
      %v3187 = vrot.slane %v3039, 5
      %v3188 = vrot.slane %v3187, 4
      %v3189 = vrot.slane %v3040, 5
      %v3190 = vsel %vm1007, %v3188, %v3189
      %v3191 = vrot.slane %v3189, 4
      %v3192 = vrot.slane %v3041, 5
      %v3193 = vsel %vm1007, %v3191, %v3192
      %v3194 = vrot.slane %v3042, 5
      %v3195 = vrot.slane %v3194, 4
      %v3196 = vrot.slane %v3043, 5
      %v3197 = vsel %vm1007, %v3195, %v3196
      %v3198 = vrot.slane %v3196, 4
      %v3199 = vrot.slane %v3044, 5
      %v3200 = vsel %vm1007, %v3198, %v3199
      %v3201 = vrot.slane %v3045, 5
      %v3202 = vrot.slane %v3201, 4
      %v3203 = vrot.slane %v3046, 5
      %v3204 = vsel %vm1007, %v3202, %v3203
      %v3205 = vrot.slane %v3203, 4
      %v3206 = vrot.slane %v3047, 5
      %v3207 = vsel %vm1007, %v3205, %v3206
      %v3208 = vunpack.c.l.b16 %v3099
      %v3209 = vunpack.c.l.b16 %v3102
      %v3210 = vunpack.c.l.b16 %v3106
      %v3211 = vunpack.c.l.b16 %v3109
      %v3212 = vunpack.c.l.b16 %v3113
      %v3213 = vunpack.c.l.b16 %v3116
      %v3214 = vunpack.c.l.b16 %v3120
      %v3215 = vunpack.c.l.b16 %v3123
      %v3216 = vunpack.c.l.b16 %v3127
      %v3217 = vunpack.c.l.b16 %v3130
      %v3218 = vunpack.c.l.b16 %v3134
      %v3219 = vunpack.c.l.b16 %v3137
      %v3220 = vunpack.c.l.b16 %v3141
      %v3221 = vunpack.c.l.b16 %v3144
      %v3222 = vunpack.c.l.b16 %v3148
      %v3223 = vunpack.c.l.b16 %v3151
      %v3224 = vunpack.c.l.b16 %v3155
      %v3225 = vunpack.c.l.b16 %v3158
      %v3226 = vunpack.c.l.b16 %v3162
      %v3227 = vunpack.c.l.b16 %v3165
      %v3228 = vunpack.c.l.b16 %v3169
      %v3229 = vunpack.c.l.b16 %v3172
      %v3230 = vunpack.c.l.b16 %v3176
      %v3231 = vunpack.c.l.b16 %v3179
      %v3232 = vunpack.c.l.b16 %v3183
      %v3233 = vunpack.c.l.b16 %v3186
      %v3234 = vunpack.c.l.b16 %v3190
      %v3235 = vunpack.c.l.b16 %v3193
      %v3236 = vunpack.c.l.b16 %v3197
      %v3237 = vunpack.c.l.b16 %v3200
      %v3238 = vunpack.c.l.b16 %v3204
      %v3239 = vunpack.c.l.b16 %v3207
      %v3240 = vpack.c.b16 %v3209, %v3208
      %v3241 = vpack.c.b16 %v3211, %v3210
      %v3242 = vpack.c.b16 %v3213, %v3212
      %v3243 = vpack.c.b16 %v3215, %v3214
      %v3244 = vpack.c.b16 %v3217, %v3216
      %v3245 = vpack.c.b16 %v3219, %v3218
      %v3246 = vpack.c.b16 %v3221, %v3220
      %v3247 = vpack.c.b16 %v3223, %v3222
      %v3248 = vpack.c.b16 %v3225, %v3224
      %v3249 = vpack.c.b16 %v3227, %v3226
      %v3250 = vpack.c.b16 %v3229, %v3228
      %v3251 = vpack.c.b16 %v3231, %v3230
      %v3252 = vpack.c.b16 %v3233, %v3232
      %v3253 = vpack.c.b16 %v3235, %v3234
      %v3254 = vpack.c.b16 %v3237, %v3236
      %v3255 = vpack.c.b16 %v3239, %v3238
      %3256 = vrot.lane.b32.xlu0 %v3240, 32
      %v3257 = vpop.permute.xlu0 %3256
      %3258 = vrot.lane.b32.xlu0 %v3241, 32
      %v3259 = vpop.permute.xlu0 %3258
      %3260 = vrot.lane.b32.xlu0 %v3242, 32
      %v3261 = vpop.permute.xlu0 %3260
      %3262 = vrot.lane.b32.xlu0 %v3243, 32
      %v3263 = vpop.permute.xlu0 %3262
      %3264 = vrot.lane.b32.xlu0 %v3244, 32
      %v3265 = vpop.permute.xlu0 %3264
      %3266 = vrot.lane.b32.xlu0 %v3245, 32
      %v3267 = vpop.permute.xlu0 %3266
      %3268 = vrot.lane.b32.xlu0 %v3246, 32
      %v3269 = vpop.permute.xlu0 %3268
      %3270 = vrot.lane.b32.xlu0 %v3247, 32
      %v3271 = vpop.permute.xlu0 %3270
      %3272 = vrot.lane.b32.xlu0 %v3248, 32
      %v3273 = vpop.permute.xlu0 %3272
      %3274 = vrot.lane.b32.xlu0 %v3249, 32
      %v3275 = vpop.permute.xlu0 %3274
      %3276 = vrot.lane.b32.xlu0 %v3250, 32
      %v3277 = vpop.permute.xlu0 %3276
      %3278 = vrot.lane.b32.xlu0 %v3251, 32
      %v3279 = vpop.permute.xlu0 %3278
      %3280 = vrot.lane.b32.xlu0 %v3252, 32
      %v3281 = vpop.permute.xlu0 %3280
      %3282 = vrot.lane.b32.xlu0 %v3253, 32
      %v3283 = vpop.permute.xlu0 %3282
      %3284 = vrot.lane.b32.xlu0 %v3254, 32
      %v3285 = vpop.permute.xlu0 %3284
      %3286 = vrot.lane.b32.xlu0 %v3255, 32
      %v3287 = vpop.permute.xlu0 %3286
      %vm3304 = vcmask 294144
      %3305 = vst.msk [vmem:[#allocation2] sm:$0xff] %vm3304, %v3257
      %3306 = vst.msk [vmem:[#allocation2 + $0x8] sm:$0xff] %vm3304, %v3259
      %3307 = vst.msk [vmem:[#allocation2 + $0x10] sm:$0xff] %vm3304, %v3261
      %3308 = vst.msk [vmem:[#allocation2 + $0x18] sm:$0xff] %vm3304, %v3263
      %3309 = vst.msk [vmem:[#allocation2 + $0x20] sm:$0xff] %vm3304, %v3265
      %3310 = vst.msk [vmem:[#allocation2 + $0x28] sm:$0xff] %vm3304, %v3267
      %3311 = vst.msk [vmem:[#allocation2 + $0x30] sm:$0xff] %vm3304, %v3269
      %3312 = vst.msk [vmem:[#allocation2 + $0x38] sm:$0xff] %vm3304, %v3271
      %3313 = vst.msk [vmem:[#allocation2 + $0x40] sm:$0xff] %vm3304, %v3273
      %3314 = vst.msk [vmem:[#allocation2 + $0x48] sm:$0xff] %vm3304, %v3275
      %3315 = vst.msk [vmem:[#allocation2 + $0x50] sm:$0xff] %vm3304, %v3277
      %3316 = vst.msk [vmem:[#allocation2 + $0x58] sm:$0xff] %vm3304, %v3279
      %3317 = vst.msk [vmem:[#allocation2 + $0x60] sm:$0xff] %vm3304, %v3281
      %3318 = vst.msk [vmem:[#allocation2 + $0x68] sm:$0xff] %vm3304, %v3283
      %3319 = vst.msk [vmem:[#allocation2 + $0x70] sm:$0xff] %vm3304, %v3285
      %3320 = vst.msk [vmem:[#allocation2 + $0x78] sm:$0xff] %vm3304, %v3287
      %v3321 = vld [vmem:[#allocation2] sm:$0xff]
      %v3322 = vld [vmem:[#allocation2 + $0x8] sm:$0xff]
      %v3323 = vld [vmem:[#allocation2 + $0x10] sm:$0xff]
      %v3324 = vld [vmem:[#allocation2 + $0x18] sm:$0xff]
      %v3325 = vld [vmem:[#allocation2 + $0x20] sm:$0xff]
      %v3326 = vld [vmem:[#allocation2 + $0x28] sm:$0xff]
      %v3327 = vld [vmem:[#allocation2 + $0x30] sm:$0xff]
      %v3328 = vld [vmem:[#allocation2 + $0x38] sm:$0xff]
      %v3329 = vld [vmem:[#allocation2 + $0x40] sm:$0xff]
      %v3330 = vld [vmem:[#allocation2 + $0x48] sm:$0xff]
      %v3331 = vld [vmem:[#allocation2 + $0x50] sm:$0xff]
      %v3332 = vld [vmem:[#allocation2 + $0x58] sm:$0xff]
      %v3333 = vld [vmem:[#allocation2 + $0x60] sm:$0xff]
      %v3334 = vld [vmem:[#allocation2 + $0x68] sm:$0xff]
      %v3335 = vld [vmem:[#allocation2 + $0x70] sm:$0xff]
      %v3336 = vld [vmem:[#allocation2 + $0x78] sm:$0xff]
      %v3337 = vld [vmem:[%s1] sm:$0xf]
      %v3338 = vld [vmem:[%s1 + $0x4] sm:$0xf]
      %v3339 = vld [vmem:[%s1 + $0x8] sm:$0xf]
      %v3340 = vld [vmem:[%s1 + $0xc] sm:$0xf]
      %v3341 = vld [vmem:[%s1 + $0x10] sm:$0x3]
      %v3347 = vunpack.c.l.b16 %v3337
      %v3348 = vunpack.c.l.b16 %v3338
      %v3349 = vunpack.c.l.b16 %v3339
      %v3350 = vunpack.c.l.b16 %v3340
      %v3351 = vunpack.c.l.b16 %v3341
      %v3352 = vpack.c.b16 %v3348, %v3347
      %v3353 = vpack.c.b16 %v3350, %v3349
      %v3354 = vpack.c.b16 %v3351, %v3351
      %vm3357 = vcmask 293888
      %v3359 = vsel %vm3357, %v3321, 0
      %v3362 = vsel %vm3357, %v3322, 0
      %v3365 = vsel %vm3357, %v3323, 0
      %v3368 = vsel %vm3357, %v3324, 0
      %v3371 = vsel %vm3357, %v3325, 0
      %v3374 = vsel %vm3357, %v3326, 0
      %v3377 = vsel %vm3357, %v3327, 0
      %v3380 = vsel %vm3357, %v3328, 0
      %v3383 = vsel %vm3357, %v3329, 0
      %v3386 = vsel %vm3357, %v3330, 0
      %v3389 = vsel %vm3357, %v3331, 0
      %v3392 = vsel %vm3357, %v3332, 0
      %v3395 = vsel %vm3357, %v3333, 0
      %v3398 = vsel %vm3357, %v3334, 0
      %v3401 = vsel %vm3357, %v3335, 0
      %v3404 = vsel %vm3357, %v3336, 0
      %vm3406 = vcmask 1041408
      %v3408 = vsel %vm3406, %v3354, 0
      %3410 = vmatprep.subr.bf16.mxu0 0
      %3411 = vmatpush1.bf16.msra.mxu0 %v3352
      %3412 = vmatprep.subr.bf16.mxu0 0
      %3413 = vmatpush1.bf16.msra.mxu0 %v3353
      %3414 = vmatprep.subr.bf16.mxu0 0
      %3415 = vmatpush1.bf16.msra.mxu0 %v3408
      %3416 = vmatprep.subr.bf16.mxu0 0
      %3417 = vmatpush1.bf16.msra.mxu0 0
      %3418 = vmatprep.subr.bf16.mxu0 0
      %3419 = vmatpush1.bf16.msra.mxu0 0
      %3420 = vmatprep.subr.bf16.mxu0 0
      %3421 = vmatpush1.bf16.msra.mxu0 0
      %3422 = vmatprep.subr.bf16.mxu0 0
      %3423 = vmatpush1.bf16.msra.mxu0 0
      %3424 = vmatprep.subr.bf16.mxu0 0
      %3425 = vmatpush1.bf16.msra.mxu0 0
      %3426 = vmatprep.subr.bf16.mxu0 0
      %3427 = vmatpush1.bf16.msra.mxu0 0
      %3428 = vmatprep.subr.bf16.mxu0 0
      %3429 = vmatpush1.bf16.msra.mxu0 0
      %3430 = vmatprep.subr.bf16.mxu0 0
      %3431 = vmatpush1.bf16.msra.mxu0 0
      %3432 = vmatprep.subr.bf16.mxu0 0
      %3433 = vmatpush1.bf16.msra.mxu0 0
      %3434 = vmatprep.subr.bf16.mxu0 0
      %3435 = vmatpush1.bf16.msra.mxu0 0
      %3436 = vmatprep.subr.bf16.mxu0 0
      %3437 = vmatpush1.bf16.msra.mxu0 0
      %3438 = vmatprep.subr.bf16.mxu0 0
      %3439 = vmatpush1.bf16.msra.mxu0 0
      %3440 = vmatprep.subr.bf16.mxu0 0
      %3441 = vmatpush1.bf16.msra.mxu0 0
      %3442 = vmatprep.mubr.bf16.mxu0 0
      %3443 = vmatmul.mubr.bf16.gmra.mrb[0].mxu0 %v3359
      %v3444 = vpop.f32.mrb[0].mxu0
      %v3445 = vadd.f32 0.0, %v3444
      %v3446 = vpop.f32.mrb[0].mxu0
      %v3447 = vpop.f32.mrb[0].mxu0
      %v3448 = vadd.f32 0.0, %v3447
      %v3449 = vpop.f32.mrb[0].mxu0
      %3450 = vmatprep.mubr.bf16.mxu0 0
      %3451 = vmatmul.mubr.bf16.gmra.mrb[0].mxu0 %v3362
      %v3452 = vpop.f32.mrb[0].mxu0
      %v3453 = vadd.f32 0.0, %v3452
      %v3454 = vpop.f32.mrb[0].mxu0
      %v3455 = vpop.f32.mrb[0].mxu0
      %v3456 = vadd.f32 0.0, %v3455
      %v3457 = vpop.f32.mrb[0].mxu0
      %3458 = vmatprep.mubr.bf16.mxu0 0
      %3459 = vmatmul.mubr.bf16.gmra.mrb[0].mxu0 %v3365
      %v3460 = vpop.f32.mrb[0].mxu0
      %v3461 = vadd.f32 0.0, %v3460
      %v3462 = vpop.f32.mrb[0].mxu0
      %v3463 = vpop.f32.mrb[0].mxu0
      %v3464 = vadd.f32 0.0, %v3463
      %v3465 = vpop.f32.mrb[0].mxu0
      %3466 = vmatprep.mubr.bf16.mxu0 0
      %3467 = vmatmul.mubr.bf16.gmra.mrb[0].mxu0 %v3368
      %v3468 = vpop.f32.mrb[0].mxu0
      %v3469 = vadd.f32 0.0, %v3468
      %v3470 = vpop.f32.mrb[0].mxu0
      %v3471 = vpop.f32.mrb[0].mxu0
      %v3472 = vadd.f32 0.0, %v3471
      %v3473 = vpop.f32.mrb[0].mxu0
      %3474 = vmatprep.mubr.bf16.mxu0 0
      %3475 = vmatmul.mubr.bf16.gmra.mrb[0].mxu0 %v3371
      %v3476 = vpop.f32.mrb[0].mxu0
      %v3477 = vadd.f32 0.0, %v3476
      %v3478 = vpop.f32.mrb[0].mxu0
      %v3479 = vpop.f32.mrb[0].mxu0
      %v3480 = vadd.f32 0.0, %v3479
      %v3481 = vpop.f32.mrb[0].mxu0
      %3482 = vmatprep.mubr.bf16.mxu0 0
      %3483 = vmatmul.mubr.bf16.gmra.mrb[0].mxu0 %v3374
      %v3484 = vpop.f32.mrb[0].mxu0
      %v3485 = vadd.f32 0.0, %v3484
      %v3486 = vpop.f32.mrb[0].mxu0
      %v3487 = vpop.f32.mrb[0].mxu0
      %v3488 = vadd.f32 0.0, %v3487
      %v3489 = vpop.f32.mrb[0].mxu0
      %3490 = vmatprep.mubr.bf16.mxu0 0
      %3491 = vmatmul.mubr.bf16.gmra.mrb[0].mxu0 %v3377
      %v3492 = vpop.f32.mrb[0].mxu0
      %v3493 = vadd.f32 0.0, %v3492
      %v3494 = vpop.f32.mrb[0].mxu0
      %v3495 = vpop.f32.mrb[0].mxu0
      %v3496 = vadd.f32 0.0, %v3495
      %v3497 = vpop.f32.mrb[0].mxu0
      %3498 = vmatprep.mubr.bf16.mxu0 0
      %3499 = vmatmul.mubr.bf16.gmra.mrb[0].mxu0 %v3380
      %v3500 = vpop.f32.mrb[0].mxu0
      %v3501 = vadd.f32 0.0, %v3500
      %v3502 = vpop.f32.mrb[0].mxu0
      %v3503 = vpop.f32.mrb[0].mxu0
      %v3504 = vadd.f32 0.0, %v3503
      %v3505 = vpop.f32.mrb[0].mxu0
      %3506 = vmatprep.mubr.bf16.mxu0 0
      %3507 = vmatmul.mubr.bf16.gmra.mrb[0].mxu0 %v3383
      %v3508 = vpop.f32.mrb[0].mxu0
      %v3509 = vadd.f32 0.0, %v3508
      %v3510 = vpop.f32.mrb[0].mxu0
      %v3511 = vpop.f32.mrb[0].mxu0
      %v3512 = vadd.f32 0.0, %v3511
      %v3513 = vpop.f32.mrb[0].mxu0
      %3514 = vmatprep.mubr.bf16.mxu0 0
      %3515 = vmatmul.mubr.bf16.gmra.mrb[0].mxu0 %v3386
      %v3516 = vpop.f32.mrb[0].mxu0
      %v3517 = vadd.f32 0.0, %v3516
      %v3518 = vpop.f32.mrb[0].mxu0
      %v3519 = vpop.f32.mrb[0].mxu0
      %v3520 = vadd.f32 0.0, %v3519
      %v3521 = vpop.f32.mrb[0].mxu0
      %3522 = vmatprep.mubr.bf16.mxu0 0
      %3523 = vmatmul.mubr.bf16.gmra.mrb[0].mxu0 %v3389
      %v3524 = vpop.f32.mrb[0].mxu0
      %v3525 = vadd.f32 0.0, %v3524
      %v3526 = vpop.f32.mrb[0].mxu0
      %v3527 = vpop.f32.mrb[0].mxu0
      %v3528 = vadd.f32 0.0, %v3527
      %v3529 = vpop.f32.mrb[0].mxu0
      %3530 = vmatprep.mubr.bf16.mxu0 0
      %3531 = vmatmul.mubr.bf16.gmra.mrb[0].mxu0 %v3392
      %v3532 = vpop.f32.mrb[0].mxu0
      %v3533 = vadd.f32 0.0, %v3532
      %v3534 = vpop.f32.mrb[0].mxu0
      %v3535 = vpop.f32.mrb[0].mxu0
      %v3536 = vadd.f32 0.0, %v3535
      %v3537 = vpop.f32.mrb[0].mxu0
      %3538 = vmatprep.mubr.bf16.mxu0 0
      %3539 = vmatmul.mubr.bf16.gmra.mrb[0].mxu0 %v3395
      %v3540 = vpop.f32.mrb[0].mxu0
      %v3541 = vadd.f32 0.0, %v3540
      %v3542 = vpop.f32.mrb[0].mxu0
      %v3543 = vpop.f32.mrb[0].mxu0
      %v3544 = vadd.f32 0.0, %v3543
      %v3545 = vpop.f32.mrb[0].mxu0
      %3546 = vmatprep.mubr.bf16.mxu0 0
      %3547 = vmatmul.mubr.bf16.gmra.mrb[0].mxu0 %v3398
      %v3548 = vpop.f32.mrb[0].mxu0
      %v3549 = vadd.f32 0.0, %v3548
      %v3550 = vpop.f32.mrb[0].mxu0
      %v3551 = vpop.f32.mrb[0].mxu0
      %v3552 = vadd.f32 0.0, %v3551
      %v3553 = vpop.f32.mrb[0].mxu0
      %3554 = vmatprep.mubr.bf16.mxu0 0
      %3555 = vmatmul.mubr.bf16.gmra.mrb[0].mxu0 %v3401
      %v3556 = vpop.f32.mrb[0].mxu0
      %v3557 = vadd.f32 0.0, %v3556
      %v3558 = vpop.f32.mrb[0].mxu0
      %v3559 = vpop.f32.mrb[0].mxu0
      %v3560 = vadd.f32 0.0, %v3559
      %v3561 = vpop.f32.mrb[0].mxu0
      %3562 = vmatprep.mubr.bf16.mxu0 0
      %3563 = vmatmul.mubr.bf16.gmra.mrb[0].mxu0 %v3404
      %v3564 = vpop.f32.mrb[0].mxu0
      %v3565 = vadd.f32 0.0, %v3564
      %v3566 = vpop.f32.mrb[0].mxu0
      %v3567 = vpop.f32.mrb[0].mxu0
      %v3568 = vadd.f32 0.0, %v3567
      %v3569 = vpop.f32.mrb[0].mxu0
      %3570 = vdwg.mxu0
      %v3571 = vadd.f32 %v3445, %v3448
      %v3572 = vadd.f32 %v3571, %v3453
      %v3573 = vadd.f32 %v3572, %v3456
      %v3574 = vadd.f32 %v3573, %v3461
      %v3575 = vadd.f32 %v3574, %v3464
      %v3576 = vadd.f32 %v3575, %v3469
      %v3577 = vadd.f32 %v3576, %v3472
      %v3578 = vadd.f32 %v3577, %v3477
      %v3579 = vadd.f32 %v3578, %v3480
      %v3580 = vadd.f32 %v3579, %v3485
      %v3581 = vadd.f32 %v3580, %v3488
      %v3582 = vadd.f32 %v3581, %v3493
      %v3583 = vadd.f32 %v3582, %v3496
      %v3584 = vadd.f32 %v3583, %v3501
      %v3585 = vadd.f32 %v3584, %v3504
      %v3586 = vadd.f32 %v3585, %v3509
      %v3587 = vadd.f32 %v3586, %v3512
      %v3588 = vadd.f32 %v3587, %v3517
      %v3589 = vadd.f32 %v3588, %v3520
      %v3590 = vadd.f32 %v3589, %v3525
      %v3591 = vadd.f32 %v3590, %v3528
      %v3592 = vadd.f32 %v3591, %v3533
      %v3593 = vadd.f32 %v3592, %v3536
      %v3594 = vadd.f32 %v3593, %v3541
      %v3595 = vadd.f32 %v3594, %v3544
      %v3596 = vadd.f32 %v3595, %v3549
      %v3597 = vadd.f32 %v3596, %v3552
      %v3598 = vadd.f32 %v3597, %v3557
      %v3599 = vadd.f32 %v3598, %v3560
      %v3600 = vadd.f32 %v3599, %v3565
      %v3601 = vadd.f32 %v3600, %v3568
      %v3602 = vrot.slane %v3601, 4
      %v3603 = vadd.f32 %v3601, %v3602
      %v3604 = vrot.slane %v3603, 2
      %v3605 = vadd.f32 %v3603, %v3604
      %v3606 = vrot.slane %v3605, 1
      %v3607 = vadd.f32 %v3605, %v3606
      %3608 = vst [vmem:[%s211] sm:$0x1] %v3607
      %v3609 = vmul.f32 %v3445, %v3445
      %v3610 = vmul.f32 %v3448, %v3448
      %v3611 = vmul.f32 %v3453, %v3453
      %v3612 = vmul.f32 %v3456, %v3456
      %v3613 = vmul.f32 %v3461, %v3461
      %v3614 = vmul.f32 %v3464, %v3464
      %v3615 = vmul.f32 %v3469, %v3469
      %v3616 = vmul.f32 %v3472, %v3472
      %v3617 = vmul.f32 %v3477, %v3477
      %v3618 = vmul.f32 %v3480, %v3480
      %v3619 = vmul.f32 %v3485, %v3485
      %v3620 = vmul.f32 %v3488, %v3488
      %v3621 = vmul.f32 %v3493, %v3493
      %v3622 = vmul.f32 %v3496, %v3496
      %v3623 = vmul.f32 %v3501, %v3501
      %v3624 = vmul.f32 %v3504, %v3504
      %v3625 = vmul.f32 %v3509, %v3509
      %v3626 = vmul.f32 %v3512, %v3512
      %v3627 = vmul.f32 %v3517, %v3517
      %v3628 = vmul.f32 %v3520, %v3520
      %v3629 = vmul.f32 %v3525, %v3525
      %v3630 = vmul.f32 %v3528, %v3528
      %v3631 = vmul.f32 %v3533, %v3533
      %v3632 = vmul.f32 %v3536, %v3536
      %v3633 = vmul.f32 %v3541, %v3541
      %v3634 = vmul.f32 %v3544, %v3544
      %v3635 = vmul.f32 %v3549, %v3549
      %v3636 = vmul.f32 %v3552, %v3552
      %v3637 = vmul.f32 %v3557, %v3557
      %v3638 = vmul.f32 %v3560, %v3560
      %v3639 = vmul.f32 %v3565, %v3565
      %v3640 = vmul.f32 %v3568, %v3568
      %v3641 = vadd.f32 %v3609, %v3610
      %v3642 = vadd.f32 %v3641, %v3611
      %v3643 = vadd.f32 %v3642, %v3612
      %v3644 = vadd.f32 %v3643, %v3613
      %v3645 = vadd.f32 %v3644, %v3614
      %v3646 = vadd.f32 %v3645, %v3615
      %v3647 = vadd.f32 %v3646, %v3616
      %v3648 = vadd.f32 %v3647, %v3617
      %v3649 = vadd.f32 %v3648, %v3618
      %v3650 = vadd.f32 %v3649, %v3619
      %v3651 = vadd.f32 %v3650, %v3620
      %v3652 = vadd.f32 %v3651, %v3621
      %v3653 = vadd.f32 %v3652, %v3622
      %v3654 = vadd.f32 %v3653, %v3623
      %v3655 = vadd.f32 %v3654, %v3624
      %v3656 = vadd.f32 %v3655, %v3625
      %v3657 = vadd.f32 %v3656, %v3626
      %v3658 = vadd.f32 %v3657, %v3627
      %v3659 = vadd.f32 %v3658, %v3628
      %v3660 = vadd.f32 %v3659, %v3629
      %v3661 = vadd.f32 %v3660, %v3630
      %v3662 = vadd.f32 %v3661, %v3631
      %v3663 = vadd.f32 %v3662, %v3632
      %v3664 = vadd.f32 %v3663, %v3633
      %v3665 = vadd.f32 %v3664, %v3634
      %v3666 = vadd.f32 %v3665, %v3635
      %v3667 = vadd.f32 %v3666, %v3636
      %v3668 = vadd.f32 %v3667, %v3637
      %v3669 = vadd.f32 %v3668, %v3638
      %v3670 = vadd.f32 %v3669, %v3639
      %v3671 = vadd.f32 %v3670, %v3640
      %v3672 = vrot.slane %v3671, 4
      %v3673 = vadd.f32 %v3671, %v3672
      %v3674 = vrot.slane %v3673, 2
      %v3675 = vadd.f32 %v3673, %v3674
      %v3676 = vrot.slane %v3675, 1
      %v3677 = vadd.f32 %v3675, %v3676
      %3678 = vst [vmem:[%s214] sm:$0x1] %v3677
      %3679 = vxpose.xlu0.b32.start [1/16] %v3445, 128
      %3680 = vxpose.xlu0.b32.cont [2/16] %v3448, 128
      %3681 = vxpose.xlu0.b32.cont [3/16] %v3453, 128
      %3682 = vxpose.xlu0.b32.cont [4/16] %v3456, 128
      %3683 = vxpose.xlu0.b32.cont [5/16] %v3461, 128
      %3684 = vxpose.xlu0.b32.cont [6/16] %v3464, 128
      %3685 = vxpose.xlu0.b32.cont [7/16] %v3469, 128
      %3686 = vxpose.xlu0.b32.cont [8/16] %v3472, 128
      %3687 = vxpose.xlu0.b32.cont [9/16] %v3477, 128
      %3688 = vxpose.xlu0.b32.cont [10/16] %v3480, 128
      %3689 = vxpose.xlu0.b32.cont [11/16] %v3485, 128
      %3690 = vxpose.xlu0.b32.cont [12/16] %v3488, 128
      %3691 = vxpose.xlu0.b32.cont [13/16] %v3493, 128
      %3692 = vxpose.xlu0.b32.cont [14/16] %v3496, 128
      %3693 = vxpose.xlu0.b32.cont [15/16] %v3501, 128
      %3694 = vxpose.xlu0.b32.end [16/16] %v3504, 128
      %v3695 = vpop.trf.xlu0
      %v3696 = vpop.trf.xlu0
      %v3697 = vpop.trf.xlu0
      %v3698 = vpop.trf.xlu0
      %v3699 = vpop.trf.xlu0
      %v3700 = vpop.trf.xlu0
      %v3701 = vpop.trf.xlu0
      %v3702 = vpop.trf.xlu0
      %v3703 = vpop.trf.xlu0
      %v3704 = vpop.trf.xlu0
      %v3705 = vpop.trf.xlu0
      %v3706 = vpop.trf.xlu0
      %v3707 = vpop.trf.xlu0
      %v3708 = vpop.trf.xlu0
      %v3709 = vpop.trf.xlu0
      %v3710 = vpop.trf.xlu0
      %3711 = vxpose.xlu0.b32.start [1/16] %v3509, 128
      %3712 = vxpose.xlu0.b32.cont [2/16] %v3512, 128
      %3713 = vxpose.xlu0.b32.cont [3/16] %v3517, 128
      %3714 = vxpose.xlu0.b32.cont [4/16] %v3520, 128
      %3715 = vxpose.xlu0.b32.cont [5/16] %v3525, 128
      %3716 = vxpose.xlu0.b32.cont [6/16] %v3528, 128
      %3717 = vxpose.xlu0.b32.cont [7/16] %v3533, 128
      %3718 = vxpose.xlu0.b32.cont [8/16] %v3536, 128
      %3719 = vxpose.xlu0.b32.cont [9/16] %v3541, 128
      %3720 = vxpose.xlu0.b32.cont [10/16] %v3544, 128
      %3721 = vxpose.xlu0.b32.cont [11/16] %v3549, 128
      %3722 = vxpose.xlu0.b32.cont [12/16] %v3552, 128
      %3723 = vxpose.xlu0.b32.cont [13/16] %v3557, 128
      %3724 = vxpose.xlu0.b32.cont [14/16] %v3560, 128
      %3725 = vxpose.xlu0.b32.cont [15/16] %v3565, 128
      %3726 = vxpose.xlu0.b32.end [16/16] %v3568, 128
      %v3727 = vpop.trf.xlu0
      %v3728 = vpop.trf.xlu0
      %v3729 = vpop.trf.xlu0
      %v3730 = vpop.trf.xlu0
      %v3731 = vpop.trf.xlu0
      %v3732 = vpop.trf.xlu0
      %v3733 = vpop.trf.xlu0
      %v3734 = vpop.trf.xlu0
      %v3735 = vpop.trf.xlu0
      %v3736 = vpop.trf.xlu0
      %v3737 = vpop.trf.xlu0
      %v3738 = vpop.trf.xlu0
      %v3739 = vpop.trf.xlu0
      %v3740 = vpop.trf.xlu0
      %v3741 = vpop.trf.xlu0
      %v3742 = vpop.trf.xlu0
      %v3743 = vpack.c.bf16 %v3695, %v3695
      %v3744 = vpack.c.bf16 %v3727, %v3727
      %v3747 = vunpack.c.l.b16 %v3743
      %v3748 = vunpack.c.l.b16 %v3744
      %v3749 = vpack.c.b16 %v3748, %v3747
      %3751 = vst [vmem:[%s208] sm:$0xff] %v3749
      %p3752 = scmp.lt.s32.totalorder %s16, 1
      %s3753 = scalar_select %p3752, %s16, 1
      %s3754 = smul.addr %s3753, 2
      %s3755 = smul.addr %s3754, 4
      %s3756 = scalar_lea.vmem %s2, %s3755
      %p3757 = scmp.lt.s32.totalorder %s16, 1
      %s3758 = scalar_select %p3757, %s16, 1
      %s3759 = scalar_lea.vmem %s3, %s3758
      %p3760 = scmp.lt.s32.totalorder %s16, 1
      %s3761 = scalar_select %p3760, %s16, 1
      %s3762 = scalar_lea.vmem %s4, %s3761
      // Predicated region
      $region29: #{conv2d_block_forward.2} parent=27 // pred_check
        %p3763 = pneg %p81
      $region30: #{conv2d_block_forward.2} parent=27 // pred_check_branch
        %3765 = sbr.rel (%p3763) target = $region32
      $region31: #{conv2d_block_forward.2} parent=27 // pred_region
        _
      $region32: #{conv2d_block_forward.2} parent=27 // pred_fallthru
        _
      // Predicated region
      $region33: #{conv2d_block_forward.2} parent=27 // pred_check
        %p3766 = pneg %p107
      $region34: #{conv2d_block_forward.2} parent=27 // pred_check_branch
        %3768 = sbr.rel (%p3766) target = $region36
      $region35: #{conv2d_block_forward.2} parent=27 // pred_region
        _
      $region36: #{conv2d_block_forward.2} parent=27 // pred_fallthru
        _
      // Predicated region
      $region37: #{conv2d_block_forward.2} parent=27 // pred_check
        %p3769 = pneg %p133
      $region38: #{conv2d_block_forward.2} parent=27 // pred_check_branch
        %3771 = sbr.rel (%p3769) target = $region40
      $region39: #{conv2d_block_forward.2} parent=27 // pred_region
        _
      $region40: #{conv2d_block_forward.2} parent=27 // pred_fallthru
        _
    $region28: #{conv2d_block_forward.2} parent=5 // pred_fallthru
      _
    %p3772 = scmp.le.s32.totalorder 2, %s11
    // Predicated region
    $region41: #{conv2d_block_forward.2} parent=5 // pred_check
      %p3773 = pneg %p3772
    $region42: #{conv2d_block_forward.2} parent=5 // pred_check_branch
      %3775 = sbr.rel (%p3773) target = $region44
    $region43: #{conv2d_block_forward.2} parent=5 // pred_region
      %s3776 = ssub.s32 %s11, 2
      // Predicated region
      $region45: #{conv2d_block_forward.2} parent=43 // pred_check
        %p3777 = pneg %p87
      $region46: #{conv2d_block_forward.2} parent=43 // pred_check_branch
        %3779 = sbr.rel (%p3777) target = $region48
      $region47: #{conv2d_block_forward.2} parent=43 // pred_region
        %p3780 = scmp.lt.s32.totalorder %s17, 1
        %s3781 = scalar_select %p3780, %s17, 1
        %s3782 = smul.addr %s3781, 2
        %s3783 = smul.addr %s3782, 4
        %s3784 = scalar_lea.vmem %s2, %s3783
      $region48: #{conv2d_block_forward.2} parent=43 // pred_fallthru
        _
      // Predicated region
      $region49: #{conv2d_block_forward.2} parent=43 // pred_check
        %p3785 = pneg %p113
      $region50: #{conv2d_block_forward.2} parent=43 // pred_check_branch
        %3787 = sbr.rel (%p3785) target = $region52
      $region51: #{conv2d_block_forward.2} parent=43 // pred_region
        %p3788 = scmp.lt.s32.totalorder %s17, 1
        %s3789 = scalar_select %p3788, %s17, 1
        %s3790 = scalar_lea.vmem %s3, %s3789
      $region52: #{conv2d_block_forward.2} parent=43 // pred_fallthru
        _
      // Predicated region
      $region53: #{conv2d_block_forward.2} parent=43 // pred_check
        %p3791 = pneg %p139
      $region54: #{conv2d_block_forward.2} parent=43 // pred_check_branch
        %3793 = sbr.rel (%p3791) target = $region56
      $region55: #{conv2d_block_forward.2} parent=43 // pred_region
        %p3794 = scmp.lt.s32.totalorder %s17, 1
        %s3795 = scalar_select %p3794, %s17, 1
        %s3796 = scalar_lea.vmem %s4, %s3795
      $region56: #{conv2d_block_forward.2} parent=43 // pred_fallthru
        _
    $region44: #{conv2d_block_forward.2} parent=5 // pred_fallthru
      _
  $region6: #{conv2d_block_forward.2} parent=0 // loop_footer
    %s15 = sadd.s32 1, %s11
  $region7: #{conv2d_block_forward.2} parent=0 // loop_footer_branch
    %10 = sbr.rel target = $region3
  $region8: #{conv2d_block_forward.2} parent=0 // loop_exit
    _

</llo_original>
